<compile_context>
chip_gen: v6e
topology: v6e:2x2x1
jax: 0.10.0
libtpu: 0.0.40
codegen_flags: <defaults>
</compile_context>

<pallas_src>
import jax
import jax.numpy as jnp
from jax.experimental import pallas as pl
from jax.experimental.pallas import tpu as pltpu

# ---- logical / padded dimensions -----------------------------------------
IN_DIM = 784                 # 28*28 input (contraction dim; no padding needed)
HID = 200                    # logical hidden width
HID_PAD = 256                # padded hidden (2 * 128 lanes)
LATENT = 50                  # logical latent width
LATENT_PAD = 128             # padded latent (1 vreg wide)
HEAD_PAD = 2 * LATENT_PAD    # fused head slab: [mu(128-pad) | logstd(128-pad)]
OUT_PAD = 896                # decoder output padded 784 -> 7 * 128

# MACs per (padded) row of the batch: used for the CostEstimate.
_MACS_PER_ROW = (IN_DIM * HID_PAD + HID_PAD * HID_PAD + HID_PAD * HEAD_PAD
                 + LATENT_PAD * HID_PAD + HID_PAD * HID_PAD + HID_PAD * OUT_PAD)
_TRANS_PER_ROW = 4 * HID_PAD + LATENT_PAD + OUT_PAD   # 4x tanh + exp + sigmoid


def _choose_tile(batch):
    """Batch tile: >=2 grid steps whenever possible (v7x megacore), up to 256
    rows/step at large batch (fewer serial-step overheads on v5e/v6e)."""
    for tb in (256, 128, 64, 32, 16, 8):
        if batch >= 2 * tb:
            return tb
    return 8


# ---------------------------------------------------------------------------
# Pallas kernel: full VAE forward (encode -> reparameterize -> decode)
# ---------------------------------------------------------------------------
def _vr_forward_kernel(
    # inputs
    x_ref, eps_ref,
    w1_ref, b1_ref,
    w2_ref, b2_ref,
    w3_ref, b3_ref,          # fused fc31 | fc32
    w4_ref, b4_ref,
    w5_ref, b5_ref,
    w6_ref, b6_ref,
    # outputs
    xhat_ref, head_ref,
):
    bf16 = jnp.bfloat16
    x = x_ref[...]                  # (TB, 784) bf16 (cast done in wrapper)
    eps = eps_ref[...]              # (TB, 128) f32, zeros in padded cols

    # ---- encode (activations in f32, matmul operands bf16) ----
    h1 = jnp.tanh(
        jnp.dot(x, w1_ref[...], preferred_element_type=jnp.float32) + b1_ref[...]
    )                                                            # (TB, 256)
    h2 = jnp.tanh(
        jnp.dot(h1.astype(bf16), w2_ref[...],
                preferred_element_type=jnp.float32) + b2_ref[...]
    )                                                            # (TB, 256)

    # ---- fused mu/logstd heads: one lane-dense matmul ----
    head = (
        jnp.dot(h2.astype(bf16), w3_ref[...],
                preferred_element_type=jnp.float32) + b3_ref[...]
    )                                                            # (TB, 256)
    head_ref[...] = head             # single unmasked f32 store; wrapper splits

    mu = head[:, :LATENT_PAD]        # vreg-aligned slices (boundary at lane 128)
    logstd = head[:, LATENT_PAD:]

    # ---- reparameterize (padded cols: 0 + 0*exp(0) = 0) ----
    z = mu + eps * jnp.exp(logstd)   # (TB, 128) f32

    # ---- decode ----
    h3 = jnp.tanh(
        jnp.dot(z.astype(bf16), w4_ref[...],
                preferred_element_type=jnp.float32) + b4_ref[...]
    )                                                            # (TB, 256)
    h4 = jnp.tanh(
        jnp.dot(h3.astype(bf16), w5_ref[...],
                preferred_element_type=jnp.float32) + b5_ref[...]
    )                                                            # (TB, 256)
    logits = (
        jnp.dot(h4.astype(bf16), w6_ref[...],
                preferred_element_type=jnp.float32) + b6_ref[...]
    )                                                            # (TB, 896)
    xhat_ref[...] = jax.nn.sigmoid(logits).astype(xhat_ref.dtype)   # bf16 store


# ---------------------------------------------------------------------------
# Parameter construction (PyTorch-Linear-style uniform init, unpadded layout)
# ---------------------------------------------------------------------------
def init_params(key):
    """Weights as (in, out) f32, biases as (1, out) f32 (PyTorch-transposed)."""
    dims = {
        "fc1": (784, 200),
        "fc2": (200, 200),
        "fc31": (200, 50),
        "fc32": (200, 50),
        "fc4": (50, 200),
        "fc5": (200, 200),
        "fc6": (200, 784),
    }
    params = {}
    keys = jax.random.split(key, 2 * len(dims))
    for i, (name, (din, dout)) in enumerate(dims.items()):
        bound = 1.0 / jnp.sqrt(jnp.float32(din))
        w = jax.random.uniform(keys[2 * i], (din, dout), jnp.float32, -bound, bound)
        b = jax.random.uniform(keys[2 * i + 1], (1, dout), jnp.float32, -bound, bound)
        params[name] = (w, b)
    return params


def pack_params(params):
    """Pad to lane-multiple dims, fuse fc31/fc32, cast weights to bf16."""
    def pad_w(w, rows, cols):
        out = jnp.zeros((rows, cols), jnp.float32)
        out = out.at[: w.shape[0], : w.shape[1]].set(w)
        return out.astype(jnp.bfloat16)

    def pad_b(b, cols):
        out = jnp.zeros((1, cols), jnp.float32)
        return out.at[:, : b.shape[1]].set(b)

    w1, b1 = params["fc1"]
    w2, b2 = params["fc2"]
    w31, b31 = params["fc31"]
    w32, b32 = params["fc32"]
    w4, b4 = params["fc4"]
    w5, b5 = params["fc5"]
    w6, b6 = params["fc6"]

    # Fused head weight: mu -> cols [0:50], logstd -> cols [128:178], rest zero.
    w3 = jnp.zeros((HID_PAD, HEAD_PAD), jnp.float32)
    w3 = w3.at[:HID, :LATENT].set(w31)
    w3 = w3.at[:HID, LATENT_PAD:LATENT_PAD + LATENT].set(w32)
    b3 = jnp.zeros((1, HEAD_PAD), jnp.float32)
    b3 = b3.at[:, :LATENT].set(b31)
    b3 = b3.at[:, LATENT_PAD:LATENT_PAD + LATENT].set(b32)

    return {
        "w1": pad_w(w1, IN_DIM, HID_PAD), "b1": pad_b(b1, HID_PAD),
        "w2": pad_w(w2, HID_PAD, HID_PAD), "b2": pad_b(b2, HID_PAD),
        "w3": w3.astype(jnp.bfloat16), "b3": b3,
        "w4": pad_w(w4, LATENT_PAD, HID_PAD), "b4": pad_b(b4, HID_PAD),
        "w5": pad_w(w5, HID_PAD, HID_PAD), "b5": pad_b(b5, HID_PAD),
        "w6": pad_w(w6, HID_PAD, OUT_PAD), "b6": pad_b(b6, OUT_PAD),
    }


# ---------------------------------------------------------------------------
# Wrapper
# ---------------------------------------------------------------------------
_WEIGHT_ORDER = ("w1", "b1", "w2", "b2", "w3", "b3",
                 "w4", "b4", "w5", "b5", "w6", "b6")


@jax.jit
def vr_model_forward(x, eps, packed):
    """x: (B, 784) f32, eps: (B, 50) f32 -> (x_hat (B,784), mu (B,50), logstd (B,50))."""
    B = x.shape[0]
    TB = _choose_tile(B)
    B_pad = ((B + TB - 1) // TB) * TB
    grid = (B_pad // TB,)

    # Input staging: cast x to bf16 (halves its HBM footprint); skip the batch
    # zero-pad copy entirely when B is already a tile multiple.
    if B_pad == B:
        x_p = x.astype(jnp.bfloat16)
    else:
        x_p = jnp.zeros((B_pad, IN_DIM), jnp.bfloat16).at[:B].set(
            x.astype(jnp.bfloat16))
    eps_p = jnp.zeros((B_pad, LATENT_PAD), jnp.float32).at[:B, :LATENT].set(eps)

    def row_spec(width):
        return pl.BlockSpec((TB, width), lambda i: (i, 0))

    def resident_spec(arr):
        # Same block every grid step -> fetched once, stays in VMEM.
        return pl.BlockSpec(arr.shape, lambda i: (0, 0))

    w_args = [packed[k] for k in _WEIGHT_ORDER]
    w_specs = [resident_spec(a) for a in w_args]

    out_shapes = (
        jax.ShapeDtypeStruct((B_pad, OUT_PAD), jnp.bfloat16),  # x_hat slab (bf16)
        jax.ShapeDtypeStruct((B_pad, HEAD_PAD), jnp.float32),  # [mu|logstd] slab
    )

    weight_bytes = sum(int(a.size) * a.dtype.itemsize for a in w_args)
    cost = pl.CostEstimate(
        flops=int(2 * _MACS_PER_ROW * B_pad),
        transcendentals=int(_TRANS_PER_ROW * B_pad),
        bytes_accessed=int(
            B_pad * IN_DIM * 2          # x (bf16)
            + B_pad * LATENT_PAD * 4    # eps (f32)
            + weight_bytes              # resident weights/biases (fetched once)
            + B_pad * OUT_PAD * 2       # x_hat slab (bf16)
            + B_pad * HEAD_PAD * 4      # head slab (f32)
        ),
    )

    xhat_slab, head_slab = pl.pallas_call(
        _vr_forward_kernel,
        out_shape=out_shapes,
        grid=grid,
        in_specs=[row_spec(IN_DIM), row_spec(LATENT_PAD)] + w_specs,
        out_specs=(row_spec(OUT_PAD), row_spec(HEAD_PAD)),
        compiler_params=pltpu.CompilerParams(
            dimension_semantics=("parallel",),
        ),
        cost_estimate=cost,
    )(x_p, eps_p, *w_args)

    # Slice to logical shapes; x_hat slice + f32 cast fuse into a single copy.
    x_hat = xhat_slab[:B, :IN_DIM].astype(jnp.float32)
    mu = head_slab[:B, :LATENT]
    logstd = head_slab[:B, LATENT_PAD:LATENT_PAD + LATENT]
    return x_hat, mu, logstd


# ---------------------------------------------------------------------------
# Pure-JAX reference (same bf16-matmul / f32-accumulate semantics)
# ---------------------------------------------------------------------------
def vr_model_forward_ref(x, eps, params):
    bf16 = jnp.bfloat16

    def lin(h, name):
        w, b = params[name]
        return jnp.dot(h.astype(bf16), w.astype(bf16),
                       preferred_element_type=jnp.float32) + b

    h1 = jnp.tanh(lin(x, "fc1"))
    h2 = jnp.tanh(lin(h1, "fc2"))
    mu = lin(h2, "fc31")
    logstd = lin(h2, "fc32")
    z = mu + eps * jnp.exp(logstd)
    h3 = jnp.tanh(lin(z, "fc4"))
    h4 = jnp.tanh(lin(h3, "fc5"))
    x_hat = jax.nn.sigmoid(lin(h4, "fc6"))
    return x_hat, mu, logstd


if __name__ == "__main__":
    key = jax.random.PRNGKey(0)
    k_params, k_x, k_eps = jax.random.split(key, 3)

    # "MNIST-like" inputs in [0, 1]; module flattens to (-1, 784).
    # B = 256 -> two batch tiles (grid=(2,)), exercises the parallel batch axis.
    B = 256
    x_img = jax.random.uniform(k_x, (B, 1, 28, 28), jnp.float32)
    x = x_img.reshape(-1, 784)                                # x.view(-1, 784)
    eps = jax.random.normal(k_eps, (B, LATENT), jnp.float32)  # torch.randn_like(std)
    # TODO(synk): torch.randn_like RNG inside forward is replaced by an explicit
    # eps input (deterministic reparameterization noise).

    params = init_params(k_params)
    packed = pack_params(params)

    x_hat, mu, logstd = vr_model_forward(x, eps, packed)
    jax.block_until_ready((x_hat, mu, logstd))

    # Sanity check vs. pure-JAX reference (identical bf16/f32 mixed precision;
    # x_hat additionally goes through one bf16 store round-trip).
    x_hat_r, mu_r, logstd_r = vr_model_forward_ref(x, eps, params)
    assert x_hat.shape == (B, 784) and mu.shape == (B, 50) and logstd.shape == (B, 50)
    assert jnp.allclose(x_hat, x_hat_r, atol=2e-2, rtol=2e-2)
    assert jnp.allclose(mu, mu_r, atol=1e-2, rtol=1e-2)
    assert jnp.allclose(logstd, logstd_r, atol=1e-2, rtol=1e-2)

    print("KERNEL_OK")
</pallas_src>

<mosaic_0001>
module attributes {stable_mosaic.version = 11 : i64} {
  func.func @_vr_forward_kernel(%arg0: i32, %arg1: memref<128x784xbf16, #tpu.memory_space<vmem>>, %arg2: memref<128x128xf32, #tpu.memory_space<vmem>>, %arg3: memref<784x256xbf16, #tpu.memory_space<vmem>>, %arg4: memref<1x256xf32, #tpu.memory_space<vmem>>, %arg5: memref<256x256xbf16, #tpu.memory_space<vmem>>, %arg6: memref<1x256xf32, #tpu.memory_space<vmem>>, %arg7: memref<256x256xbf16, #tpu.memory_space<vmem>>, %arg8: memref<1x256xf32, #tpu.memory_space<vmem>>, %arg9: memref<128x256xbf16, #tpu.memory_space<vmem>>, %arg10: memref<1x256xf32, #tpu.memory_space<vmem>>, %arg11: memref<256x256xbf16, #tpu.memory_space<vmem>>, %arg12: memref<1x256xf32, #tpu.memory_space<vmem>>, %arg13: memref<256x896xbf16, #tpu.memory_space<vmem>>, %arg14: memref<1x896xf32, #tpu.memory_space<vmem>>, %arg15: memref<128x896xbf16, #tpu.memory_space<vmem>>, %arg16: memref<128x256xf32, #tpu.memory_space<vmem>>) attributes {dimension_semantics = [#tpu.dimension_semantics<parallel>], iteration_bounds = array<i64: 2>, scalar_prefetch = 0 : i64, scratch_operands = 0 : i64, tpu.core_type = #tpu.core_type<tc>, window_params = [{transform_indices = @transform_0, window_bounds = array<i64: 128, 784>}, {transform_indices = @transform_1, window_bounds = array<i64: 128, 128>}, {pipeline_mode = #tpu.pipeline_mode<synchronous>, transform_indices = @transform_2, window_bounds = array<i64: 784, 256>}, {pipeline_mode = #tpu.pipeline_mode<synchronous>, transform_indices = @transform_3, window_bounds = array<i64: 1, 256>}, {pipeline_mode = #tpu.pipeline_mode<synchronous>, transform_indices = @transform_4, window_bounds = array<i64: 256, 256>}, {pipeline_mode = #tpu.pipeline_mode<synchronous>, transform_indices = @transform_5, window_bounds = array<i64: 1, 256>}, {pipeline_mode = #tpu.pipeline_mode<synchronous>, transform_indices = @transform_6, window_bounds = array<i64: 256, 256>}, {pipeline_mode = #tpu.pipeline_mode<synchronous>, transform_indices = @transform_7, window_bounds = array<i64: 1, 256>}, {pipeline_mode = #tpu.pipeline_mode<synchronous>, transform_indices = @transform_8, window_bounds = array<i64: 128, 256>}, {pipeline_mode = #tpu.pipeline_mode<synchronous>, transform_indices = @transform_9, window_bounds = array<i64: 1, 256>}, {pipeline_mode = #tpu.pipeline_mode<synchronous>, transform_indices = @transform_10, window_bounds = array<i64: 256, 256>}, {pipeline_mode = #tpu.pipeline_mode<synchronous>, transform_indices = @transform_11, window_bounds = array<i64: 1, 256>}, {pipeline_mode = #tpu.pipeline_mode<synchronous>, transform_indices = @transform_12, window_bounds = array<i64: 256, 896>}, {pipeline_mode = #tpu.pipeline_mode<synchronous>, transform_indices = @transform_13, window_bounds = array<i64: 1, 896>}, {transform_indices = @transform_14, window_bounds = array<i64: 128, 896>}, {transform_indices = @transform_15, window_bounds = array<i64: 128, 256>}]} {
    %c0 = arith.constant 0 : index
    %c0_0 = arith.constant 0 : index
    %0 = vector.load %arg1[%c0, %c0_0] : memref<128x784xbf16, #tpu.memory_space<vmem>>, vector<128x784xbf16>
    %c0_1 = arith.constant 0 : index
    %c0_2 = arith.constant 0 : index
    %1 = vector.load %arg2[%c0_1, %c0_2] : memref<128x128xf32, #tpu.memory_space<vmem>>, vector<128x128xf32>
    %c0_3 = arith.constant 0 : index
    %c0_4 = arith.constant 0 : index
    %2 = vector.load %arg3[%c0_3, %c0_4] : memref<784x256xbf16, #tpu.memory_space<vmem>>, vector<784x256xbf16>
    %cst = arith.constant dense<0.000000e+00> : vector<128x256xf32>
    %3 = tpu.matmul %0, %2, %cst {dimension_numbers = #tpu.dot_dimension_numbers<[1], [0], [0], [1], [0, 0, 1, 1], [], []>} : vector<128x784xbf16>, vector<784x256xbf16>, vector<128x256xf32> -> vector<128x256xf32>
    %c0_5 = arith.constant 0 : index
    %c0_6 = arith.constant 0 : index
    %4 = vector.load %arg4[%c0_5, %c0_6] : memref<1x256xf32, #tpu.memory_space<vmem>>, vector<1x256xf32>
    %5 = vector.broadcast %4 : vector<1x256xf32> to vector<128x256xf32>
    %6 = arith.addf %3, %5 : vector<128x256xf32>
    %7 = math.tanh %6 : vector<128x256xf32>
    %8 = arith.truncf %7 : vector<128x256xf32> to vector<128x256xbf16>
    %c0_7 = arith.constant 0 : index
    %c0_8 = arith.constant 0 : index
    %9 = vector.load %arg5[%c0_7, %c0_8] : memref<256x256xbf16, #tpu.memory_space<vmem>>, vector<256x256xbf16>
    %cst_9 = arith.constant dense<0.000000e+00> : vector<128x256xf32>
    %10 = tpu.matmul %8, %9, %cst_9 {dimension_numbers = #tpu.dot_dimension_numbers<[1], [0], [0], [1], [0, 0, 1, 1], [], []>} : vector<128x256xbf16>, vector<256x256xbf16>, vector<128x256xf32> -> vector<128x256xf32>
    %c0_10 = arith.constant 0 : index
    %c0_11 = arith.constant 0 : index
    %11 = vector.load %arg6[%c0_10, %c0_11] : memref<1x256xf32, #tpu.memory_space<vmem>>, vector<1x256xf32>
    %12 = vector.broadcast %11 : vector<1x256xf32> to vector<128x256xf32>
    %13 = arith.addf %10, %12 : vector<128x256xf32>
    %14 = math.tanh %13 : vector<128x256xf32>
    %15 = arith.truncf %14 : vector<128x256xf32> to vector<128x256xbf16>
    %c0_12 = arith.constant 0 : index
    %c0_13 = arith.constant 0 : index
    %16 = vector.load %arg7[%c0_12, %c0_13] : memref<256x256xbf16, #tpu.memory_space<vmem>>, vector<256x256xbf16>
    %cst_14 = arith.constant dense<0.000000e+00> : vector<128x256xf32>
    %17 = tpu.matmul %15, %16, %cst_14 {dimension_numbers = #tpu.dot_dimension_numbers<[1], [0], [0], [1], [0, 0, 1, 1], [], []>} : vector<128x256xbf16>, vector<256x256xbf16>, vector<128x256xf32> -> vector<128x256xf32>
    %c0_15 = arith.constant 0 : index
    %c0_16 = arith.constant 0 : index
    %18 = vector.load %arg8[%c0_15, %c0_16] : memref<1x256xf32, #tpu.memory_space<vmem>>, vector<1x256xf32>
    %19 = vector.broadcast %18 : vector<1x256xf32> to vector<128x256xf32>
    %20 = arith.addf %17, %19 : vector<128x256xf32>
    %c0_17 = arith.constant 0 : index
    %c0_18 = arith.constant 0 : index
    %21 = vector.load %arg16[%c0_17, %c0_18] : memref<128x256xf32, #tpu.memory_space<vmem>>, vector<128x256xf32>
    tpu.vector_store %arg16[%c0_17, %c0_18], %20 {strides = array<i32>} : memref<128x256xf32, #tpu.memory_space<vmem>>, vector<128x256xf32>,
    %22 = vector.extract_strided_slice %20 {offsets = [0, 0], sizes = [128, 128], strides = [1, 1]} : vector<128x256xf32> to vector<128x128xf32>
    %23 = vector.extract_strided_slice %20 {offsets = [0, 128], sizes = [128, 128], strides = [1, 1]} : vector<128x256xf32> to vector<128x128xf32>
    %24 = math.exp %23 : vector<128x128xf32>
    %25 = arith.mulf %1, %24 : vector<128x128xf32>
    %26 = arith.addf %22, %25 : vector<128x128xf32>
    %27 = arith.truncf %26 : vector<128x128xf32> to vector<128x128xbf16>
    %c0_19 = arith.constant 0 : index
    %c0_20 = arith.constant 0 : index
    %28 = vector.load %arg9[%c0_19, %c0_20] : memref<128x256xbf16, #tpu.memory_space<vmem>>, vector<128x256xbf16>
    %cst_21 = arith.constant dense<0.000000e+00> : vector<128x256xf32>
    %29 = tpu.matmul %27, %28, %cst_21 {dimension_numbers = #tpu.dot_dimension_numbers<[1], [0], [0], [1], [0, 0, 1, 1], [], []>} : vector<128x128xbf16>, vector<128x256xbf16>, vector<128x256xf32> -> vector<128x256xf32>
    %c0_22 = arith.constant 0 : index
    %c0_23 = arith.constant 0 : index
    %30 = vector.load %arg10[%c0_22, %c0_23] : memref<1x256xf32, #tpu.memory_space<vmem>>, vector<1x256xf32>
    %31 = vector.broadcast %30 : vector<1x256xf32> to vector<128x256xf32>
    %32 = arith.addf %29, %31 : vector<128x256xf32>
    %33 = math.tanh %32 : vector<128x256xf32>
    %34 = arith.truncf %33 : vector<128x256xf32> to vector<128x256xbf16>
    %c0_24 = arith.constant 0 : index
    %c0_25 = arith.constant 0 : index
    %35 = vector.load %arg11[%c0_24, %c0_25] : memref<256x256xbf16, #tpu.memory_space<vmem>>, vector<256x256xbf16>
    %cst_26 = arith.constant dense<0.000000e+00> : vector<128x256xf32>
    %36 = tpu.matmul %34, %35, %cst_26 {dimension_numbers = #tpu.dot_dimension_numbers<[1], [0], [0], [1], [0, 0, 1, 1], [], []>} : vector<128x256xbf16>, vector<256x256xbf16>, vector<128x256xf32> -> vector<128x256xf32>
    %c0_27 = arith.constant 0 : index
    %c0_28 = arith.constant 0 : index
    %37 = vector.load %arg12[%c0_27, %c0_28] : memref<1x256xf32, #tpu.memory_space<vmem>>, vector<1x256xf32>
    %38 = vector.broadcast %37 : vector<1x256xf32> to vector<128x256xf32>
    %39 = arith.addf %36, %38 : vector<128x256xf32>
    %40 = math.tanh %39 : vector<128x256xf32>
    %41 = arith.truncf %40 : vector<128x256xf32> to vector<128x256xbf16>
    %c0_29 = arith.constant 0 : index
    %c0_30 = arith.constant 0 : index
    %42 = vector.load %arg13[%c0_29, %c0_30] : memref<256x896xbf16, #tpu.memory_space<vmem>>, vector<256x896xbf16>
    %cst_31 = arith.constant dense<0.000000e+00> : vector<128x896xf32>
    %43 = tpu.matmul %41, %42, %cst_31 {dimension_numbers = #tpu.dot_dimension_numbers<[1], [0], [0], [1], [0, 0, 1, 1], [], []>} : vector<128x256xbf16>, vector<256x896xbf16>, vector<128x896xf32> -> vector<128x896xf32>
    %c0_32 = arith.constant 0 : index
    %c0_33 = arith.constant 0 : index
    %44 = vector.load %arg14[%c0_32, %c0_33] : memref<1x896xf32, #tpu.memory_space<vmem>>, vector<1x896xf32>
    %45 = vector.broadcast %44 : vector<1x896xf32> to vector<128x896xf32>
    %46 = arith.addf %43, %45 : vector<128x896xf32>
    %47 = arith.negf %46 : vector<128x896xf32>
    %48 = math.exp %47 : vector<128x896xf32>
    %cst_34 = arith.constant 1.000000e+00 : f32
    %49 = vector.broadcast %cst_34 : f32 to vector<128x896xf32>
    %50 = arith.addf %49, %48 : vector<128x896xf32>
    %51 = arith.divf %49, %50 : vector<128x896xf32>
    %52 = arith.truncf %51 : vector<128x896xf32> to vector<128x896xbf16>
    %c0_35 = arith.constant 0 : index
    %c0_36 = arith.constant 0 : index
    %53 = vector.load %arg15[%c0_35, %c0_36] : memref<128x896xbf16, #tpu.memory_space<vmem>>, vector<128x896xbf16>
    tpu.vector_store %arg15[%c0_35, %c0_36], %52 {strides = array<i32>} : memref<128x896xbf16, #tpu.memory_space<vmem>>, vector<128x896xbf16>,
    return
  }
  func.func @transform_0(%arg0: i32) -> (i32, i32) {
    %c0_i32 = arith.constant 0 : i32
    %c0_i32_0 = arith.constant 0 : i32
    return %arg0, %c0_i32 : i32, i32
  }
  func.func @transform_1(%arg0: i32) -> (i32, i32) {
    %c0_i32 = arith.constant 0 : i32
    %c0_i32_0 = arith.constant 0 : i32
    return %arg0, %c0_i32 : i32, i32
  }
  func.func @transform_2(%arg0: i32) -> (i32, i32) {
    %c0_i32 = arith.constant 0 : i32
    %c0_i32_0 = arith.constant 0 : i32
    %c0_i32_1 = arith.constant 0 : i32
    return %c0_i32, %c0_i32_0 : i32, i32
  }
  func.func @transform_3(%arg0: i32) -> (i32, i32) {
    %c0_i32 = arith.constant 0 : i32
    %c0_i32_0 = arith.constant 0 : i32
    %c0_i32_1 = arith.constant 0 : i32
    return %c0_i32, %c0_i32_0 : i32, i32
  }
  func.func @transform_4(%arg0: i32) -> (i32, i32) {
    %c0_i32 = arith.constant 0 : i32
    %c0_i32_0 = arith.constant 0 : i32
    %c0_i32_1 = arith.constant 0 : i32
    return %c0_i32, %c0_i32_0 : i32, i32
  }
  func.func @transform_5(%arg0: i32) -> (i32, i32) {
    %c0_i32 = arith.constant 0 : i32
    %c0_i32_0 = arith.constant 0 : i32
    %c0_i32_1 = arith.constant 0 : i32
    return %c0_i32, %c0_i32_0 : i32, i32
  }
  func.func @transform_6(%arg0: i32) -> (i32, i32) {
    %c0_i32 = arith.constant 0 : i32
    %c0_i32_0 = arith.constant 0 : i32
    %c0_i32_1 = arith.constant 0 : i32
    return %c0_i32, %c0_i32_0 : i32, i32
  }
  func.func @transform_7(%arg0: i32) -> (i32, i32) {
    %c0_i32 = arith.constant 0 : i32
    %c0_i32_0 = arith.constant 0 : i32
    %c0_i32_1 = arith.constant 0 : i32
    return %c0_i32, %c0_i32_0 : i32, i32
  }
  func.func @transform_8(%arg0: i32) -> (i32, i32) {
    %c0_i32 = arith.constant 0 : i32
    %c0_i32_0 = arith.constant 0 : i32
    %c0_i32_1 = arith.constant 0 : i32
    return %c0_i32, %c0_i32_0 : i32, i32
  }
  func.func @transform_9(%arg0: i32) -> (i32, i32) {
    %c0_i32 = arith.constant 0 : i32
    %c0_i32_0 = arith.constant 0 : i32
    %c0_i32_1 = arith.constant 0 : i32
    return %c0_i32, %c0_i32_0 : i32, i32
  }
  func.func @transform_10(%arg0: i32) -> (i32, i32) {
    %c0_i32 = arith.constant 0 : i32
    %c0_i32_0 = arith.constant 0 : i32
    %c0_i32_1 = arith.constant 0 : i32
    return %c0_i32, %c0_i32_0 : i32, i32
  }
  func.func @transform_11(%arg0: i32) -> (i32, i32) {
    %c0_i32 = arith.constant 0 : i32
    %c0_i32_0 = arith.constant 0 : i32
    %c0_i32_1 = arith.constant 0 : i32
    return %c0_i32, %c0_i32_0 : i32, i32
  }
  func.func @transform_12(%arg0: i32) -> (i32, i32) {
    %c0_i32 = arith.constant 0 : i32
    %c0_i32_0 = arith.constant 0 : i32
    %c0_i32_1 = arith.constant 0 : i32
    return %c0_i32, %c0_i32_0 : i32, i32
  }
  func.func @transform_13(%arg0: i32) -> (i32, i32) {
    %c0_i32 = arith.constant 0 : i32
    %c0_i32_0 = arith.constant 0 : i32
    %c0_i32_1 = arith.constant 0 : i32
    return %c0_i32, %c0_i32_0 : i32, i32
  }
  func.func @transform_14(%arg0: i32) -> (i32, i32) {
    %c0_i32 = arith.constant 0 : i32
    %c0_i32_0 = arith.constant 0 : i32
    return %arg0, %c0_i32 : i32, i32
  }
  func.func @transform_15(%arg0: i32) -> (i32, i32) {
    %c0_i32 = arith.constant 0 : i32
    %c0_i32_0 = arith.constant 0 : i32
    return %arg0, %c0_i32 : i32, i32
  }
}

</mosaic_0001>

<llo_original>
// kernel: vr_model_forward.1
$region0: #{vr_model_forward.1}
  #allocation0 [shape = 'u32[]', space=smem, size = 0x4, offset = 0x4, fixed_abs, tag = 'smem constant byte address 0x4 - core index']
  #allocation1 [shape = 'u32[144,128]{1,0:T(1,128)}', space=vmem, size = 0x12000, scoped, tag = 'internal scratch']
  %s0 = inlined_call_operand.vmem [shape: bf16[256,784], index: 0, kind: input, shape index: {}]
  %s1 = inlined_call_operand.vmem [shape: f32[256,128], index: 1, kind: input, shape index: {}]
  %s2 = inlined_call_operand.vmem [shape: bf16[784,256], index: 2, kind: input, shape index: {}]
  %s3 = inlined_call_operand.vmem [shape: f32[1,256], index: 3, kind: input, shape index: {}]
  %s4 = inlined_call_operand.vmem [shape: bf16[256,256], index: 4, kind: input, shape index: {}]
  %s5 = inlined_call_operand.vmem [shape: f32[1,256], index: 5, kind: input, shape index: {}]
  %s6 = inlined_call_operand.vmem [shape: bf16[256,256], index: 6, kind: input, shape index: {}]
  %s7 = inlined_call_operand.vmem [shape: f32[1,256], index: 7, kind: input, shape index: {}]
  %s8 = inlined_call_operand.vmem [shape: bf16[128,256], index: 8, kind: input, shape index: {}]
  %s9 = inlined_call_operand.vmem [shape: f32[1,256], index: 9, kind: input, shape index: {}]
  %s10 = inlined_call_operand.vmem [shape: bf16[256,256], index: 10, kind: input, shape index: {}]
  %s11 = inlined_call_operand.vmem [shape: f32[1,256], index: 11, kind: input, shape index: {}]
  %s12 = inlined_call_operand.vmem [shape: bf16[256,896], index: 12, kind: input, shape index: {}]
  %s13 = inlined_call_operand.vmem [shape: f32[1,896], index: 13, kind: input, shape index: {}]
  %s14 = inlined_call_operand.vmem [shape: bf16[256,896], index: 14, kind: output, shape index: {0}]
  %s15 = inlined_call_operand.vmem [shape: f32[256,256], index: 15, kind: output, shape index: {1}]
  %16 = xla_tuple %s14, %s15
  %s17 = sld [smem:[#allocation0]]
  $region97: #{vr_model_forward.1} parent=0
    _
  %s19 = ssub.s32 1, %s17
  %s20 = scalar_select 0, %s19, %s17
  loop: start=0, step=1, limit=4
  $region2: #{vr_model_forward.1} parent=0 // loop_pre_header
    _
  $region3: #{vr_model_forward.1} parent=0 // loop_header
    %s22 = sphi 0, %s26
    %p23 = scmp.ge.s32.totalorder %s22, 4
    %s32 = sphi 0, %s34
    %s35 = sphi 0, %s32
    %s36 = sphi 0, %s35
    %s52 = sphi 0, %s36
    %s58 = sphi 0, %s60
    %s61 = sphi 0, %s58
    %s62 = sphi 0, %s61
    %s78 = sphi 0, %s62
    %s82 = sphi 0, %s82
    %s84 = sphi 0, %s82
    %s85 = sphi 0, %s84
    %s99 = sphi 0, %s85
    %s103 = sphi 0, %s103
    %s105 = sphi 0, %s103
    %s106 = sphi 0, %s105
    %s120 = sphi 0, %s106
    %s124 = sphi 0, %s124
    %s126 = sphi 0, %s124
    %s127 = sphi 0, %s126
    %s141 = sphi 0, %s127
    %s145 = sphi 0, %s145
    %s147 = sphi 0, %s145
    %s148 = sphi 0, %s147
    %s162 = sphi 0, %s148
    %s166 = sphi 0, %s166
    %s168 = sphi 0, %s166
    %s169 = sphi 0, %s168
    %s183 = sphi 0, %s169
    %s187 = sphi 0, %s187
    %s189 = sphi 0, %s187
    %s190 = sphi 0, %s189
    %s204 = sphi 0, %s190
    %s208 = sphi 0, %s208
    %s210 = sphi 0, %s208
    %s211 = sphi 0, %s210
    %s225 = sphi 0, %s211
    %s229 = sphi 0, %s229
    %s231 = sphi 0, %s229
    %s232 = sphi 0, %s231
    %s246 = sphi 0, %s232
    %s250 = sphi 0, %s250
    %s252 = sphi 0, %s250
    %s253 = sphi 0, %s252
    %s267 = sphi 0, %s253
    %s271 = sphi 0, %s271
    %s273 = sphi 0, %s271
    %s274 = sphi 0, %s273
    %s288 = sphi 0, %s274
    %s292 = sphi 0, %s292
    %s294 = sphi 0, %s292
    %s295 = sphi 0, %s294
    %s309 = sphi 0, %s295
    %s313 = sphi 0, %s313
    %s315 = sphi 0, %s313
    %s316 = sphi 0, %s315
    %s330 = sphi 0, %s316
    %s336 = sphi 0, %s338
    %s339 = sphi 0, %s336
    %s340 = sphi 0, %s339
    %s356 = sphi 0, %s340
    %s362 = sphi 0, %s364
    %s365 = sphi 0, %s362
    %s366 = sphi 0, %s365
    %s382 = sphi 0, %s366
  $region4: #{vr_model_forward.1} parent=0 // loop_header_branch
    %25 = sbr.rel (%p23) target = $region8
  $region5: #{vr_model_forward.1} parent=0 // loop_body
    %s27 = ssub.s32 %s22, 1
    %s28 = ssub.s32 %s22, 2
    %s29 = sadd.s32 %s22, 1
    %s30 = ssub.s32 %s22, %s29
    %p31 = scmp.eq.s32.totalorder %s30, 0
    %s33 = sadd.s32 %s32, 1
    %s34 = scalar_select %p31, %s32, %s33
    %p37 = pneg %p31
    %p38 = scmp.eq.s32.totalorder %s22, 1
    %p39 = por %p37, %p38
    %p40 = scmp.ne.s32.totalorder %s32, %s35
    %p41 = scmp.eq.s32.totalorder %s22, 0
    %p42 = por %p40, %p41
    %p43 = scmp.ne.s32.totalorder %s32, %s35
    %p44 = scmp.eq.s32.totalorder %s27, 1
    %p45 = por %p43, %p44
    %p46 = scmp.ne.s32.totalorder %s35, %s36
    %p47 = scmp.eq.s32.totalorder %s27, 0
    %p48 = por %p46, %p47
    %p49 = scmp.ne.s32.totalorder %s35, %s36
    %p50 = scmp.eq.s32.totalorder %s28, 1
    %p51 = por %p49, %p50
    %p53 = scmp.ne.s32.totalorder %s36, %s52
    %p54 = scmp.eq.s32.totalorder %s28, 0
    %p55 = por %p53, %p54
    %s56 = ssub.s32 %s22, %s29
    %p57 = scmp.eq.s32.totalorder %s56, 0
    %s59 = sadd.s32 %s58, 1
    %s60 = scalar_select %p57, %s58, %s59
    %p63 = pneg %p57
    %p64 = scmp.eq.s32.totalorder %s22, 1
    %p65 = por %p63, %p64
    %p66 = scmp.ne.s32.totalorder %s58, %s61
    %p67 = scmp.eq.s32.totalorder %s22, 0
    %p68 = por %p66, %p67
    %p69 = scmp.ne.s32.totalorder %s58, %s61
    %p70 = scmp.eq.s32.totalorder %s27, 1
    %p71 = por %p69, %p70
    %p72 = scmp.ne.s32.totalorder %s61, %s62
    %p73 = scmp.eq.s32.totalorder %s27, 0
    %p74 = por %p72, %p73
    %p75 = scmp.ne.s32.totalorder %s61, %s62
    %p76 = scmp.eq.s32.totalorder %s28, 1
    %p77 = por %p75, %p76
    %p79 = scmp.ne.s32.totalorder %s62, %s78
    %p80 = scmp.eq.s32.totalorder %s28, 0
    %p81 = por %p79, %p80
    %s83 = sadd.s32 %s82, 1
    %p86 = scmp.eq.s32.totalorder %s22, 1
    %p87 = scmp.ne.s32.totalorder %s82, %s84
    %p88 = scmp.eq.s32.totalorder %s22, 0
    %p89 = por %p87, %p88
    %p90 = scmp.ne.s32.totalorder %s82, %s84
    %p91 = scmp.eq.s32.totalorder %s27, 1
    %p92 = por %p90, %p91
    %p93 = scmp.ne.s32.totalorder %s84, %s85
    %p94 = scmp.eq.s32.totalorder %s27, 0
    %p95 = por %p93, %p94
    %p96 = scmp.ne.s32.totalorder %s84, %s85
    %p97 = scmp.eq.s32.totalorder %s28, 1
    %p98 = por %p96, %p97
    %p100 = scmp.ne.s32.totalorder %s85, %s99
    %p101 = scmp.eq.s32.totalorder %s28, 0
    %p102 = por %p100, %p101
    %s104 = sadd.s32 %s103, 1
    %p107 = scmp.eq.s32.totalorder %s22, 1
    %p108 = scmp.ne.s32.totalorder %s103, %s105
    %p109 = scmp.eq.s32.totalorder %s22, 0
    %p110 = por %p108, %p109
    %p111 = scmp.ne.s32.totalorder %s103, %s105
    %p112 = scmp.eq.s32.totalorder %s27, 1
    %p113 = por %p111, %p112
    %p114 = scmp.ne.s32.totalorder %s105, %s106
    %p115 = scmp.eq.s32.totalorder %s27, 0
    %p116 = por %p114, %p115
    %p117 = scmp.ne.s32.totalorder %s105, %s106
    %p118 = scmp.eq.s32.totalorder %s28, 1
    %p119 = por %p117, %p118
    %p121 = scmp.ne.s32.totalorder %s106, %s120
    %p122 = scmp.eq.s32.totalorder %s28, 0
    %p123 = por %p121, %p122
    %s125 = sadd.s32 %s124, 1
    %p128 = scmp.eq.s32.totalorder %s22, 1
    %p129 = scmp.ne.s32.totalorder %s124, %s126
    %p130 = scmp.eq.s32.totalorder %s22, 0
    %p131 = por %p129, %p130
    %p132 = scmp.ne.s32.totalorder %s124, %s126
    %p133 = scmp.eq.s32.totalorder %s27, 1
    %p134 = por %p132, %p133
    %p135 = scmp.ne.s32.totalorder %s126, %s127
    %p136 = scmp.eq.s32.totalorder %s27, 0
    %p137 = por %p135, %p136
    %p138 = scmp.ne.s32.totalorder %s126, %s127
    %p139 = scmp.eq.s32.totalorder %s28, 1
    %p140 = por %p138, %p139
    %p142 = scmp.ne.s32.totalorder %s127, %s141
    %p143 = scmp.eq.s32.totalorder %s28, 0
    %p144 = por %p142, %p143
    %s146 = sadd.s32 %s145, 1
    %p149 = scmp.eq.s32.totalorder %s22, 1
    %p150 = scmp.ne.s32.totalorder %s145, %s147
    %p151 = scmp.eq.s32.totalorder %s22, 0
    %p152 = por %p150, %p151
    %p153 = scmp.ne.s32.totalorder %s145, %s147
    %p154 = scmp.eq.s32.totalorder %s27, 1
    %p155 = por %p153, %p154
    %p156 = scmp.ne.s32.totalorder %s147, %s148
    %p157 = scmp.eq.s32.totalorder %s27, 0
    %p158 = por %p156, %p157
    %p159 = scmp.ne.s32.totalorder %s147, %s148
    %p160 = scmp.eq.s32.totalorder %s28, 1
    %p161 = por %p159, %p160
    %p163 = scmp.ne.s32.totalorder %s148, %s162
    %p164 = scmp.eq.s32.totalorder %s28, 0
    %p165 = por %p163, %p164
    %s167 = sadd.s32 %s166, 1
    %p170 = scmp.eq.s32.totalorder %s22, 1
    %p171 = scmp.ne.s32.totalorder %s166, %s168
    %p172 = scmp.eq.s32.totalorder %s22, 0
    %p173 = por %p171, %p172
    %p174 = scmp.ne.s32.totalorder %s166, %s168
    %p175 = scmp.eq.s32.totalorder %s27, 1
    %p176 = por %p174, %p175
    %p177 = scmp.ne.s32.totalorder %s168, %s169
    %p178 = scmp.eq.s32.totalorder %s27, 0
    %p179 = por %p177, %p178
    %p180 = scmp.ne.s32.totalorder %s168, %s169
    %p181 = scmp.eq.s32.totalorder %s28, 1
    %p182 = por %p180, %p181
    %p184 = scmp.ne.s32.totalorder %s169, %s183
    %p185 = scmp.eq.s32.totalorder %s28, 0
    %p186 = por %p184, %p185
    %s188 = sadd.s32 %s187, 1
    %p191 = scmp.eq.s32.totalorder %s22, 1
    %p192 = scmp.ne.s32.totalorder %s187, %s189
    %p193 = scmp.eq.s32.totalorder %s22, 0
    %p194 = por %p192, %p193
    %p195 = scmp.ne.s32.totalorder %s187, %s189
    %p196 = scmp.eq.s32.totalorder %s27, 1
    %p197 = por %p195, %p196
    %p198 = scmp.ne.s32.totalorder %s189, %s190
    %p199 = scmp.eq.s32.totalorder %s27, 0
    %p200 = por %p198, %p199
    %p201 = scmp.ne.s32.totalorder %s189, %s190
    %p202 = scmp.eq.s32.totalorder %s28, 1
    %p203 = por %p201, %p202
    %p205 = scmp.ne.s32.totalorder %s190, %s204
    %p206 = scmp.eq.s32.totalorder %s28, 0
    %p207 = por %p205, %p206
    %s209 = sadd.s32 %s208, 1
    %p212 = scmp.eq.s32.totalorder %s22, 1
    %p213 = scmp.ne.s32.totalorder %s208, %s210
    %p214 = scmp.eq.s32.totalorder %s22, 0
    %p215 = por %p213, %p214
    %p216 = scmp.ne.s32.totalorder %s208, %s210
    %p217 = scmp.eq.s32.totalorder %s27, 1
    %p218 = por %p216, %p217
    %p219 = scmp.ne.s32.totalorder %s210, %s211
    %p220 = scmp.eq.s32.totalorder %s27, 0
    %p221 = por %p219, %p220
    %p222 = scmp.ne.s32.totalorder %s210, %s211
    %p223 = scmp.eq.s32.totalorder %s28, 1
    %p224 = por %p222, %p223
    %p226 = scmp.ne.s32.totalorder %s211, %s225
    %p227 = scmp.eq.s32.totalorder %s28, 0
    %p228 = por %p226, %p227
    %s230 = sadd.s32 %s229, 1
    %p233 = scmp.eq.s32.totalorder %s22, 1
    %p234 = scmp.ne.s32.totalorder %s229, %s231
    %p235 = scmp.eq.s32.totalorder %s22, 0
    %p236 = por %p234, %p235
    %p237 = scmp.ne.s32.totalorder %s229, %s231
    %p238 = scmp.eq.s32.totalorder %s27, 1
    %p239 = por %p237, %p238
    %p240 = scmp.ne.s32.totalorder %s231, %s232
    %p241 = scmp.eq.s32.totalorder %s27, 0
    %p242 = por %p240, %p241
    %p243 = scmp.ne.s32.totalorder %s231, %s232
    %p244 = scmp.eq.s32.totalorder %s28, 1
    %p245 = por %p243, %p244
    %p247 = scmp.ne.s32.totalorder %s232, %s246
    %p248 = scmp.eq.s32.totalorder %s28, 0
    %p249 = por %p247, %p248
    %s251 = sadd.s32 %s250, 1
    %p254 = scmp.eq.s32.totalorder %s22, 1
    %p255 = scmp.ne.s32.totalorder %s250, %s252
    %p256 = scmp.eq.s32.totalorder %s22, 0
    %p257 = por %p255, %p256
    %p258 = scmp.ne.s32.totalorder %s250, %s252
    %p259 = scmp.eq.s32.totalorder %s27, 1
    %p260 = por %p258, %p259
    %p261 = scmp.ne.s32.totalorder %s252, %s253
    %p262 = scmp.eq.s32.totalorder %s27, 0
    %p263 = por %p261, %p262
    %p264 = scmp.ne.s32.totalorder %s252, %s253
    %p265 = scmp.eq.s32.totalorder %s28, 1
    %p266 = por %p264, %p265
    %p268 = scmp.ne.s32.totalorder %s253, %s267
    %p269 = scmp.eq.s32.totalorder %s28, 0
    %p270 = por %p268, %p269
    %s272 = sadd.s32 %s271, 1
    %p275 = scmp.eq.s32.totalorder %s22, 1
    %p276 = scmp.ne.s32.totalorder %s271, %s273
    %p277 = scmp.eq.s32.totalorder %s22, 0
    %p278 = por %p276, %p277
    %p279 = scmp.ne.s32.totalorder %s271, %s273
    %p280 = scmp.eq.s32.totalorder %s27, 1
    %p281 = por %p279, %p280
    %p282 = scmp.ne.s32.totalorder %s273, %s274
    %p283 = scmp.eq.s32.totalorder %s27, 0
    %p284 = por %p282, %p283
    %p285 = scmp.ne.s32.totalorder %s273, %s274
    %p286 = scmp.eq.s32.totalorder %s28, 1
    %p287 = por %p285, %p286
    %p289 = scmp.ne.s32.totalorder %s274, %s288
    %p290 = scmp.eq.s32.totalorder %s28, 0
    %p291 = por %p289, %p290
    %s293 = sadd.s32 %s292, 1
    %p296 = scmp.eq.s32.totalorder %s22, 1
    %p297 = scmp.ne.s32.totalorder %s292, %s294
    %p298 = scmp.eq.s32.totalorder %s22, 0
    %p299 = por %p297, %p298
    %p300 = scmp.ne.s32.totalorder %s292, %s294
    %p301 = scmp.eq.s32.totalorder %s27, 1
    %p302 = por %p300, %p301
    %p303 = scmp.ne.s32.totalorder %s294, %s295
    %p304 = scmp.eq.s32.totalorder %s27, 0
    %p305 = por %p303, %p304
    %p306 = scmp.ne.s32.totalorder %s294, %s295
    %p307 = scmp.eq.s32.totalorder %s28, 1
    %p308 = por %p306, %p307
    %p310 = scmp.ne.s32.totalorder %s295, %s309
    %p311 = scmp.eq.s32.totalorder %s28, 0
    %p312 = por %p310, %p311
    %s314 = sadd.s32 %s313, 1
    %p317 = scmp.eq.s32.totalorder %s22, 1
    %p318 = scmp.ne.s32.totalorder %s313, %s315
    %p319 = scmp.eq.s32.totalorder %s22, 0
    %p320 = por %p318, %p319
    %p321 = scmp.ne.s32.totalorder %s313, %s315
    %p322 = scmp.eq.s32.totalorder %s27, 1
    %p323 = por %p321, %p322
    %p324 = scmp.ne.s32.totalorder %s315, %s316
    %p325 = scmp.eq.s32.totalorder %s27, 0
    %p326 = por %p324, %p325
    %p327 = scmp.ne.s32.totalorder %s315, %s316
    %p328 = scmp.eq.s32.totalorder %s28, 1
    %p329 = por %p327, %p328
    %p331 = scmp.ne.s32.totalorder %s316, %s330
    %p332 = scmp.eq.s32.totalorder %s28, 0
    %p333 = por %p331, %p332
    %s334 = ssub.s32 %s22, %s29
    %p335 = scmp.eq.s32.totalorder %s334, 0
    %s337 = sadd.s32 %s336, 1
    %s338 = scalar_select %p335, %s336, %s337
    %p341 = pneg %p335
    %p342 = scmp.eq.s32.totalorder %s22, 1
    %p343 = por %p341, %p342
    %p344 = scmp.ne.s32.totalorder %s336, %s339
    %p345 = scmp.eq.s32.totalorder %s22, 0
    %p346 = por %p344, %p345
    %p347 = scmp.ne.s32.totalorder %s336, %s339
    %p348 = scmp.eq.s32.totalorder %s27, 1
    %p349 = por %p347, %p348
    %p350 = scmp.ne.s32.totalorder %s339, %s340
    %p351 = scmp.eq.s32.totalorder %s27, 0
    %p352 = por %p350, %p351
    %p353 = scmp.ne.s32.totalorder %s339, %s340
    %p354 = scmp.eq.s32.totalorder %s28, 1
    %p355 = por %p353, %p354
    %p357 = scmp.ne.s32.totalorder %s340, %s356
    %p358 = scmp.eq.s32.totalorder %s28, 0
    %p359 = por %p357, %p358
    %s360 = ssub.s32 %s22, %s29
    %p361 = scmp.eq.s32.totalorder %s360, 0
    %s363 = sadd.s32 %s362, 1
    %s364 = scalar_select %p361, %s362, %s363
    %p367 = pneg %p361
    %p368 = scmp.eq.s32.totalorder %s22, 1
    %p369 = por %p367, %p368
    %p370 = scmp.ne.s32.totalorder %s362, %s365
    %p371 = scmp.eq.s32.totalorder %s22, 0
    %p372 = por %p370, %p371
    %p373 = scmp.ne.s32.totalorder %s362, %s365
    %p374 = scmp.eq.s32.totalorder %s27, 1
    %p375 = por %p373, %p374
    %p376 = scmp.ne.s32.totalorder %s365, %s366
    %p377 = scmp.eq.s32.totalorder %s27, 0
    %p378 = por %p376, %p377
    %p379 = scmp.ne.s32.totalorder %s365, %s366
    %p380 = scmp.eq.s32.totalorder %s28, 1
    %p381 = por %p379, %p380
    %p383 = scmp.ne.s32.totalorder %s366, %s382
    %p384 = scmp.eq.s32.totalorder %s28, 0
    %p385 = por %p383, %p384
    %p386 = scmp.le.s32.totalorder 1, %s22
    %p387 = scmp.lt.s32.totalorder %s22, 3
    %p388 = pnand %p386, %p387
    %p389 = pneg %p388
    // Predicated region
    $region9: #{vr_model_forward.1} parent=5 // pred_check
      _
    $region10: #{vr_model_forward.1} parent=5 // pred_check_branch
      %391 = sbr.rel (%p388) target = $region12
    $region11: #{vr_model_forward.1} parent=5 // pred_region
      %s392 = ssub.s32 %s22, 1
      // Predicated region
      $region13: #{vr_model_forward.1} parent=11 // pred_check
        %p393 = pneg %p95
      $region14: #{vr_model_forward.1} parent=11 // pred_check_branch
        %395 = sbr.rel (%p393) target = $region16
      $region15: #{vr_model_forward.1} parent=11 // pred_region
        _
      $region16: #{vr_model_forward.1} parent=11 // pred_fallthru
        _
      // Predicated region
      $region17: #{vr_model_forward.1} parent=11 // pred_check
        %p396 = pneg %p116
      $region18: #{vr_model_forward.1} parent=11 // pred_check_branch
        %398 = sbr.rel (%p396) target = $region20
      $region19: #{vr_model_forward.1} parent=11 // pred_region
        _
      $region20: #{vr_model_forward.1} parent=11 // pred_fallthru
        _
      // Predicated region
      $region21: #{vr_model_forward.1} parent=11 // pred_check
        %p399 = pneg %p137
      $region22: #{vr_model_forward.1} parent=11 // pred_check_branch
        %401 = sbr.rel (%p399) target = $region24
      $region23: #{vr_model_forward.1} parent=11 // pred_region
        _
      $region24: #{vr_model_forward.1} parent=11 // pred_fallthru
        _
      // Predicated region
      $region25: #{vr_model_forward.1} parent=11 // pred_check
        %p402 = pneg %p158
      $region26: #{vr_model_forward.1} parent=11 // pred_check_branch
        %404 = sbr.rel (%p402) target = $region28
      $region27: #{vr_model_forward.1} parent=11 // pred_region
        _
      $region28: #{vr_model_forward.1} parent=11 // pred_fallthru
        _
      // Predicated region
      $region29: #{vr_model_forward.1} parent=11 // pred_check
        %p405 = pneg %p179
      $region30: #{vr_model_forward.1} parent=11 // pred_check_branch
        %407 = sbr.rel (%p405) target = $region32
      $region31: #{vr_model_forward.1} parent=11 // pred_region
        _
      $region32: #{vr_model_forward.1} parent=11 // pred_fallthru
        _
      // Predicated region
      $region33: #{vr_model_forward.1} parent=11 // pred_check
        %p408 = pneg %p200
      $region34: #{vr_model_forward.1} parent=11 // pred_check_branch
        %410 = sbr.rel (%p408) target = $region36
      $region35: #{vr_model_forward.1} parent=11 // pred_region
        _
      $region36: #{vr_model_forward.1} parent=11 // pred_fallthru
        _
      // Predicated region
      $region37: #{vr_model_forward.1} parent=11 // pred_check
        %p411 = pneg %p221
      $region38: #{vr_model_forward.1} parent=11 // pred_check_branch
        %413 = sbr.rel (%p411) target = $region40
      $region39: #{vr_model_forward.1} parent=11 // pred_region
        _
      $region40: #{vr_model_forward.1} parent=11 // pred_fallthru
        _
      // Predicated region
      $region41: #{vr_model_forward.1} parent=11 // pred_check
        %p414 = pneg %p242
      $region42: #{vr_model_forward.1} parent=11 // pred_check_branch
        %416 = sbr.rel (%p414) target = $region44
      $region43: #{vr_model_forward.1} parent=11 // pred_region
        _
      $region44: #{vr_model_forward.1} parent=11 // pred_fallthru
        _
      // Predicated region
      $region45: #{vr_model_forward.1} parent=11 // pred_check
        %p417 = pneg %p263
      $region46: #{vr_model_forward.1} parent=11 // pred_check_branch
        %419 = sbr.rel (%p417) target = $region48
      $region47: #{vr_model_forward.1} parent=11 // pred_region
        _
      $region48: #{vr_model_forward.1} parent=11 // pred_fallthru
        _
      // Predicated region
      $region49: #{vr_model_forward.1} parent=11 // pred_check
        %p420 = pneg %p284
      $region50: #{vr_model_forward.1} parent=11 // pred_check_branch
        %422 = sbr.rel (%p420) target = $region52
      $region51: #{vr_model_forward.1} parent=11 // pred_region
        _
      $region52: #{vr_model_forward.1} parent=11 // pred_fallthru
        _
      // Predicated region
      $region53: #{vr_model_forward.1} parent=11 // pred_check
        %p423 = pneg %p305
      $region54: #{vr_model_forward.1} parent=11 // pred_check_branch
        %425 = sbr.rel (%p423) target = $region56
      $region55: #{vr_model_forward.1} parent=11 // pred_region
        _
      $region56: #{vr_model_forward.1} parent=11 // pred_fallthru
        _
      // Predicated region
      $region57: #{vr_model_forward.1} parent=11 // pred_check
        %p426 = pneg %p326
      $region58: #{vr_model_forward.1} parent=11 // pred_check_branch
        %428 = sbr.rel (%p426) target = $region60
      $region59: #{vr_model_forward.1} parent=11 // pred_region
        _
      $region60: #{vr_model_forward.1} parent=11 // pred_fallthru
        _
    $region12: #{vr_model_forward.1} parent=5 // pred_fallthru
      _
    %p429 = scmp.lt.s32.totalorder %s22, 2
    // Predicated region
    $region61: #{vr_model_forward.1} parent=5 // pred_check
      %p430 = pneg %p429
    $region62: #{vr_model_forward.1} parent=5 // pred_check_branch
      %432 = sbr.rel (%p430) target = $region64
    $region63: #{vr_model_forward.1} parent=5 // pred_region
      // Predicated region
      $region65: #{vr_model_forward.1} parent=63 // pred_check
        %p433 = pneg %p42
      $region66: #{vr_model_forward.1} parent=63 // pred_check_branch
        %435 = sbr.rel (%p433) target = $region68
      $region67: #{vr_model_forward.1} parent=63 // pred_region
        %s436 = smul.u32 16, %s22
        %p437 = scmp.lt.s32.totalorder %s436, 31
        %s438 = scalar_select %p437, %s436, 31
        %s439 = smul.addr %s438, 7
        %s440 = smul.addr %s439, 4
        %s441 = scalar_lea.vmem %s0, %s440
        %s442 = smul.u32 16, %s22
      $region68: #{vr_model_forward.1} parent=63 // pred_fallthru
        _
      // Predicated region
      $region69: #{vr_model_forward.1} parent=63 // pred_check
        %p443 = pneg %p68
      $region70: #{vr_model_forward.1} parent=63 // pred_check_branch
        %445 = sbr.rel (%p443) target = $region72
      $region71: #{vr_model_forward.1} parent=63 // pred_region
        %s446 = smul.u32 16, %s22
        %p447 = scmp.lt.s32.totalorder %s446, 31
        %s448 = scalar_select %p447, %s446, 31
        %s449 = smul.addr %s448, 8
        %s450 = scalar_lea.vmem %s1, %s449
        %s451 = smul.u32 16, %s22
      $region72: #{vr_model_forward.1} parent=63 // pred_fallthru
        _
    $region64: #{vr_model_forward.1} parent=5 // pred_fallthru
      _
    %p452 = scmp.le.s32.totalorder 1, %s22
    %p453 = scmp.lt.s32.totalorder %s22, 3
    %p454 = pnand %p452, %p453
    %p455 = pneg %p454
    // Predicated region
    $region73: #{vr_model_forward.1} parent=5 // pred_check
      _
    $region74: #{vr_model_forward.1} parent=5 // pred_check_branch
      %457 = sbr.rel (%p454) target = $region76
    $region75: #{vr_model_forward.1} parent=5 // pred_region
      %s458 = ssub.s32 %s22, 1
      %s459 = smul.u32 16, %s27
      %p460 = scmp.lt.s32.totalorder %s459, 31
      %s461 = scalar_select %p460, %s459, 31
      %s462 = smul.addr %s461, 7
      %s463 = smul.addr %s462, 4
      %s464 = scalar_lea.vmem %s0, %s463
      %p465 = pneg %p48
      %p466 = pneg %p45
      %s467 = smul.u32 16, %s27
      %p468 = scmp.lt.s32.totalorder %s467, 31
      %s469 = scalar_select %p468, %s467, 31
      %s470 = smul.addr %s469, 8
      %s471 = scalar_lea.vmem %s1, %s470
      %p472 = pneg %p74
      %p473 = pneg %p71
      %p474 = pneg %p95
      %p475 = pneg %p92
      %p476 = pneg %p116
      %p477 = pneg %p113
      %p478 = pneg %p137
      %p479 = pneg %p134
      %p480 = pneg %p158
      %p481 = pneg %p155
      %p482 = pneg %p179
      %p483 = pneg %p176
      %p484 = pneg %p200
      %p485 = pneg %p197
      %p486 = pneg %p221
      %p487 = pneg %p218
      %p488 = pneg %p242
      %p489 = pneg %p239
      %p490 = pneg %p263
      %p491 = pneg %p260
      %p492 = pneg %p284
      %p493 = pneg %p281
      %p494 = pneg %p305
      %p495 = pneg %p302
      %p496 = pneg %p326
      %p497 = pneg %p323
      %p498 = pneg %p352
      %p499 = pneg %p349
      %s500 = smul.u32 16, %s27
      %p501 = scmp.lt.s32.totalorder %s500, 31
      %s502 = scalar_select %p501, %s500, 31
      %s503 = smul.addr %s502, 7
      %s504 = smul.addr %s503, 4
      %s505 = scalar_lea.vmem %s14, %s504
      %p506 = pneg %p378
      %p507 = pneg %p375
      %s508 = smul.u32 16, %s27
      %p509 = scmp.lt.s32.totalorder %s508, 31
      %s510 = scalar_select %p509, %s508, 31
      %s511 = smul.addr %s510, 2
      %s512 = smul.addr %s511, 8
      %s513 = scalar_lea.vmem %s15, %s512
      %s514 = smul.u32 16, %s27
      %p515 = scmp.lt.s32.totalorder %s514, 31
      %s516 = scalar_select %p515, %s514, 31
      %s517 = smul.addr %s516, 7
      %s518 = smul.addr %s517, 4
      %s519 = scalar_lea.vmem %s0, %s518
      %s520 = smul.u32 16, %s27
      %s521 = smul.u32 16, %s27
      %p522 = scmp.lt.s32.totalorder %s521, 31
      %s523 = scalar_select %p522, %s521, 31
      %s524 = smul.addr %s523, 8
      %s525 = scalar_lea.vmem %s1, %s524
      %s526 = smul.u32 16, %s27
      %s527 = smul.u32 16, %s27
      %p528 = scmp.lt.s32.totalorder %s527, 31
      %s529 = scalar_select %p528, %s527, 31
      %s530 = smul.addr %s529, 7
      %s531 = smul.addr %s530, 4
      %s532 = scalar_lea.vmem %s14, %s531
      %s533 = smul.u32 16, %s27
      %s534 = smul.u32 16, %s27
      %p535 = scmp.lt.s32.totalorder %s534, 31
      %s536 = scalar_select %p535, %s534, 31
      %s537 = smul.addr %s536, 2
      %s538 = smul.addr %s537, 8
      %s539 = scalar_lea.vmem %s15, %s538
      %s540 = smul.u32 16, %s27
      %v542 = vld [vmem:[%s519] sm:$0xff]
      %v543 = vld [vmem:[%s519 + $0x8] sm:$0xff]
      %v544 = vld [vmem:[%s519 + $0x10] sm:$0xff]
      %v545 = vld [vmem:[%s519 + $0x18] sm:$0xf]
      %v546 = vld [vmem:[%s519 + $0x1c] sm:$0xff]
      %v547 = vld [vmem:[%s519 + $0x24] sm:$0xff]
      %v548 = vld [vmem:[%s519 + $0x2c] sm:$0xff]
      %v549 = vld [vmem:[%s519 + $0x34] sm:$0xf]
      %v550 = vld [vmem:[%s519 + $0x38] sm:$0xff]
      %v551 = vld [vmem:[%s519 + $0x40] sm:$0xff]
      %v552 = vld [vmem:[%s519 + $0x48] sm:$0xff]
      %v553 = vld [vmem:[%s519 + $0x50] sm:$0xf]
      %v554 = vld [vmem:[%s519 + $0x54] sm:$0xff]
      %v555 = vld [vmem:[%s519 + $0x5c] sm:$0xff]
      %v556 = vld [vmem:[%s519 + $0x64] sm:$0xff]
      %v557 = vld [vmem:[%s519 + $0x6c] sm:$0xf]
      %v558 = vld [vmem:[%s519 + $0x70] sm:$0xff]
      %v559 = vld [vmem:[%s519 + $0x78] sm:$0xff]
      %v560 = vld [vmem:[%s519 + $0x80] sm:$0xff]
      %v561 = vld [vmem:[%s519 + $0x88] sm:$0xf]
      %v562 = vld [vmem:[%s519 + $0x8c] sm:$0xff]
      %v563 = vld [vmem:[%s519 + $0x94] sm:$0xff]
      %v564 = vld [vmem:[%s519 + $0x9c] sm:$0xff]
      %v565 = vld [vmem:[%s519 + $0xa4] sm:$0xf]
      %v566 = vld [vmem:[%s519 + $0xa8] sm:$0xff]
      %v567 = vld [vmem:[%s519 + $0xb0] sm:$0xff]
      %v568 = vld [vmem:[%s519 + $0xb8] sm:$0xff]
      %v569 = vld [vmem:[%s519 + $0xc0] sm:$0xf]
      %v570 = vld [vmem:[%s519 + $0xc4] sm:$0xff]
      %v571 = vld [vmem:[%s519 + $0xcc] sm:$0xff]
      %v572 = vld [vmem:[%s519 + $0xd4] sm:$0xff]
      %v573 = vld [vmem:[%s519 + $0xdc] sm:$0xf]
      %v574 = vld [vmem:[%s519 + $0xe0] sm:$0xff]
      %v575 = vld [vmem:[%s519 + $0xe8] sm:$0xff]
      %v576 = vld [vmem:[%s519 + $0xf0] sm:$0xff]
      %v577 = vld [vmem:[%s519 + $0xf8] sm:$0xf]
      %v578 = vld [vmem:[%s519 + $0xfc] sm:$0xff]
      %v579 = vld [vmem:[%s519 + $0x104] sm:$0xff]
      %v580 = vld [vmem:[%s519 + $0x10c] sm:$0xff]
      %v581 = vld [vmem:[%s519 + $0x114] sm:$0xf]
      %v582 = vld [vmem:[%s519 + $0x118] sm:$0xff]
      %v583 = vld [vmem:[%s519 + $0x120] sm:$0xff]
      %v584 = vld [vmem:[%s519 + $0x128] sm:$0xff]
      %v585 = vld [vmem:[%s519 + $0x130] sm:$0xf]
      %v586 = vld [vmem:[%s519 + $0x134] sm:$0xff]
      %v587 = vld [vmem:[%s519 + $0x13c] sm:$0xff]
      %v588 = vld [vmem:[%s519 + $0x144] sm:$0xff]
      %v589 = vld [vmem:[%s519 + $0x14c] sm:$0xf]
      %v590 = vld [vmem:[%s519 + $0x150] sm:$0xff]
      %v591 = vld [vmem:[%s519 + $0x158] sm:$0xff]
      %v592 = vld [vmem:[%s519 + $0x160] sm:$0xff]
      %v593 = vld [vmem:[%s519 + $0x168] sm:$0xf]
      %v594 = vld [vmem:[%s519 + $0x16c] sm:$0xff]
      %v595 = vld [vmem:[%s519 + $0x174] sm:$0xff]
      %v596 = vld [vmem:[%s519 + $0x17c] sm:$0xff]
      %v597 = vld [vmem:[%s519 + $0x184] sm:$0xf]
      %v598 = vld [vmem:[%s519 + $0x188] sm:$0xff]
      %v599 = vld [vmem:[%s519 + $0x190] sm:$0xff]
      %v600 = vld [vmem:[%s519 + $0x198] sm:$0xff]
      %v601 = vld [vmem:[%s519 + $0x1a0] sm:$0xf]
      %v602 = vld [vmem:[%s519 + $0x1a4] sm:$0xff]
      %v603 = vld [vmem:[%s519 + $0x1ac] sm:$0xff]
      %v604 = vld [vmem:[%s519 + $0x1b4] sm:$0xff]
      %v605 = vld [vmem:[%s519 + $0x1bc] sm:$0xf]
      %v606 = vld [vmem:[%s525] sm:$0xff]
      %v607 = vld [vmem:[%s525 + $0x8] sm:$0xff]
      %v608 = vld [vmem:[%s525 + $0x10] sm:$0xff]
      %v609 = vld [vmem:[%s525 + $0x18] sm:$0xff]
      %v610 = vld [vmem:[%s525 + $0x20] sm:$0xff]
      %v611 = vld [vmem:[%s525 + $0x28] sm:$0xff]
      %v612 = vld [vmem:[%s525 + $0x30] sm:$0xff]
      %v613 = vld [vmem:[%s525 + $0x38] sm:$0xff]
      %v614 = vld [vmem:[%s525 + $0x40] sm:$0xff]
      %v615 = vld [vmem:[%s525 + $0x48] sm:$0xff]
      %v616 = vld [vmem:[%s525 + $0x50] sm:$0xff]
      %v617 = vld [vmem:[%s525 + $0x58] sm:$0xff]
      %v618 = vld [vmem:[%s525 + $0x60] sm:$0xff]
      %v619 = vld [vmem:[%s525 + $0x68] sm:$0xff]
      %v620 = vld [vmem:[%s525 + $0x70] sm:$0xff]
      %v621 = vld [vmem:[%s525 + $0x78] sm:$0xff]
      %v622 = vld [vmem:[%s2] sm:$0xff]
      %v623 = vld [vmem:[%s2 + $0x8] sm:$0xff]
      %v624 = vld [vmem:[%s2 + $0x10] sm:$0xff]
      %v625 = vld [vmem:[%s2 + $0x18] sm:$0xff]
      %v626 = vld [vmem:[%s2 + $0x20] sm:$0xff]
      %v627 = vld [vmem:[%s2 + $0x28] sm:$0xff]
      %v628 = vld [vmem:[%s2 + $0x30] sm:$0xff]
      %v629 = vld [vmem:[%s2 + $0x38] sm:$0xff]
      %v630 = vld [vmem:[%s2 + $0x40] sm:$0xff]
      %v631 = vld [vmem:[%s2 + $0x48] sm:$0xff]
      %v632 = vld [vmem:[%s2 + $0x50] sm:$0xff]
      %v633 = vld [vmem:[%s2 + $0x58] sm:$0xff]
      %v634 = vld [vmem:[%s2 + $0x60] sm:$0xff]
      %v635 = vld [vmem:[%s2 + $0x68] sm:$0xff]
      %v636 = vld [vmem:[%s2 + $0x70] sm:$0xff]
      %v637 = vld [vmem:[%s2 + $0x78] sm:$0xff]
      %v638 = vld [vmem:[%s2 + $0x80] sm:$0xff]
      %v639 = vld [vmem:[%s2 + $0x88] sm:$0xff]
      %v640 = vld [vmem:[%s2 + $0x90] sm:$0xff]
      %v641 = vld [vmem:[%s2 + $0x98] sm:$0xff]
      %v642 = vld [vmem:[%s2 + $0xa0] sm:$0xff]
      %v643 = vld [vmem:[%s2 + $0xa8] sm:$0xff]
      %v644 = vld [vmem:[%s2 + $0xb0] sm:$0xff]
      %v645 = vld [vmem:[%s2 + $0xb8] sm:$0xff]
      %v646 = vld [vmem:[%s2 + $0xc0] sm:$0xff]
      %v647 = vld [vmem:[%s2 + $0xc8] sm:$0xff]
      %v648 = vld [vmem:[%s2 + $0xd0] sm:$0xff]
      %v649 = vld [vmem:[%s2 + $0xd8] sm:$0xff]
      %v650 = vld [vmem:[%s2 + $0xe0] sm:$0xff]
      %v651 = vld [vmem:[%s2 + $0xe8] sm:$0xff]
      %v652 = vld [vmem:[%s2 + $0xf0] sm:$0xff]
      %v653 = vld [vmem:[%s2 + $0xf8] sm:$0xff]
      %v654 = vld [vmem:[%s2 + $0x100] sm:$0xff]
      %v655 = vld [vmem:[%s2 + $0x108] sm:$0xff]
      %v656 = vld [vmem:[%s2 + $0x110] sm:$0xff]
      %v657 = vld [vmem:[%s2 + $0x118] sm:$0xff]
      %v658 = vld [vmem:[%s2 + $0x120] sm:$0xff]
      %v659 = vld [vmem:[%s2 + $0x128] sm:$0xff]
      %v660 = vld [vmem:[%s2 + $0x130] sm:$0xff]
      %v661 = vld [vmem:[%s2 + $0x138] sm:$0xff]
      %v662 = vld [vmem:[%s2 + $0x140] sm:$0xff]
      %v663 = vld [vmem:[%s2 + $0x148] sm:$0xff]
      %v664 = vld [vmem:[%s2 + $0x150] sm:$0xff]
      %v665 = vld [vmem:[%s2 + $0x158] sm:$0xff]
      %v666 = vld [vmem:[%s2 + $0x160] sm:$0xff]
      %v667 = vld [vmem:[%s2 + $0x168] sm:$0xff]
      %v668 = vld [vmem:[%s2 + $0x170] sm:$0xff]
      %v669 = vld [vmem:[%s2 + $0x178] sm:$0xff]
      %v670 = vld [vmem:[%s2 + $0x180] sm:$0xff]
      %v671 = vld [vmem:[%s2 + $0x188] sm:$0xff]
      %v672 = vld [vmem:[%s2 + $0x190] sm:$0xff]
      %v673 = vld [vmem:[%s2 + $0x198] sm:$0xff]
      %v674 = vld [vmem:[%s2 + $0x1a0] sm:$0xff]
      %v675 = vld [vmem:[%s2 + $0x1a8] sm:$0xff]
      %v676 = vld [vmem:[%s2 + $0x1b0] sm:$0xff]
      %v677 = vld [vmem:[%s2 + $0x1b8] sm:$0xff]
      %v678 = vld [vmem:[%s2 + $0x1c0] sm:$0xff]
      %v679 = vld [vmem:[%s2 + $0x1c8] sm:$0xff]
      %v680 = vld [vmem:[%s2 + $0x1d0] sm:$0xff]
      %v681 = vld [vmem:[%s2 + $0x1d8] sm:$0xff]
      %v682 = vld [vmem:[%s2 + $0x1e0] sm:$0xff]
      %v683 = vld [vmem:[%s2 + $0x1e8] sm:$0xff]
      %v684 = vld [vmem:[%s2 + $0x1f0] sm:$0xff]
      %v685 = vld [vmem:[%s2 + $0x1f8] sm:$0xff]
      %v686 = vld [vmem:[%s2 + $0x200] sm:$0xff]
      %v687 = vld [vmem:[%s2 + $0x208] sm:$0xff]
      %v688 = vld [vmem:[%s2 + $0x210] sm:$0xff]
      %v689 = vld [vmem:[%s2 + $0x218] sm:$0xff]
      %v690 = vld [vmem:[%s2 + $0x220] sm:$0xff]
      %v691 = vld [vmem:[%s2 + $0x228] sm:$0xff]
      %v692 = vld [vmem:[%s2 + $0x230] sm:$0xff]
      %v693 = vld [vmem:[%s2 + $0x238] sm:$0xff]
      %v694 = vld [vmem:[%s2 + $0x240] sm:$0xff]
      %v695 = vld [vmem:[%s2 + $0x248] sm:$0xff]
      %v696 = vld [vmem:[%s2 + $0x250] sm:$0xff]
      %v697 = vld [vmem:[%s2 + $0x258] sm:$0xff]
      %v698 = vld [vmem:[%s2 + $0x260] sm:$0xff]
      %v699 = vld [vmem:[%s2 + $0x268] sm:$0xff]
      %v700 = vld [vmem:[%s2 + $0x270] sm:$0xff]
      %v701 = vld [vmem:[%s2 + $0x278] sm:$0xff]
      %v702 = vld [vmem:[%s2 + $0x280] sm:$0xff]
      %v703 = vld [vmem:[%s2 + $0x288] sm:$0xff]
      %v704 = vld [vmem:[%s2 + $0x290] sm:$0xff]
      %v705 = vld [vmem:[%s2 + $0x298] sm:$0xff]
      %v706 = vld [vmem:[%s2 + $0x2a0] sm:$0xff]
      %v707 = vld [vmem:[%s2 + $0x2a8] sm:$0xff]
      %v708 = vld [vmem:[%s2 + $0x2b0] sm:$0xff]
      %v709 = vld [vmem:[%s2 + $0x2b8] sm:$0xff]
      %v710 = vld [vmem:[%s2 + $0x2c0] sm:$0xff]
      %v711 = vld [vmem:[%s2 + $0x2c8] sm:$0xff]
      %v712 = vld [vmem:[%s2 + $0x2d0] sm:$0xff]
      %v713 = vld [vmem:[%s2 + $0x2d8] sm:$0xff]
      %v714 = vld [vmem:[%s2 + $0x2e0] sm:$0xff]
      %v715 = vld [vmem:[%s2 + $0x2e8] sm:$0xff]
      %v716 = vld [vmem:[%s2 + $0x2f0] sm:$0xff]
      %v717 = vld [vmem:[%s2 + $0x2f8] sm:$0xff]
      %v718 = vld [vmem:[%s2 + $0x300] sm:$0xff]
      %v719 = vld [vmem:[%s2 + $0x308] sm:$0xff]
      %v720 = vld [vmem:[%s3] sm:$0x3]
      %v722 = vlaneseq
      %v723 = vshrl.u32 %v722, 7
      %v724 = vsub.s32 0, %v723
      %v725 = vrot.slane %v720, %v724
      %v726 = vlaneseq
      %v727 = vshrl.u32 %v726, 7
      %v728 = vsub.s32 1, %v727
      %v729 = vrot.slane %v720, %v728
      %v796 = vunpack.c.l.b16 %v542
      %v797 = vunpack.c.h.b16 %v542
      %v798 = vunpack.c.l.b16 %v543
      %v799 = vunpack.c.h.b16 %v543
      %v800 = vunpack.c.l.b16 %v544
      %v801 = vunpack.c.h.b16 %v544
      %v802 = vunpack.c.l.b16 %v545
      %v803 = vunpack.c.l.b16 %v546
      %v804 = vunpack.c.h.b16 %v546
      %v805 = vunpack.c.l.b16 %v547
      %v806 = vunpack.c.h.b16 %v547
      %v807 = vunpack.c.l.b16 %v548
      %v808 = vunpack.c.h.b16 %v548
      %v809 = vunpack.c.l.b16 %v549
      %v810 = vunpack.c.l.b16 %v550
      %v811 = vunpack.c.h.b16 %v550
      %v812 = vunpack.c.l.b16 %v551
      %v813 = vunpack.c.h.b16 %v551
      %v814 = vunpack.c.l.b16 %v552
      %v815 = vunpack.c.h.b16 %v552
      %v816 = vunpack.c.l.b16 %v553
      %v817 = vunpack.c.l.b16 %v554
      %v818 = vunpack.c.h.b16 %v554
      %v819 = vunpack.c.l.b16 %v555
      %v820 = vunpack.c.h.b16 %v555
      %v821 = vunpack.c.l.b16 %v556
      %v822 = vunpack.c.h.b16 %v556
      %v823 = vunpack.c.l.b16 %v557
      %v824 = vunpack.c.l.b16 %v558
      %v825 = vunpack.c.h.b16 %v558
      %v826 = vunpack.c.l.b16 %v559
      %v827 = vunpack.c.h.b16 %v559
      %v828 = vunpack.c.l.b16 %v560
      %v829 = vunpack.c.h.b16 %v560
      %v830 = vunpack.c.l.b16 %v561
      %v831 = vunpack.c.l.b16 %v562
      %v832 = vunpack.c.h.b16 %v562
      %v833 = vunpack.c.l.b16 %v563
      %v834 = vunpack.c.h.b16 %v563
      %v835 = vunpack.c.l.b16 %v564
      %v836 = vunpack.c.h.b16 %v564
      %v837 = vunpack.c.l.b16 %v565
      %v838 = vunpack.c.l.b16 %v566
      %v839 = vunpack.c.h.b16 %v566
      %v840 = vunpack.c.l.b16 %v567
      %v841 = vunpack.c.h.b16 %v567
      %v842 = vunpack.c.l.b16 %v568
      %v843 = vunpack.c.h.b16 %v568
      %v844 = vunpack.c.l.b16 %v569
      %v845 = vunpack.c.l.b16 %v570
      %v846 = vunpack.c.h.b16 %v570
      %v847 = vunpack.c.l.b16 %v571
      %v848 = vunpack.c.h.b16 %v571
      %v849 = vunpack.c.l.b16 %v572
      %v850 = vunpack.c.h.b16 %v572
      %v851 = vunpack.c.l.b16 %v573
      %v852 = vunpack.c.l.b16 %v574
      %v853 = vunpack.c.h.b16 %v574
      %v854 = vunpack.c.l.b16 %v575
      %v855 = vunpack.c.h.b16 %v575
      %v856 = vunpack.c.l.b16 %v576
      %v857 = vunpack.c.h.b16 %v576
      %v858 = vunpack.c.l.b16 %v577
      %v859 = vunpack.c.l.b16 %v578
      %v860 = vunpack.c.h.b16 %v578
      %v861 = vunpack.c.l.b16 %v579
      %v862 = vunpack.c.h.b16 %v579
      %v863 = vunpack.c.l.b16 %v580
      %v864 = vunpack.c.h.b16 %v580
      %v865 = vunpack.c.l.b16 %v581
      %v866 = vunpack.c.l.b16 %v582
      %v867 = vunpack.c.h.b16 %v582
      %v868 = vunpack.c.l.b16 %v583
      %v869 = vunpack.c.h.b16 %v583
      %v870 = vunpack.c.l.b16 %v584
      %v871 = vunpack.c.h.b16 %v584
      %v872 = vunpack.c.l.b16 %v585
      %v873 = vunpack.c.l.b16 %v586
      %v874 = vunpack.c.h.b16 %v586
      %v875 = vunpack.c.l.b16 %v587
      %v876 = vunpack.c.h.b16 %v587
      %v877 = vunpack.c.l.b16 %v588
      %v878 = vunpack.c.h.b16 %v588
      %v879 = vunpack.c.l.b16 %v589
      %v880 = vunpack.c.l.b16 %v590
      %v881 = vunpack.c.h.b16 %v590
      %v882 = vunpack.c.l.b16 %v591
      %v883 = vunpack.c.h.b16 %v591
      %v884 = vunpack.c.l.b16 %v592
      %v885 = vunpack.c.h.b16 %v592
      %v886 = vunpack.c.l.b16 %v593
      %v887 = vunpack.c.l.b16 %v594
      %v888 = vunpack.c.h.b16 %v594
      %v889 = vunpack.c.l.b16 %v595
      %v890 = vunpack.c.h.b16 %v595
      %v891 = vunpack.c.l.b16 %v596
      %v892 = vunpack.c.h.b16 %v596
      %v893 = vunpack.c.l.b16 %v597
      %v894 = vunpack.c.l.b16 %v598
      %v895 = vunpack.c.h.b16 %v598
      %v896 = vunpack.c.l.b16 %v599
      %v897 = vunpack.c.h.b16 %v599
      %v898 = vunpack.c.l.b16 %v600
      %v899 = vunpack.c.h.b16 %v600
      %v900 = vunpack.c.l.b16 %v601
      %v901 = vunpack.c.l.b16 %v602
      %v902 = vunpack.c.h.b16 %v602
      %v903 = vunpack.c.l.b16 %v603
      %v904 = vunpack.c.h.b16 %v603
      %v905 = vunpack.c.l.b16 %v604
      %v906 = vunpack.c.h.b16 %v604
      %v907 = vunpack.c.l.b16 %v605
      %v908 = vpack.c.b16 %v803, %v796
      %v909 = vpack.c.b16 %v804, %v797
      %v910 = vpack.c.b16 %v805, %v798
      %v911 = vpack.c.b16 %v806, %v799
      %v912 = vpack.c.b16 %v807, %v800
      %v913 = vpack.c.b16 %v808, %v801
      %v914 = vpack.c.b16 %v809, %v802
      %v915 = vpack.c.b16 %v817, %v810
      %v916 = vpack.c.b16 %v818, %v811
      %v917 = vpack.c.b16 %v819, %v812
      %v918 = vpack.c.b16 %v820, %v813
      %v919 = vpack.c.b16 %v821, %v814
      %v920 = vpack.c.b16 %v822, %v815
      %v921 = vpack.c.b16 %v823, %v816
      %v922 = vpack.c.b16 %v831, %v824
      %v923 = vpack.c.b16 %v832, %v825
      %v924 = vpack.c.b16 %v833, %v826
      %v925 = vpack.c.b16 %v834, %v827
      %v926 = vpack.c.b16 %v835, %v828
      %v927 = vpack.c.b16 %v836, %v829
      %v928 = vpack.c.b16 %v837, %v830
      %v929 = vpack.c.b16 %v845, %v838
      %v930 = vpack.c.b16 %v846, %v839
      %v931 = vpack.c.b16 %v847, %v840
      %v932 = vpack.c.b16 %v848, %v841
      %v933 = vpack.c.b16 %v849, %v842
      %v934 = vpack.c.b16 %v850, %v843
      %v935 = vpack.c.b16 %v851, %v844
      %v936 = vpack.c.b16 %v859, %v852
      %v937 = vpack.c.b16 %v860, %v853
      %v938 = vpack.c.b16 %v861, %v854
      %v939 = vpack.c.b16 %v862, %v855
      %v940 = vpack.c.b16 %v863, %v856
      %v941 = vpack.c.b16 %v864, %v857
      %v942 = vpack.c.b16 %v865, %v858
      %v943 = vpack.c.b16 %v873, %v866
      %v944 = vpack.c.b16 %v874, %v867
      %v945 = vpack.c.b16 %v875, %v868
      %v946 = vpack.c.b16 %v876, %v869
      %v947 = vpack.c.b16 %v877, %v870
      %v948 = vpack.c.b16 %v878, %v871
      %v949 = vpack.c.b16 %v879, %v872
      %v950 = vpack.c.b16 %v887, %v880
      %v951 = vpack.c.b16 %v888, %v881
      %v952 = vpack.c.b16 %v889, %v882
      %v953 = vpack.c.b16 %v890, %v883
      %v954 = vpack.c.b16 %v891, %v884
      %v955 = vpack.c.b16 %v892, %v885
      %v956 = vpack.c.b16 %v893, %v886
      %v957 = vpack.c.b16 %v901, %v894
      %v958 = vpack.c.b16 %v902, %v895
      %v959 = vpack.c.b16 %v903, %v896
      %v960 = vpack.c.b16 %v904, %v897
      %v961 = vpack.c.b16 %v905, %v898
      %v962 = vpack.c.b16 %v906, %v899
      %v963 = vpack.c.b16 %v907, %v900
      %v1110 = vunpack.c.l.b16 %v622
      %v1111 = vunpack.c.h.b16 %v622
      %v1112 = vunpack.c.l.b16 %v623
      %v1113 = vunpack.c.h.b16 %v623
      %v1114 = vunpack.c.l.b16 %v624
      %v1115 = vunpack.c.h.b16 %v624
      %v1116 = vunpack.c.l.b16 %v625
      %v1117 = vunpack.c.h.b16 %v625
      %v1118 = vunpack.c.l.b16 %v626
      %v1119 = vunpack.c.h.b16 %v626
      %v1120 = vunpack.c.l.b16 %v627
      %v1121 = vunpack.c.h.b16 %v627
      %v1122 = vunpack.c.l.b16 %v628
      %v1123 = vunpack.c.h.b16 %v628
      %v1124 = vunpack.c.l.b16 %v629
      %v1125 = vunpack.c.h.b16 %v629
      %v1126 = vunpack.c.l.b16 %v630
      %v1127 = vunpack.c.h.b16 %v630
      %v1128 = vunpack.c.l.b16 %v631
      %v1129 = vunpack.c.h.b16 %v631
      %v1130 = vunpack.c.l.b16 %v632
      %v1131 = vunpack.c.h.b16 %v632
      %v1132 = vunpack.c.l.b16 %v633
      %v1133 = vunpack.c.h.b16 %v633
      %v1134 = vunpack.c.l.b16 %v634
      %v1135 = vunpack.c.h.b16 %v634
      %v1136 = vunpack.c.l.b16 %v635
      %v1137 = vunpack.c.h.b16 %v635
      %v1138 = vunpack.c.l.b16 %v636
      %v1139 = vunpack.c.h.b16 %v636
      %v1140 = vunpack.c.l.b16 %v637
      %v1141 = vunpack.c.h.b16 %v637
      %v1142 = vunpack.c.l.b16 %v638
      %v1143 = vunpack.c.h.b16 %v638
      %v1144 = vunpack.c.l.b16 %v639
      %v1145 = vunpack.c.h.b16 %v639
      %v1146 = vunpack.c.l.b16 %v640
      %v1147 = vunpack.c.h.b16 %v640
      %v1148 = vunpack.c.l.b16 %v641
      %v1149 = vunpack.c.h.b16 %v641
      %v1150 = vunpack.c.l.b16 %v642
      %v1151 = vunpack.c.h.b16 %v642
      %v1152 = vunpack.c.l.b16 %v643
      %v1153 = vunpack.c.h.b16 %v643
      %v1154 = vunpack.c.l.b16 %v644
      %v1155 = vunpack.c.h.b16 %v644
      %v1156 = vunpack.c.l.b16 %v645
      %v1157 = vunpack.c.h.b16 %v645
      %v1158 = vunpack.c.l.b16 %v646
      %v1159 = vunpack.c.h.b16 %v646
      %v1160 = vunpack.c.l.b16 %v647
      %v1161 = vunpack.c.h.b16 %v647
      %v1162 = vunpack.c.l.b16 %v648
      %v1163 = vunpack.c.h.b16 %v648
      %v1164 = vunpack.c.l.b16 %v649
      %v1165 = vunpack.c.h.b16 %v649
      %v1166 = vunpack.c.l.b16 %v650
      %v1167 = vunpack.c.h.b16 %v650
      %v1168 = vunpack.c.l.b16 %v651
      %v1169 = vunpack.c.h.b16 %v651
      %v1170 = vunpack.c.l.b16 %v652
      %v1171 = vunpack.c.h.b16 %v652
      %v1172 = vunpack.c.l.b16 %v653
      %v1173 = vunpack.c.h.b16 %v653
      %v1174 = vunpack.c.l.b16 %v654
      %v1175 = vunpack.c.h.b16 %v654
      %v1176 = vunpack.c.l.b16 %v655
      %v1177 = vunpack.c.h.b16 %v655
      %v1178 = vunpack.c.l.b16 %v656
      %v1179 = vunpack.c.h.b16 %v656
      %v1180 = vunpack.c.l.b16 %v657
      %v1181 = vunpack.c.h.b16 %v657
      %v1182 = vunpack.c.l.b16 %v658
      %v1183 = vunpack.c.h.b16 %v658
      %v1184 = vunpack.c.l.b16 %v659
      %v1185 = vunpack.c.h.b16 %v659
      %v1186 = vunpack.c.l.b16 %v660
      %v1187 = vunpack.c.h.b16 %v660
      %v1188 = vunpack.c.l.b16 %v661
      %v1189 = vunpack.c.h.b16 %v661
      %v1190 = vunpack.c.l.b16 %v662
      %v1191 = vunpack.c.h.b16 %v662
      %v1192 = vunpack.c.l.b16 %v663
      %v1193 = vunpack.c.h.b16 %v663
      %v1194 = vunpack.c.l.b16 %v664
      %v1195 = vunpack.c.h.b16 %v664
      %v1196 = vunpack.c.l.b16 %v665
      %v1197 = vunpack.c.h.b16 %v665
      %v1198 = vunpack.c.l.b16 %v666
      %v1199 = vunpack.c.h.b16 %v666
      %v1200 = vunpack.c.l.b16 %v667
      %v1201 = vunpack.c.h.b16 %v667
      %v1202 = vunpack.c.l.b16 %v668
      %v1203 = vunpack.c.h.b16 %v668
      %v1204 = vunpack.c.l.b16 %v669
      %v1205 = vunpack.c.h.b16 %v669
      %v1206 = vunpack.c.l.b16 %v670
      %v1207 = vunpack.c.h.b16 %v670
      %v1208 = vunpack.c.l.b16 %v671
      %v1209 = vunpack.c.h.b16 %v671
      %v1210 = vunpack.c.l.b16 %v672
      %v1211 = vunpack.c.h.b16 %v672
      %v1212 = vunpack.c.l.b16 %v673
      %v1213 = vunpack.c.h.b16 %v673
      %v1214 = vunpack.c.l.b16 %v674
      %v1215 = vunpack.c.h.b16 %v674
      %v1216 = vunpack.c.l.b16 %v675
      %v1217 = vunpack.c.h.b16 %v675
      %v1218 = vunpack.c.l.b16 %v676
      %v1219 = vunpack.c.h.b16 %v676
      %v1220 = vunpack.c.l.b16 %v677
      %v1221 = vunpack.c.h.b16 %v677
      %v1222 = vunpack.c.l.b16 %v678
      %v1223 = vunpack.c.h.b16 %v678
      %v1224 = vunpack.c.l.b16 %v679
      %v1225 = vunpack.c.h.b16 %v679
      %v1226 = vunpack.c.l.b16 %v680
      %v1227 = vunpack.c.h.b16 %v680
      %v1228 = vunpack.c.l.b16 %v681
      %v1229 = vunpack.c.h.b16 %v681
      %v1230 = vunpack.c.l.b16 %v682
      %v1231 = vunpack.c.h.b16 %v682
      %v1232 = vunpack.c.l.b16 %v683
      %v1233 = vunpack.c.h.b16 %v683
      %v1234 = vunpack.c.l.b16 %v684
      %v1235 = vunpack.c.h.b16 %v684
      %v1236 = vunpack.c.l.b16 %v685
      %v1237 = vunpack.c.h.b16 %v685
      %v1238 = vunpack.c.l.b16 %v686
      %v1239 = vunpack.c.h.b16 %v686
      %v1240 = vunpack.c.l.b16 %v687
      %v1241 = vunpack.c.h.b16 %v687
      %v1242 = vunpack.c.l.b16 %v688
      %v1243 = vunpack.c.h.b16 %v688
      %v1244 = vunpack.c.l.b16 %v689
      %v1245 = vunpack.c.h.b16 %v689
      %v1246 = vunpack.c.l.b16 %v690
      %v1247 = vunpack.c.h.b16 %v690
      %v1248 = vunpack.c.l.b16 %v691
      %v1249 = vunpack.c.h.b16 %v691
      %v1250 = vunpack.c.l.b16 %v692
      %v1251 = vunpack.c.h.b16 %v692
      %v1252 = vunpack.c.l.b16 %v693
      %v1253 = vunpack.c.h.b16 %v693
      %v1254 = vunpack.c.l.b16 %v694
      %v1255 = vunpack.c.h.b16 %v694
      %v1256 = vunpack.c.l.b16 %v695
      %v1257 = vunpack.c.h.b16 %v695
      %v1258 = vunpack.c.l.b16 %v696
      %v1259 = vunpack.c.h.b16 %v696
      %v1260 = vunpack.c.l.b16 %v697
      %v1261 = vunpack.c.h.b16 %v697
      %v1262 = vunpack.c.l.b16 %v698
      %v1263 = vunpack.c.h.b16 %v698
      %v1264 = vunpack.c.l.b16 %v699
      %v1265 = vunpack.c.h.b16 %v699
      %v1266 = vunpack.c.l.b16 %v700
      %v1267 = vunpack.c.h.b16 %v700
      %v1268 = vunpack.c.l.b16 %v701
      %v1269 = vunpack.c.h.b16 %v701
      %v1270 = vunpack.c.l.b16 %v702
      %v1271 = vunpack.c.h.b16 %v702
      %v1272 = vunpack.c.l.b16 %v703
      %v1273 = vunpack.c.h.b16 %v703
      %v1274 = vunpack.c.l.b16 %v704
      %v1275 = vunpack.c.h.b16 %v704
      %v1276 = vunpack.c.l.b16 %v705
      %v1277 = vunpack.c.h.b16 %v705
      %v1278 = vunpack.c.l.b16 %v706
      %v1279 = vunpack.c.h.b16 %v706
      %v1280 = vunpack.c.l.b16 %v707
      %v1281 = vunpack.c.h.b16 %v707
      %v1282 = vunpack.c.l.b16 %v708
      %v1283 = vunpack.c.h.b16 %v708
      %v1284 = vunpack.c.l.b16 %v709
      %v1285 = vunpack.c.h.b16 %v709
      %v1286 = vunpack.c.l.b16 %v710
      %v1287 = vunpack.c.h.b16 %v710
      %v1288 = vunpack.c.l.b16 %v711
      %v1289 = vunpack.c.h.b16 %v711
      %v1290 = vunpack.c.l.b16 %v712
      %v1291 = vunpack.c.h.b16 %v712
      %v1292 = vunpack.c.l.b16 %v713
      %v1293 = vunpack.c.h.b16 %v713
      %v1294 = vunpack.c.l.b16 %v714
      %v1295 = vunpack.c.h.b16 %v714
      %v1296 = vunpack.c.l.b16 %v715
      %v1297 = vunpack.c.h.b16 %v715
      %v1298 = vunpack.c.l.b16 %v716
      %v1299 = vunpack.c.h.b16 %v716
      %v1300 = vunpack.c.l.b16 %v717
      %v1301 = vunpack.c.h.b16 %v717
      %v1302 = vunpack.c.l.b16 %v718
      %v1303 = vunpack.c.h.b16 %v718
      %v1304 = vunpack.c.l.b16 %v719
      %v1305 = vunpack.c.h.b16 %v719
      %v1306 = vpack.c.b16 %v1112, %v1110
      %v1307 = vpack.c.b16 %v1113, %v1111
      %v1308 = vpack.c.b16 %v1116, %v1114
      %v1309 = vpack.c.b16 %v1117, %v1115
      %v1310 = vpack.c.b16 %v1120, %v1118
      %v1311 = vpack.c.b16 %v1121, %v1119
      %v1312 = vpack.c.b16 %v1124, %v1122
      %v1313 = vpack.c.b16 %v1125, %v1123
      %v1314 = vpack.c.b16 %v1128, %v1126
      %v1315 = vpack.c.b16 %v1129, %v1127
      %v1316 = vpack.c.b16 %v1132, %v1130
      %v1317 = vpack.c.b16 %v1133, %v1131
      %v1318 = vpack.c.b16 %v1136, %v1134
      %v1319 = vpack.c.b16 %v1137, %v1135
      %v1320 = vpack.c.b16 %v1140, %v1138
      %v1321 = vpack.c.b16 %v1141, %v1139
      %v1322 = vpack.c.b16 %v1144, %v1142
      %v1323 = vpack.c.b16 %v1145, %v1143
      %v1324 = vpack.c.b16 %v1148, %v1146
      %v1325 = vpack.c.b16 %v1149, %v1147
      %v1326 = vpack.c.b16 %v1152, %v1150
      %v1327 = vpack.c.b16 %v1153, %v1151
      %v1328 = vpack.c.b16 %v1156, %v1154
      %v1329 = vpack.c.b16 %v1157, %v1155
      %v1330 = vpack.c.b16 %v1160, %v1158
      %v1331 = vpack.c.b16 %v1161, %v1159
      %v1332 = vpack.c.b16 %v1164, %v1162
      %v1333 = vpack.c.b16 %v1165, %v1163
      %v1334 = vpack.c.b16 %v1168, %v1166
      %v1335 = vpack.c.b16 %v1169, %v1167
      %v1336 = vpack.c.b16 %v1172, %v1170
      %v1337 = vpack.c.b16 %v1173, %v1171
      %v1338 = vpack.c.b16 %v1176, %v1174
      %v1339 = vpack.c.b16 %v1177, %v1175
      %v1340 = vpack.c.b16 %v1180, %v1178
      %v1341 = vpack.c.b16 %v1181, %v1179
      %v1342 = vpack.c.b16 %v1184, %v1182
      %v1343 = vpack.c.b16 %v1185, %v1183
      %v1344 = vpack.c.b16 %v1188, %v1186
      %v1345 = vpack.c.b16 %v1189, %v1187
      %v1346 = vpack.c.b16 %v1192, %v1190
      %v1347 = vpack.c.b16 %v1193, %v1191
      %v1348 = vpack.c.b16 %v1196, %v1194
      %v1349 = vpack.c.b16 %v1197, %v1195
      %v1350 = vpack.c.b16 %v1200, %v1198
      %v1351 = vpack.c.b16 %v1201, %v1199
      %v1352 = vpack.c.b16 %v1204, %v1202
      %v1353 = vpack.c.b16 %v1205, %v1203
      %v1354 = vpack.c.b16 %v1208, %v1206
      %v1355 = vpack.c.b16 %v1209, %v1207
      %v1356 = vpack.c.b16 %v1212, %v1210
      %v1357 = vpack.c.b16 %v1213, %v1211
      %v1358 = vpack.c.b16 %v1216, %v1214
      %v1359 = vpack.c.b16 %v1217, %v1215
      %v1360 = vpack.c.b16 %v1220, %v1218
      %v1361 = vpack.c.b16 %v1221, %v1219
      %v1362 = vpack.c.b16 %v1224, %v1222
      %v1363 = vpack.c.b16 %v1225, %v1223
      %v1364 = vpack.c.b16 %v1228, %v1226
      %v1365 = vpack.c.b16 %v1229, %v1227
      %v1366 = vpack.c.b16 %v1232, %v1230
      %v1367 = vpack.c.b16 %v1233, %v1231
      %v1368 = vpack.c.b16 %v1236, %v1234
      %v1369 = vpack.c.b16 %v1237, %v1235
      %v1370 = vpack.c.b16 %v1240, %v1238
      %v1371 = vpack.c.b16 %v1241, %v1239
      %v1372 = vpack.c.b16 %v1244, %v1242
      %v1373 = vpack.c.b16 %v1245, %v1243
      %v1374 = vpack.c.b16 %v1248, %v1246
      %v1375 = vpack.c.b16 %v1249, %v1247
      %v1376 = vpack.c.b16 %v1252, %v1250
      %v1377 = vpack.c.b16 %v1253, %v1251
      %v1378 = vpack.c.b16 %v1256, %v1254
      %v1379 = vpack.c.b16 %v1257, %v1255
      %v1380 = vpack.c.b16 %v1260, %v1258
      %v1381 = vpack.c.b16 %v1261, %v1259
      %v1382 = vpack.c.b16 %v1264, %v1262
      %v1383 = vpack.c.b16 %v1265, %v1263
      %v1384 = vpack.c.b16 %v1268, %v1266
      %v1385 = vpack.c.b16 %v1269, %v1267
      %v1386 = vpack.c.b16 %v1272, %v1270
      %v1387 = vpack.c.b16 %v1273, %v1271
      %v1388 = vpack.c.b16 %v1276, %v1274
      %v1389 = vpack.c.b16 %v1277, %v1275
      %v1390 = vpack.c.b16 %v1280, %v1278
      %v1391 = vpack.c.b16 %v1281, %v1279
      %v1392 = vpack.c.b16 %v1284, %v1282
      %v1393 = vpack.c.b16 %v1285, %v1283
      %v1394 = vpack.c.b16 %v1288, %v1286
      %v1395 = vpack.c.b16 %v1289, %v1287
      %v1396 = vpack.c.b16 %v1292, %v1290
      %v1397 = vpack.c.b16 %v1293, %v1291
      %v1398 = vpack.c.b16 %v1296, %v1294
      %v1399 = vpack.c.b16 %v1297, %v1295
      %v1400 = vpack.c.b16 %v1300, %v1298
      %v1401 = vpack.c.b16 %v1301, %v1299
      %v1402 = vpack.c.b16 %v1304, %v1302
      %v1403 = vpack.c.b16 %v1305, %v1303
      %vm1502 = vcmask 130048
      %v1504 = vsel %vm1502, %v914, 0
      %v1507 = vsel %vm1502, %v921, 0
      %v1510 = vsel %vm1502, %v928, 0
      %v1513 = vsel %vm1502, %v935, 0
      %v1516 = vsel %vm1502, %v942, 0
      %v1519 = vsel %vm1502, %v949, 0
      %v1522 = vsel %vm1502, %v956, 0
      %v1525 = vsel %vm1502, %v963, 0
      %1527 = vmatprep.subr.bf16.mxu0 %v1321
      %1528 = vmatpush1.bf16.msra.mxu0 %v1320
      %1529 = vmatprep.subr.bf16.mxu0 %v1319
      %1530 = vmatpush1.bf16.msra.mxu0 %v1318
      %1531 = vmatprep.subr.bf16.mxu0 %v1317
      %1532 = vmatpush1.bf16.msra.mxu0 %v1316
      %1533 = vmatprep.subr.bf16.mxu0 %v1315
      %1534 = vmatpush1.bf16.msra.mxu0 %v1314
      %1535 = vmatprep.subr.bf16.mxu0 %v1313
      %1536 = vmatpush1.bf16.msra.mxu0 %v1312
      %1537 = vmatprep.subr.bf16.mxu0 %v1311
      %1538 = vmatpush1.bf16.msra.mxu0 %v1310
      %1539 = vmatprep.subr.bf16.mxu0 %v1309
      %1540 = vmatpush1.bf16.msra.mxu0 %v1308
      %1541 = vmatprep.subr.bf16.mxu0 %v1307
      %1542 = vmatpush1.bf16.msra.mxu0 %v1306
      %1543 = vmatprep.subr.bf16.mxu0 %v1337
      %1544 = vmatpush2.bf16.msra.mxu0 %v1336
      %1545 = vmatprep.subr.bf16.mxu0 %v1335
      %1546 = vmatpush2.bf16.msra.mxu0 %v1334
      %1547 = vmatprep.subr.bf16.mxu0 %v1333
      %1548 = vmatpush2.bf16.msra.mxu0 %v1332
      %1549 = vmatprep.subr.bf16.mxu0 %v1331
      %1550 = vmatpush2.bf16.msra.mxu0 %v1330
      %1551 = vmatprep.subr.bf16.mxu0 %v1329
      %1552 = vmatpush2.bf16.msra.mxu0 %v1328
      %1553 = vmatprep.subr.bf16.mxu0 %v1327
      %1554 = vmatpush2.bf16.msra.mxu0 %v1326
      %1555 = vmatprep.subr.bf16.mxu0 %v1325
      %1556 = vmatpush2.bf16.msra.mxu0 %v1324
      %1557 = vmatprep.subr.bf16.mxu0 %v1323
      %1558 = vmatpush2.bf16.msra.mxu0 %v1322
      %1559 = vmatprep.mubr.bf16.mxu0 %v909
      %1560 = vmatmul.mubr.bf16.gmra.mxu0 %v908
      %v1561 = vpop.f32.mrf.mxu0
      %v1562 = vadd.f32 %v725, %v1561
      %v1563 = vpop.f32.mrf.mxu0
      %v1564 = vadd.f32 %v729, %v1563
      %v1565 = vpop.f32.mrf.mxu0
      %v1566 = vadd.f32 %v725, %v1565
      %v1567 = vpop.f32.mrf.mxu0
      %v1568 = vadd.f32 %v729, %v1567
      %1569 = vmatprep.mubr.bf16.mxu0 %v916
      %1570 = vmatmul.mubr.bf16.gmra.mxu0 %v915
      %v1571 = vpop.f32.mrf.mxu0
      %v1572 = vadd.f32 %v725, %v1571
      %v1573 = vpop.f32.mrf.mxu0
      %v1574 = vadd.f32 %v729, %v1573
      %v1575 = vpop.f32.mrf.mxu0
      %v1576 = vadd.f32 %v725, %v1575
      %v1577 = vpop.f32.mrf.mxu0
      %v1578 = vadd.f32 %v729, %v1577
      %1579 = vmatprep.mubr.bf16.mxu0 %v923
      %1580 = vmatmul.mubr.bf16.gmra.mxu0 %v922
      %v1581 = vpop.f32.mrf.mxu0
      %v1582 = vadd.f32 %v725, %v1581
      %v1583 = vpop.f32.mrf.mxu0
      %v1584 = vadd.f32 %v729, %v1583
      %v1585 = vpop.f32.mrf.mxu0
      %v1586 = vadd.f32 %v725, %v1585
      %v1587 = vpop.f32.mrf.mxu0
      %v1588 = vadd.f32 %v729, %v1587
      %1589 = vmatprep.mubr.bf16.mxu0 %v930
      %1590 = vmatmul.mubr.bf16.gmra.mxu0 %v929
      %v1591 = vpop.f32.mrf.mxu0
      %v1592 = vadd.f32 %v725, %v1591
      %v1593 = vpop.f32.mrf.mxu0
      %v1594 = vadd.f32 %v729, %v1593
      %v1595 = vpop.f32.mrf.mxu0
      %v1596 = vadd.f32 %v725, %v1595
      %v1597 = vpop.f32.mrf.mxu0
      %v1598 = vadd.f32 %v729, %v1597
      %1599 = vmatprep.mubr.bf16.mxu0 %v937
      %1600 = vmatmul.mubr.bf16.gmra.mxu0 %v936
      %v1601 = vpop.f32.mrf.mxu0
      %v1602 = vadd.f32 %v725, %v1601
      %v1603 = vpop.f32.mrf.mxu0
      %v1604 = vadd.f32 %v729, %v1603
      %v1605 = vpop.f32.mrf.mxu0
      %v1606 = vadd.f32 %v725, %v1605
      %v1607 = vpop.f32.mrf.mxu0
      %v1608 = vadd.f32 %v729, %v1607
      %1609 = vmatprep.mubr.bf16.mxu0 %v944
      %1610 = vmatmul.mubr.bf16.gmra.mxu0 %v943
      %v1611 = vpop.f32.mrf.mxu0
      %v1612 = vadd.f32 %v725, %v1611
      %v1613 = vpop.f32.mrf.mxu0
      %v1614 = vadd.f32 %v729, %v1613
      %v1615 = vpop.f32.mrf.mxu0
      %v1616 = vadd.f32 %v725, %v1615
      %v1617 = vpop.f32.mrf.mxu0
      %v1618 = vadd.f32 %v729, %v1617
      %1619 = vmatprep.mubr.bf16.mxu0 %v951
      %1620 = vmatmul.mubr.bf16.gmra.mxu0 %v950
      %v1621 = vpop.f32.mrf.mxu0
      %v1622 = vadd.f32 %v725, %v1621
      %v1623 = vpop.f32.mrf.mxu0
      %v1624 = vadd.f32 %v729, %v1623
      %v1625 = vpop.f32.mrf.mxu0
      %v1626 = vadd.f32 %v725, %v1625
      %v1627 = vpop.f32.mrf.mxu0
      %v1628 = vadd.f32 %v729, %v1627
      %1629 = vmatprep.mubr.bf16.mxu0 %v958
      %1630 = vmatmul.mubr.bf16.gmra.mxu0 %v957
      %v1631 = vpop.f32.mrf.mxu0
      %v1632 = vadd.f32 %v725, %v1631
      %v1633 = vpop.f32.mrf.mxu0
      %v1634 = vadd.f32 %v729, %v1633
      %v1635 = vpop.f32.mrf.mxu0
      %v1636 = vadd.f32 %v725, %v1635
      %v1637 = vpop.f32.mrf.mxu0
      %v1638 = vadd.f32 %v729, %v1637
      %1639 = vdwg.mxu0
      %1640 = vmatprep.subr.bf16.mxu0 %v1353
      %1641 = vmatpush1.bf16.msra.mxu0 %v1352
      %1642 = vmatprep.subr.bf16.mxu0 %v1351
      %1643 = vmatpush1.bf16.msra.mxu0 %v1350
      %1644 = vmatprep.subr.bf16.mxu0 %v1349
      %1645 = vmatpush1.bf16.msra.mxu0 %v1348
      %1646 = vmatprep.subr.bf16.mxu0 %v1347
      %1647 = vmatpush1.bf16.msra.mxu0 %v1346
      %1648 = vmatprep.subr.bf16.mxu0 %v1345
      %1649 = vmatpush1.bf16.msra.mxu0 %v1344
      %1650 = vmatprep.subr.bf16.mxu0 %v1343
      %1651 = vmatpush1.bf16.msra.mxu0 %v1342
      %1652 = vmatprep.subr.bf16.mxu0 %v1341
      %1653 = vmatpush1.bf16.msra.mxu0 %v1340
      %1654 = vmatprep.subr.bf16.mxu0 %v1339
      %1655 = vmatpush1.bf16.msra.mxu0 %v1338
      %1656 = vmatprep.subr.bf16.mxu0 %v1369
      %1657 = vmatpush2.bf16.msra.mxu0 %v1368
      %1658 = vmatprep.subr.bf16.mxu0 %v1367
      %1659 = vmatpush2.bf16.msra.mxu0 %v1366
      %1660 = vmatprep.subr.bf16.mxu0 %v1365
      %1661 = vmatpush2.bf16.msra.mxu0 %v1364
      %1662 = vmatprep.subr.bf16.mxu0 %v1363
      %1663 = vmatpush2.bf16.msra.mxu0 %v1362
      %1664 = vmatprep.subr.bf16.mxu0 %v1361
      %1665 = vmatpush2.bf16.msra.mxu0 %v1360
      %1666 = vmatprep.subr.bf16.mxu0 %v1359
      %1667 = vmatpush2.bf16.msra.mxu0 %v1358
      %1668 = vmatprep.subr.bf16.mxu0 %v1357
      %1669 = vmatpush2.bf16.msra.mxu0 %v1356
      %1670 = vmatprep.subr.bf16.mxu0 %v1355
      %1671 = vmatpush2.bf16.msra.mxu0 %v1354
      %1672 = vmatprep.mubr.bf16.mxu0 %v911
      %1673 = vmatmul.mubr.bf16.gmra.mxu0 %v910
      %v1674 = vpop.f32.mrf.mxu0
      %v1675 = vadd.f32 %v1562, %v1674
      %v1676 = vpop.f32.mrf.mxu0
      %v1677 = vadd.f32 %v1564, %v1676
      %v1678 = vpop.f32.mrf.mxu0
      %v1679 = vadd.f32 %v1566, %v1678
      %v1680 = vpop.f32.mrf.mxu0
      %v1681 = vadd.f32 %v1568, %v1680
      %1682 = vmatprep.mubr.bf16.mxu0 %v918
      %1683 = vmatmul.mubr.bf16.gmra.mxu0 %v917
      %v1684 = vpop.f32.mrf.mxu0
      %v1685 = vadd.f32 %v1572, %v1684
      %v1686 = vpop.f32.mrf.mxu0
      %v1687 = vadd.f32 %v1574, %v1686
      %v1688 = vpop.f32.mrf.mxu0
      %v1689 = vadd.f32 %v1576, %v1688
      %v1690 = vpop.f32.mrf.mxu0
      %v1691 = vadd.f32 %v1578, %v1690
      %1692 = vmatprep.mubr.bf16.mxu0 %v925
      %1693 = vmatmul.mubr.bf16.gmra.mxu0 %v924
      %v1694 = vpop.f32.mrf.mxu0
      %v1695 = vadd.f32 %v1582, %v1694
      %v1696 = vpop.f32.mrf.mxu0
      %v1697 = vadd.f32 %v1584, %v1696
      %v1698 = vpop.f32.mrf.mxu0
      %v1699 = vadd.f32 %v1586, %v1698
      %v1700 = vpop.f32.mrf.mxu0
      %v1701 = vadd.f32 %v1588, %v1700
      %1702 = vmatprep.mubr.bf16.mxu0 %v932
      %1703 = vmatmul.mubr.bf16.gmra.mxu0 %v931
      %v1704 = vpop.f32.mrf.mxu0
      %v1705 = vadd.f32 %v1592, %v1704
      %v1706 = vpop.f32.mrf.mxu0
      %v1707 = vadd.f32 %v1594, %v1706
      %v1708 = vpop.f32.mrf.mxu0
      %v1709 = vadd.f32 %v1596, %v1708
      %v1710 = vpop.f32.mrf.mxu0
      %v1711 = vadd.f32 %v1598, %v1710
      %1712 = vmatprep.mubr.bf16.mxu0 %v939
      %1713 = vmatmul.mubr.bf16.gmra.mxu0 %v938
      %v1714 = vpop.f32.mrf.mxu0
      %v1715 = vadd.f32 %v1602, %v1714
      %v1716 = vpop.f32.mrf.mxu0
      %v1717 = vadd.f32 %v1604, %v1716
      %v1718 = vpop.f32.mrf.mxu0
      %v1719 = vadd.f32 %v1606, %v1718
      %v1720 = vpop.f32.mrf.mxu0
      %v1721 = vadd.f32 %v1608, %v1720
      %1722 = vmatprep.mubr.bf16.mxu0 %v946
      %1723 = vmatmul.mubr.bf16.gmra.mxu0 %v945
      %v1724 = vpop.f32.mrf.mxu0
      %v1725 = vadd.f32 %v1612, %v1724
      %v1726 = vpop.f32.mrf.mxu0
      %v1727 = vadd.f32 %v1614, %v1726
      %v1728 = vpop.f32.mrf.mxu0
      %v1729 = vadd.f32 %v1616, %v1728
      %v1730 = vpop.f32.mrf.mxu0
      %v1731 = vadd.f32 %v1618, %v1730
      %1732 = vmatprep.mubr.bf16.mxu0 %v953
      %1733 = vmatmul.mubr.bf16.gmra.mxu0 %v952
      %v1734 = vpop.f32.mrf.mxu0
      %v1735 = vadd.f32 %v1622, %v1734
      %v1736 = vpop.f32.mrf.mxu0
      %v1737 = vadd.f32 %v1624, %v1736
      %v1738 = vpop.f32.mrf.mxu0
      %v1739 = vadd.f32 %v1626, %v1738
      %v1740 = vpop.f32.mrf.mxu0
      %v1741 = vadd.f32 %v1628, %v1740
      %1742 = vmatprep.mubr.bf16.mxu0 %v960
      %1743 = vmatmul.mubr.bf16.gmra.mxu0 %v959
      %v1744 = vpop.f32.mrf.mxu0
      %v1745 = vadd.f32 %v1632, %v1744
      %v1746 = vpop.f32.mrf.mxu0
      %v1747 = vadd.f32 %v1634, %v1746
      %v1748 = vpop.f32.mrf.mxu0
      %v1749 = vadd.f32 %v1636, %v1748
      %v1750 = vpop.f32.mrf.mxu0
      %v1751 = vadd.f32 %v1638, %v1750
      %1752 = vdwg.mxu0
      %1753 = vmatprep.subr.bf16.mxu0 %v1385
      %1754 = vmatpush1.bf16.msra.mxu0 %v1384
      %1755 = vmatprep.subr.bf16.mxu0 %v1383
      %1756 = vmatpush1.bf16.msra.mxu0 %v1382
      %1757 = vmatprep.subr.bf16.mxu0 %v1381
      %1758 = vmatpush1.bf16.msra.mxu0 %v1380
      %1759 = vmatprep.subr.bf16.mxu0 %v1379
      %1760 = vmatpush1.bf16.msra.mxu0 %v1378
      %1761 = vmatprep.subr.bf16.mxu0 %v1377
      %1762 = vmatpush1.bf16.msra.mxu0 %v1376
      %1763 = vmatprep.subr.bf16.mxu0 %v1375
      %1764 = vmatpush1.bf16.msra.mxu0 %v1374
      %1765 = vmatprep.subr.bf16.mxu0 %v1373
      %1766 = vmatpush1.bf16.msra.mxu0 %v1372
      %1767 = vmatprep.subr.bf16.mxu0 %v1371
      %1768 = vmatpush1.bf16.msra.mxu0 %v1370
      %1769 = vmatprep.subr.bf16.mxu0 %v1401
      %1770 = vmatpush2.bf16.msra.mxu0 %v1400
      %1771 = vmatprep.subr.bf16.mxu0 %v1399
      %1772 = vmatpush2.bf16.msra.mxu0 %v1398
      %1773 = vmatprep.subr.bf16.mxu0 %v1397
      %1774 = vmatpush2.bf16.msra.mxu0 %v1396
      %1775 = vmatprep.subr.bf16.mxu0 %v1395
      %1776 = vmatpush2.bf16.msra.mxu0 %v1394
      %1777 = vmatprep.subr.bf16.mxu0 %v1393
      %1778 = vmatpush2.bf16.msra.mxu0 %v1392
      %1779 = vmatprep.subr.bf16.mxu0 %v1391
      %1780 = vmatpush2.bf16.msra.mxu0 %v1390
      %1781 = vmatprep.subr.bf16.mxu0 %v1389
      %1782 = vmatpush2.bf16.msra.mxu0 %v1388
      %1783 = vmatprep.subr.bf16.mxu0 %v1387
      %1784 = vmatpush2.bf16.msra.mxu0 %v1386
      %1785 = vmatprep.mubr.bf16.mxu0 %v913
      %1786 = vmatmul.mubr.bf16.gmra.mxu0 %v912
      %v1787 = vpop.f32.mrf.mxu0
      %v1788 = vadd.f32 %v1675, %v1787
      %v1789 = vpop.f32.mrf.mxu0
      %v1790 = vadd.f32 %v1677, %v1789
      %v1791 = vpop.f32.mrf.mxu0
      %v1792 = vadd.f32 %v1679, %v1791
      %v1793 = vpop.f32.mrf.mxu0
      %v1794 = vadd.f32 %v1681, %v1793
      %1795 = vmatprep.mubr.bf16.mxu0 %v920
      %1796 = vmatmul.mubr.bf16.gmra.mxu0 %v919
      %v1797 = vpop.f32.mrf.mxu0
      %v1798 = vadd.f32 %v1685, %v1797
      %v1799 = vpop.f32.mrf.mxu0
      %v1800 = vadd.f32 %v1687, %v1799
      %v1801 = vpop.f32.mrf.mxu0
      %v1802 = vadd.f32 %v1689, %v1801
      %v1803 = vpop.f32.mrf.mxu0
      %v1804 = vadd.f32 %v1691, %v1803
      %1805 = vmatprep.mubr.bf16.mxu0 %v927
      %1806 = vmatmul.mubr.bf16.gmra.mxu0 %v926
      %v1807 = vpop.f32.mrf.mxu0
      %v1808 = vadd.f32 %v1695, %v1807
      %v1809 = vpop.f32.mrf.mxu0
      %v1810 = vadd.f32 %v1697, %v1809
      %v1811 = vpop.f32.mrf.mxu0
      %v1812 = vadd.f32 %v1699, %v1811
      %v1813 = vpop.f32.mrf.mxu0
      %v1814 = vadd.f32 %v1701, %v1813
      %1815 = vmatprep.mubr.bf16.mxu0 %v934
      %1816 = vmatmul.mubr.bf16.gmra.mxu0 %v933
      %v1817 = vpop.f32.mrf.mxu0
      %v1818 = vadd.f32 %v1705, %v1817
      %v1819 = vpop.f32.mrf.mxu0
      %v1820 = vadd.f32 %v1707, %v1819
      %v1821 = vpop.f32.mrf.mxu0
      %v1822 = vadd.f32 %v1709, %v1821
      %v1823 = vpop.f32.mrf.mxu0
      %v1824 = vadd.f32 %v1711, %v1823
      %1825 = vmatprep.mubr.bf16.mxu0 %v941
      %1826 = vmatmul.mubr.bf16.gmra.mxu0 %v940
      %v1827 = vpop.f32.mrf.mxu0
      %v1828 = vadd.f32 %v1715, %v1827
      %v1829 = vpop.f32.mrf.mxu0
      %v1830 = vadd.f32 %v1717, %v1829
      %v1831 = vpop.f32.mrf.mxu0
      %v1832 = vadd.f32 %v1719, %v1831
      %v1833 = vpop.f32.mrf.mxu0
      %v1834 = vadd.f32 %v1721, %v1833
      %1835 = vmatprep.mubr.bf16.mxu0 %v948
      %1836 = vmatmul.mubr.bf16.gmra.mxu0 %v947
      %v1837 = vpop.f32.mrf.mxu0
      %v1838 = vadd.f32 %v1725, %v1837
      %v1839 = vpop.f32.mrf.mxu0
      %v1840 = vadd.f32 %v1727, %v1839
      %v1841 = vpop.f32.mrf.mxu0
      %v1842 = vadd.f32 %v1729, %v1841
      %v1843 = vpop.f32.mrf.mxu0
      %v1844 = vadd.f32 %v1731, %v1843
      %1845 = vmatprep.mubr.bf16.mxu0 %v955
      %1846 = vmatmul.mubr.bf16.gmra.mxu0 %v954
      %v1847 = vpop.f32.mrf.mxu0
      %v1848 = vadd.f32 %v1735, %v1847
      %v1849 = vpop.f32.mrf.mxu0
      %v1850 = vadd.f32 %v1737, %v1849
      %v1851 = vpop.f32.mrf.mxu0
      %v1852 = vadd.f32 %v1739, %v1851
      %v1853 = vpop.f32.mrf.mxu0
      %v1854 = vadd.f32 %v1741, %v1853
      %1855 = vmatprep.mubr.bf16.mxu0 %v962
      %1856 = vmatmul.mubr.bf16.gmra.mxu0 %v961
      %v1857 = vpop.f32.mrf.mxu0
      %v1858 = vadd.f32 %v1745, %v1857
      %v1859 = vpop.f32.mrf.mxu0
      %v1860 = vadd.f32 %v1747, %v1859
      %v1861 = vpop.f32.mrf.mxu0
      %v1862 = vadd.f32 %v1749, %v1861
      %v1863 = vpop.f32.mrf.mxu0
      %v1864 = vadd.f32 %v1751, %v1863
      %1865 = vdwg.mxu0
      %1866 = vmatprep.subr.bf16.mxu0 0
      %1867 = vmatpush1.bf16.msra.mxu0 0
      %1868 = vmatprep.subr.bf16.mxu0 0
      %1869 = vmatpush1.bf16.msra.mxu0 0
      %1870 = vmatprep.subr.bf16.mxu0 0
      %1871 = vmatpush1.bf16.msra.mxu0 0
      %1872 = vmatprep.subr.bf16.mxu0 0
      %1873 = vmatpush1.bf16.msra.mxu0 0
      %1874 = vmatprep.subr.bf16.mxu0 0
      %1875 = vmatpush1.bf16.msra.mxu0 0
      %1876 = vmatprep.subr.bf16.mxu0 0
      %1877 = vmatpush1.bf16.msra.mxu0 0
      %1878 = vmatprep.subr.bf16.mxu0 0
      %1879 = vmatpush1.bf16.msra.mxu0 0
      %1880 = vmatprep.subr.bf16.mxu0 %v1403
      %1881 = vmatpush1.bf16.msra.mxu0 %v1402
      %1882 = vmatprep.subr.bf16.mxu0 0
      %1883 = vmatpush2.bf16.msra.mxu0 0
      %1884 = vmatprep.subr.bf16.mxu0 0
      %1885 = vmatpush2.bf16.msra.mxu0 0
      %1886 = vmatprep.subr.bf16.mxu0 0
      %1887 = vmatpush2.bf16.msra.mxu0 0
      %1888 = vmatprep.subr.bf16.mxu0 0
      %1889 = vmatpush2.bf16.msra.mxu0 0
      %1890 = vmatprep.subr.bf16.mxu0 0
      %1891 = vmatpush2.bf16.msra.mxu0 0
      %1892 = vmatprep.subr.bf16.mxu0 0
      %1893 = vmatpush2.bf16.msra.mxu0 0
      %1894 = vmatprep.subr.bf16.mxu0 0
      %1895 = vmatpush2.bf16.msra.mxu0 0
      %1896 = vmatprep.subr.bf16.mxu0 0
      %1897 = vmatpush2.bf16.msra.mxu0 0
      %1898 = vmatprep.mubr.bf16.mxu0 0
      %1899 = vmatmul.mubr.bf16.gmra.mxu0 %v1504
      %v1900 = vpop.f32.mrf.mxu0
      %v1901 = vadd.f32 %v1788, %v1900
      %v1902 = vpop.f32.mrf.mxu0
      %v1903 = vadd.f32 %v1790, %v1902
      %v1904 = vpop.f32.mrf.mxu0
      %v1905 = vadd.f32 %v1792, %v1904
      %v1906 = vpop.f32.mrf.mxu0
      %v1907 = vadd.f32 %v1794, %v1906
      %1908 = vmatprep.mubr.bf16.mxu0 0
      %1909 = vmatmul.mubr.bf16.gmra.mxu0 %v1507
      %v1910 = vpop.f32.mrf.mxu0
      %v1911 = vadd.f32 %v1798, %v1910
      %v1912 = vpop.f32.mrf.mxu0
      %v1913 = vadd.f32 %v1800, %v1912
      %v1914 = vpop.f32.mrf.mxu0
      %v1915 = vadd.f32 %v1802, %v1914
      %v1916 = vpop.f32.mrf.mxu0
      %v1917 = vadd.f32 %v1804, %v1916
      %1918 = vmatprep.mubr.bf16.mxu0 0
      %1919 = vmatmul.mubr.bf16.gmra.mxu0 %v1510
      %v1920 = vpop.f32.mrf.mxu0
      %v1921 = vadd.f32 %v1808, %v1920
      %v1922 = vpop.f32.mrf.mxu0
      %v1923 = vadd.f32 %v1810, %v1922
      %v1924 = vpop.f32.mrf.mxu0
      %v1925 = vadd.f32 %v1812, %v1924
      %v1926 = vpop.f32.mrf.mxu0
      %v1927 = vadd.f32 %v1814, %v1926
      %1928 = vmatprep.mubr.bf16.mxu0 0
      %1929 = vmatmul.mubr.bf16.gmra.mxu0 %v1513
      %v1930 = vpop.f32.mrf.mxu0
      %v1931 = vadd.f32 %v1818, %v1930
      %v1932 = vpop.f32.mrf.mxu0
      %v1933 = vadd.f32 %v1820, %v1932
      %v1934 = vpop.f32.mrf.mxu0
      %v1935 = vadd.f32 %v1822, %v1934
      %v1936 = vpop.f32.mrf.mxu0
      %v1937 = vadd.f32 %v1824, %v1936
      %1938 = vmatprep.mubr.bf16.mxu0 0
      %1939 = vmatmul.mubr.bf16.gmra.mxu0 %v1516
      %v1940 = vpop.f32.mrf.mxu0
      %v1941 = vadd.f32 %v1828, %v1940
      %v1942 = vpop.f32.mrf.mxu0
      %v1943 = vadd.f32 %v1830, %v1942
      %v1944 = vpop.f32.mrf.mxu0
      %v1945 = vadd.f32 %v1832, %v1944
      %v1946 = vpop.f32.mrf.mxu0
      %v1947 = vadd.f32 %v1834, %v1946
      %1948 = vmatprep.mubr.bf16.mxu0 0
      %1949 = vmatmul.mubr.bf16.gmra.mxu0 %v1519
      %v1950 = vpop.f32.mrf.mxu0
      %v1951 = vadd.f32 %v1838, %v1950
      %v1952 = vpop.f32.mrf.mxu0
      %v1953 = vadd.f32 %v1840, %v1952
      %v1954 = vpop.f32.mrf.mxu0
      %v1955 = vadd.f32 %v1842, %v1954
      %v1956 = vpop.f32.mrf.mxu0
      %v1957 = vadd.f32 %v1844, %v1956
      %1958 = vmatprep.mubr.bf16.mxu0 0
      %1959 = vmatmul.mubr.bf16.gmra.mxu0 %v1522
      %v1960 = vpop.f32.mrf.mxu0
      %v1961 = vadd.f32 %v1848, %v1960
      %v1962 = vpop.f32.mrf.mxu0
      %v1963 = vadd.f32 %v1850, %v1962
      %v1964 = vpop.f32.mrf.mxu0
      %v1965 = vadd.f32 %v1852, %v1964
      %v1966 = vpop.f32.mrf.mxu0
      %v1967 = vadd.f32 %v1854, %v1966
      %1968 = vmatprep.mubr.bf16.mxu0 0
      %1969 = vmatmul.mubr.bf16.gmra.mxu0 %v1525
      %v1970 = vpop.f32.mrf.mxu0
      %v1971 = vadd.f32 %v1858, %v1970
      %v1972 = vpop.f32.mrf.mxu0
      %v1973 = vadd.f32 %v1860, %v1972
      %v1974 = vpop.f32.mrf.mxu0
      %v1975 = vadd.f32 %v1862, %v1974
      %v1976 = vpop.f32.mrf.mxu0
      %v1977 = vadd.f32 %v1864, %v1976
      %1978 = vdwg.mxu0
      %v1979 = vtanh.pop %v1901
      %v1980 = vtanh.pop %v1903
      %v1981 = vtanh.pop %v1905
      %v1982 = vtanh.pop %v1907
      %v1983 = vtanh.pop %v1911
      %v1984 = vtanh.pop %v1913
      %v1985 = vtanh.pop %v1915
      %v1986 = vtanh.pop %v1917
      %v1987 = vtanh.pop %v1921
      %v1988 = vtanh.pop %v1923
      %v1989 = vtanh.pop %v1925
      %v1990 = vtanh.pop %v1927
      %v1991 = vtanh.pop %v1931
      %v1992 = vtanh.pop %v1933
      %v1993 = vtanh.pop %v1935
      %v1994 = vtanh.pop %v1937
      %v1995 = vtanh.pop %v1941
      %v1996 = vtanh.pop %v1943
      %v1997 = vtanh.pop %v1945
      %v1998 = vtanh.pop %v1947
      %v1999 = vtanh.pop %v1951
      %v2000 = vtanh.pop %v1953
      %v2001 = vtanh.pop %v1955
      %v2002 = vtanh.pop %v1957
      %v2003 = vtanh.pop %v1961
      %v2004 = vtanh.pop %v1963
      %v2005 = vtanh.pop %v1965
      %v2006 = vtanh.pop %v1967
      %v2007 = vtanh.pop %v1971
      %v2008 = vtanh.pop %v1973
      %v2009 = vtanh.pop %v1975
      %v2010 = vtanh.pop %v1977
      %v2011 = vpack.c.bf16 %v1981, %v1979
      %v2012 = vpack.c.bf16 %v1982, %v1980
      %v2013 = vpack.c.bf16 %v1985, %v1983
      %v2014 = vpack.c.bf16 %v1986, %v1984
      %v2015 = vpack.c.bf16 %v1989, %v1987
      %v2016 = vpack.c.bf16 %v1990, %v1988
      %v2017 = vpack.c.bf16 %v1993, %v1991
      %v2018 = vpack.c.bf16 %v1994, %v1992
      %v2019 = vpack.c.bf16 %v1997, %v1995
      %v2020 = vpack.c.bf16 %v1998, %v1996
      %v2021 = vpack.c.bf16 %v2001, %v1999
      %v2022 = vpack.c.bf16 %v2002, %v2000
      %v2023 = vpack.c.bf16 %v2005, %v2003
      %v2024 = vpack.c.bf16 %v2006, %v2004
      %v2025 = vpack.c.bf16 %v2009, %v2007
      %v2026 = vpack.c.bf16 %v2010, %v2008
      %v2027 = vld [vmem:[%s4] sm:$0xff]
      %v2028 = vld [vmem:[%s4 + $0x8] sm:$0xff]
      %v2029 = vld [vmem:[%s4 + $0x10] sm:$0xff]
      %v2030 = vld [vmem:[%s4 + $0x18] sm:$0xff]
      %v2031 = vld [vmem:[%s4 + $0x20] sm:$0xff]
      %v2032 = vld [vmem:[%s4 + $0x28] sm:$0xff]
      %v2033 = vld [vmem:[%s4 + $0x30] sm:$0xff]
      %v2034 = vld [vmem:[%s4 + $0x38] sm:$0xff]
      %v2035 = vld [vmem:[%s4 + $0x40] sm:$0xff]
      %v2036 = vld [vmem:[%s4 + $0x48] sm:$0xff]
      %v2037 = vld [vmem:[%s4 + $0x50] sm:$0xff]
      %v2038 = vld [vmem:[%s4 + $0x58] sm:$0xff]
      %v2039 = vld [vmem:[%s4 + $0x60] sm:$0xff]
      %v2040 = vld [vmem:[%s4 + $0x68] sm:$0xff]
      %v2041 = vld [vmem:[%s4 + $0x70] sm:$0xff]
      %v2042 = vld [vmem:[%s4 + $0x78] sm:$0xff]
      %v2043 = vld [vmem:[%s4 + $0x80] sm:$0xff]
      %v2044 = vld [vmem:[%s4 + $0x88] sm:$0xff]
      %v2045 = vld [vmem:[%s4 + $0x90] sm:$0xff]
      %v2046 = vld [vmem:[%s4 + $0x98] sm:$0xff]
      %v2047 = vld [vmem:[%s4 + $0xa0] sm:$0xff]
      %v2048 = vld [vmem:[%s4 + $0xa8] sm:$0xff]
      %v2049 = vld [vmem:[%s4 + $0xb0] sm:$0xff]
      %v2050 = vld [vmem:[%s4 + $0xb8] sm:$0xff]
      %v2051 = vld [vmem:[%s4 + $0xc0] sm:$0xff]
      %v2052 = vld [vmem:[%s4 + $0xc8] sm:$0xff]
      %v2053 = vld [vmem:[%s4 + $0xd0] sm:$0xff]
      %v2054 = vld [vmem:[%s4 + $0xd8] sm:$0xff]
      %v2055 = vld [vmem:[%s4 + $0xe0] sm:$0xff]
      %v2056 = vld [vmem:[%s4 + $0xe8] sm:$0xff]
      %v2057 = vld [vmem:[%s4 + $0xf0] sm:$0xff]
      %v2058 = vld [vmem:[%s4 + $0xf8] sm:$0xff]
      %v2059 = vld [vmem:[%s5] sm:$0x3]
      %v2061 = vlaneseq
      %v2062 = vshrl.u32 %v2061, 7
      %v2063 = vsub.s32 0, %v2062
      %v2064 = vrot.slane %v2059, %v2063
      %v2065 = vlaneseq
      %v2066 = vshrl.u32 %v2065, 7
      %v2067 = vsub.s32 1, %v2066
      %v2068 = vrot.slane %v2059, %v2067
      %v2103 = vunpack.c.l.b16 %v2027
      %v2104 = vunpack.c.h.b16 %v2027
      %v2105 = vunpack.c.l.b16 %v2028
      %v2106 = vunpack.c.h.b16 %v2028
      %v2107 = vunpack.c.l.b16 %v2029
      %v2108 = vunpack.c.h.b16 %v2029
      %v2109 = vunpack.c.l.b16 %v2030
      %v2110 = vunpack.c.h.b16 %v2030
      %v2111 = vunpack.c.l.b16 %v2031
      %v2112 = vunpack.c.h.b16 %v2031
      %v2113 = vunpack.c.l.b16 %v2032
      %v2114 = vunpack.c.h.b16 %v2032
      %v2115 = vunpack.c.l.b16 %v2033
      %v2116 = vunpack.c.h.b16 %v2033
      %v2117 = vunpack.c.l.b16 %v2034
      %v2118 = vunpack.c.h.b16 %v2034
      %v2119 = vunpack.c.l.b16 %v2035
      %v2120 = vunpack.c.h.b16 %v2035
      %v2121 = vunpack.c.l.b16 %v2036
      %v2122 = vunpack.c.h.b16 %v2036
      %v2123 = vunpack.c.l.b16 %v2037
      %v2124 = vunpack.c.h.b16 %v2037
      %v2125 = vunpack.c.l.b16 %v2038
      %v2126 = vunpack.c.h.b16 %v2038
      %v2127 = vunpack.c.l.b16 %v2039
      %v2128 = vunpack.c.h.b16 %v2039
      %v2129 = vunpack.c.l.b16 %v2040
      %v2130 = vunpack.c.h.b16 %v2040
      %v2131 = vunpack.c.l.b16 %v2041
      %v2132 = vunpack.c.h.b16 %v2041
      %v2133 = vunpack.c.l.b16 %v2042
      %v2134 = vunpack.c.h.b16 %v2042
      %v2135 = vunpack.c.l.b16 %v2043
      %v2136 = vunpack.c.h.b16 %v2043
      %v2137 = vunpack.c.l.b16 %v2044
      %v2138 = vunpack.c.h.b16 %v2044
      %v2139 = vunpack.c.l.b16 %v2045
      %v2140 = vunpack.c.h.b16 %v2045
      %v2141 = vunpack.c.l.b16 %v2046
      %v2142 = vunpack.c.h.b16 %v2046
      %v2143 = vunpack.c.l.b16 %v2047
      %v2144 = vunpack.c.h.b16 %v2047
      %v2145 = vunpack.c.l.b16 %v2048
      %v2146 = vunpack.c.h.b16 %v2048
      %v2147 = vunpack.c.l.b16 %v2049
      %v2148 = vunpack.c.h.b16 %v2049
      %v2149 = vunpack.c.l.b16 %v2050
      %v2150 = vunpack.c.h.b16 %v2050
      %v2151 = vunpack.c.l.b16 %v2051
      %v2152 = vunpack.c.h.b16 %v2051
      %v2153 = vunpack.c.l.b16 %v2052
      %v2154 = vunpack.c.h.b16 %v2052
      %v2155 = vunpack.c.l.b16 %v2053
      %v2156 = vunpack.c.h.b16 %v2053
      %v2157 = vunpack.c.l.b16 %v2054
      %v2158 = vunpack.c.h.b16 %v2054
      %v2159 = vunpack.c.l.b16 %v2055
      %v2160 = vunpack.c.h.b16 %v2055
      %v2161 = vunpack.c.l.b16 %v2056
      %v2162 = vunpack.c.h.b16 %v2056
      %v2163 = vunpack.c.l.b16 %v2057
      %v2164 = vunpack.c.h.b16 %v2057
      %v2165 = vunpack.c.l.b16 %v2058
      %v2166 = vunpack.c.h.b16 %v2058
      %v2167 = vpack.c.b16 %v2105, %v2103
      %v2168 = vpack.c.b16 %v2106, %v2104
      %v2169 = vpack.c.b16 %v2109, %v2107
      %v2170 = vpack.c.b16 %v2110, %v2108
      %v2171 = vpack.c.b16 %v2113, %v2111
      %v2172 = vpack.c.b16 %v2114, %v2112
      %v2173 = vpack.c.b16 %v2117, %v2115
      %v2174 = vpack.c.b16 %v2118, %v2116
      %v2175 = vpack.c.b16 %v2121, %v2119
      %v2176 = vpack.c.b16 %v2122, %v2120
      %v2177 = vpack.c.b16 %v2125, %v2123
      %v2178 = vpack.c.b16 %v2126, %v2124
      %v2179 = vpack.c.b16 %v2129, %v2127
      %v2180 = vpack.c.b16 %v2130, %v2128
      %v2181 = vpack.c.b16 %v2133, %v2131
      %v2182 = vpack.c.b16 %v2134, %v2132
      %v2183 = vpack.c.b16 %v2137, %v2135
      %v2184 = vpack.c.b16 %v2138, %v2136
      %v2185 = vpack.c.b16 %v2141, %v2139
      %v2186 = vpack.c.b16 %v2142, %v2140
      %v2187 = vpack.c.b16 %v2145, %v2143
      %v2188 = vpack.c.b16 %v2146, %v2144
      %v2189 = vpack.c.b16 %v2149, %v2147
      %v2190 = vpack.c.b16 %v2150, %v2148
      %v2191 = vpack.c.b16 %v2153, %v2151
      %v2192 = vpack.c.b16 %v2154, %v2152
      %v2193 = vpack.c.b16 %v2157, %v2155
      %v2194 = vpack.c.b16 %v2158, %v2156
      %v2195 = vpack.c.b16 %v2161, %v2159
      %v2196 = vpack.c.b16 %v2162, %v2160
      %v2197 = vpack.c.b16 %v2165, %v2163
      %v2198 = vpack.c.b16 %v2166, %v2164
      %2231 = vmatprep.subr.bf16.mxu0 %v2182
      %2232 = vmatpush1.bf16.msra.mxu0 %v2181
      %2233 = vmatprep.subr.bf16.mxu0 %v2180
      %2234 = vmatpush1.bf16.msra.mxu0 %v2179
      %2235 = vmatprep.subr.bf16.mxu0 %v2178
      %2236 = vmatpush1.bf16.msra.mxu0 %v2177
      %2237 = vmatprep.subr.bf16.mxu0 %v2176
      %2238 = vmatpush1.bf16.msra.mxu0 %v2175
      %2239 = vmatprep.subr.bf16.mxu0 %v2174
      %2240 = vmatpush1.bf16.msra.mxu0 %v2173
      %2241 = vmatprep.subr.bf16.mxu0 %v2172
      %2242 = vmatpush1.bf16.msra.mxu0 %v2171
      %2243 = vmatprep.subr.bf16.mxu0 %v2170
      %2244 = vmatpush1.bf16.msra.mxu0 %v2169
      %2245 = vmatprep.subr.bf16.mxu0 %v2168
      %2246 = vmatpush1.bf16.msra.mxu0 %v2167
      %2247 = vmatprep.subr.bf16.mxu0 %v2198
      %2248 = vmatpush2.bf16.msra.mxu0 %v2197
      %2249 = vmatprep.subr.bf16.mxu0 %v2196
      %2250 = vmatpush2.bf16.msra.mxu0 %v2195
      %2251 = vmatprep.subr.bf16.mxu0 %v2194
      %2252 = vmatpush2.bf16.msra.mxu0 %v2193
      %2253 = vmatprep.subr.bf16.mxu0 %v2192
      %2254 = vmatpush2.bf16.msra.mxu0 %v2191
      %2255 = vmatprep.subr.bf16.mxu0 %v2190
      %2256 = vmatpush2.bf16.msra.mxu0 %v2189
      %2257 = vmatprep.subr.bf16.mxu0 %v2188
      %2258 = vmatpush2.bf16.msra.mxu0 %v2187
      %2259 = vmatprep.subr.bf16.mxu0 %v2186
      %2260 = vmatpush2.bf16.msra.mxu0 %v2185
      %2261 = vmatprep.subr.bf16.mxu0 %v2184
      %2262 = vmatpush2.bf16.msra.mxu0 %v2183
      %2263 = vmatprep.mubr.bf16.mxu0 %v2012
      %2264 = vmatmul.mubr.bf16.gmra.mxu0 %v2011
      %v2265 = vpop.f32.mrf.mxu0
      %v2266 = vadd.f32 %v2064, %v2265
      %v2267 = vpop.f32.mrf.mxu0
      %v2268 = vadd.f32 %v2068, %v2267
      %v2269 = vpop.f32.mrf.mxu0
      %v2270 = vadd.f32 %v2064, %v2269
      %v2271 = vpop.f32.mrf.mxu0
      %v2272 = vadd.f32 %v2068, %v2271
      %2273 = vmatprep.mubr.bf16.mxu0 %v2014
      %2274 = vmatmul.mubr.bf16.gmra.mxu0 %v2013
      %v2275 = vpop.f32.mrf.mxu0
      %v2276 = vadd.f32 %v2064, %v2275
      %v2277 = vpop.f32.mrf.mxu0
      %v2278 = vadd.f32 %v2068, %v2277
      %v2279 = vpop.f32.mrf.mxu0
      %v2280 = vadd.f32 %v2064, %v2279
      %v2281 = vpop.f32.mrf.mxu0
      %v2282 = vadd.f32 %v2068, %v2281
      %2283 = vmatprep.mubr.bf16.mxu0 %v2016
      %2284 = vmatmul.mubr.bf16.gmra.mxu0 %v2015
      %v2285 = vpop.f32.mrf.mxu0
      %v2286 = vadd.f32 %v2064, %v2285
      %v2287 = vpop.f32.mrf.mxu0
      %v2288 = vadd.f32 %v2068, %v2287
      %v2289 = vpop.f32.mrf.mxu0
      %v2290 = vadd.f32 %v2064, %v2289
      %v2291 = vpop.f32.mrf.mxu0
      %v2292 = vadd.f32 %v2068, %v2291
      %2293 = vmatprep.mubr.bf16.mxu0 %v2018
      %2294 = vmatmul.mubr.bf16.gmra.mxu0 %v2017
      %v2295 = vpop.f32.mrf.mxu0
      %v2296 = vadd.f32 %v2064, %v2295
      %v2297 = vpop.f32.mrf.mxu0
      %v2298 = vadd.f32 %v2068, %v2297
      %v2299 = vpop.f32.mrf.mxu0
      %v2300 = vadd.f32 %v2064, %v2299
      %v2301 = vpop.f32.mrf.mxu0
      %v2302 = vadd.f32 %v2068, %v2301
      %2303 = vmatprep.mubr.bf16.mxu0 %v2020
      %2304 = vmatmul.mubr.bf16.gmra.mxu0 %v2019
      %v2305 = vpop.f32.mrf.mxu0
      %v2306 = vadd.f32 %v2064, %v2305
      %v2307 = vpop.f32.mrf.mxu0
      %v2308 = vadd.f32 %v2068, %v2307
      %v2309 = vpop.f32.mrf.mxu0
      %v2310 = vadd.f32 %v2064, %v2309
      %v2311 = vpop.f32.mrf.mxu0
      %v2312 = vadd.f32 %v2068, %v2311
      %2313 = vmatprep.mubr.bf16.mxu0 %v2022
      %2314 = vmatmul.mubr.bf16.gmra.mxu0 %v2021
      %v2315 = vpop.f32.mrf.mxu0
      %v2316 = vadd.f32 %v2064, %v2315
      %v2317 = vpop.f32.mrf.mxu0
      %v2318 = vadd.f32 %v2068, %v2317
      %v2319 = vpop.f32.mrf.mxu0
      %v2320 = vadd.f32 %v2064, %v2319
      %v2321 = vpop.f32.mrf.mxu0
      %v2322 = vadd.f32 %v2068, %v2321
      %2323 = vmatprep.mubr.bf16.mxu0 %v2024
      %2324 = vmatmul.mubr.bf16.gmra.mxu0 %v2023
      %v2325 = vpop.f32.mrf.mxu0
      %v2326 = vadd.f32 %v2064, %v2325
      %v2327 = vpop.f32.mrf.mxu0
      %v2328 = vadd.f32 %v2068, %v2327
      %v2329 = vpop.f32.mrf.mxu0
      %v2330 = vadd.f32 %v2064, %v2329
      %v2331 = vpop.f32.mrf.mxu0
      %v2332 = vadd.f32 %v2068, %v2331
      %2333 = vmatprep.mubr.bf16.mxu0 %v2026
      %2334 = vmatmul.mubr.bf16.gmra.mxu0 %v2025
      %v2335 = vpop.f32.mrf.mxu0
      %v2336 = vadd.f32 %v2064, %v2335
      %v2337 = vpop.f32.mrf.mxu0
      %v2338 = vadd.f32 %v2068, %v2337
      %v2339 = vpop.f32.mrf.mxu0
      %v2340 = vadd.f32 %v2064, %v2339
      %v2341 = vpop.f32.mrf.mxu0
      %v2342 = vadd.f32 %v2068, %v2341
      %2343 = vdwg.mxu0
      %v2344 = vtanh.pop %v2266
      %v2345 = vtanh.pop %v2268
      %v2346 = vtanh.pop %v2270
      %v2347 = vtanh.pop %v2272
      %v2348 = vtanh.pop %v2276
      %v2349 = vtanh.pop %v2278
      %v2350 = vtanh.pop %v2280
      %v2351 = vtanh.pop %v2282
      %v2352 = vtanh.pop %v2286
      %v2353 = vtanh.pop %v2288
      %v2354 = vtanh.pop %v2290
      %v2355 = vtanh.pop %v2292
      %v2356 = vtanh.pop %v2296
      %v2357 = vtanh.pop %v2298
      %v2358 = vtanh.pop %v2300
      %v2359 = vtanh.pop %v2302
      %v2360 = vtanh.pop %v2306
      %v2361 = vtanh.pop %v2308
      %v2362 = vtanh.pop %v2310
      %v2363 = vtanh.pop %v2312
      %v2364 = vtanh.pop %v2316
      %v2365 = vtanh.pop %v2318
      %v2366 = vtanh.pop %v2320
      %v2367 = vtanh.pop %v2322
      %v2368 = vtanh.pop %v2326
      %v2369 = vtanh.pop %v2328
      %v2370 = vtanh.pop %v2330
      %v2371 = vtanh.pop %v2332
      %v2372 = vtanh.pop %v2336
      %v2373 = vtanh.pop %v2338
      %v2374 = vtanh.pop %v2340
      %v2375 = vtanh.pop %v2342
      %v2376 = vpack.c.bf16 %v2346, %v2344
      %v2377 = vpack.c.bf16 %v2347, %v2345
      %v2378 = vpack.c.bf16 %v2350, %v2348
      %v2379 = vpack.c.bf16 %v2351, %v2349
      %v2380 = vpack.c.bf16 %v2354, %v2352
      %v2381 = vpack.c.bf16 %v2355, %v2353
      %v2382 = vpack.c.bf16 %v2358, %v2356
      %v2383 = vpack.c.bf16 %v2359, %v2357
      %v2384 = vpack.c.bf16 %v2362, %v2360
      %v2385 = vpack.c.bf16 %v2363, %v2361
      %v2386 = vpack.c.bf16 %v2366, %v2364
      %v2387 = vpack.c.bf16 %v2367, %v2365
      %v2388 = vpack.c.bf16 %v2370, %v2368
      %v2389 = vpack.c.bf16 %v2371, %v2369
      %v2390 = vpack.c.bf16 %v2374, %v2372
      %v2391 = vpack.c.bf16 %v2375, %v2373
      %v2392 = vld [vmem:[%s6] sm:$0xff]
      %v2393 = vld [vmem:[%s6 + $0x8] sm:$0xff]
      %v2394 = vld [vmem:[%s6 + $0x10] sm:$0xff]
      %v2395 = vld [vmem:[%s6 + $0x18] sm:$0xff]
      %v2396 = vld [vmem:[%s6 + $0x20] sm:$0xff]
      %v2397 = vld [vmem:[%s6 + $0x28] sm:$0xff]
      %v2398 = vld [vmem:[%s6 + $0x30] sm:$0xff]
      %v2399 = vld [vmem:[%s6 + $0x38] sm:$0xff]
      %v2400 = vld [vmem:[%s6 + $0x40] sm:$0xff]
      %v2401 = vld [vmem:[%s6 + $0x48] sm:$0xff]
      %v2402 = vld [vmem:[%s6 + $0x50] sm:$0xff]
      %v2403 = vld [vmem:[%s6 + $0x58] sm:$0xff]
      %v2404 = vld [vmem:[%s6 + $0x60] sm:$0xff]
      %v2405 = vld [vmem:[%s6 + $0x68] sm:$0xff]
      %v2406 = vld [vmem:[%s6 + $0x70] sm:$0xff]
      %v2407 = vld [vmem:[%s6 + $0x78] sm:$0xff]
      %v2408 = vld [vmem:[%s6 + $0x80] sm:$0xff]
      %v2409 = vld [vmem:[%s6 + $0x88] sm:$0xff]
      %v2410 = vld [vmem:[%s6 + $0x90] sm:$0xff]
      %v2411 = vld [vmem:[%s6 + $0x98] sm:$0xff]
      %v2412 = vld [vmem:[%s6 + $0xa0] sm:$0xff]
      %v2413 = vld [vmem:[%s6 + $0xa8] sm:$0xff]
      %v2414 = vld [vmem:[%s6 + $0xb0] sm:$0xff]
      %v2415 = vld [vmem:[%s6 + $0xb8] sm:$0xff]
      %v2416 = vld [vmem:[%s6 + $0xc0] sm:$0xff]
      %v2417 = vld [vmem:[%s6 + $0xc8] sm:$0xff]
      %v2418 = vld [vmem:[%s6 + $0xd0] sm:$0xff]
      %v2419 = vld [vmem:[%s6 + $0xd8] sm:$0xff]
      %v2420 = vld [vmem:[%s6 + $0xe0] sm:$0xff]
      %v2421 = vld [vmem:[%s6 + $0xe8] sm:$0xff]
      %v2422 = vld [vmem:[%s6 + $0xf0] sm:$0xff]
      %v2423 = vld [vmem:[%s6 + $0xf8] sm:$0xff]
      %v2424 = vld [vmem:[%s7] sm:$0x3]
      %v2426 = vlaneseq
      %v2427 = vshrl.u32 %v2426, 7
      %v2428 = vsub.s32 0, %v2427
      %v2429 = vrot.slane %v2424, %v2428
      %v2430 = vlaneseq
      %v2431 = vshrl.u32 %v2430, 7
      %v2432 = vsub.s32 1, %v2431
      %v2433 = vrot.slane %v2424, %v2432
      %v2468 = vunpack.c.l.b16 %v2392
      %v2469 = vunpack.c.h.b16 %v2392
      %v2470 = vunpack.c.l.b16 %v2393
      %v2471 = vunpack.c.h.b16 %v2393
      %v2472 = vunpack.c.l.b16 %v2394
      %v2473 = vunpack.c.h.b16 %v2394
      %v2474 = vunpack.c.l.b16 %v2395
      %v2475 = vunpack.c.h.b16 %v2395
      %v2476 = vunpack.c.l.b16 %v2396
      %v2477 = vunpack.c.h.b16 %v2396
      %v2478 = vunpack.c.l.b16 %v2397
      %v2479 = vunpack.c.h.b16 %v2397
      %v2480 = vunpack.c.l.b16 %v2398
      %v2481 = vunpack.c.h.b16 %v2398
      %v2482 = vunpack.c.l.b16 %v2399
      %v2483 = vunpack.c.h.b16 %v2399
      %v2484 = vunpack.c.l.b16 %v2400
      %v2485 = vunpack.c.h.b16 %v2400
      %v2486 = vunpack.c.l.b16 %v2401
      %v2487 = vunpack.c.h.b16 %v2401
      %v2488 = vunpack.c.l.b16 %v2402
      %v2489 = vunpack.c.h.b16 %v2402
      %v2490 = vunpack.c.l.b16 %v2403
      %v2491 = vunpack.c.h.b16 %v2403
      %v2492 = vunpack.c.l.b16 %v2404
      %v2493 = vunpack.c.h.b16 %v2404
      %v2494 = vunpack.c.l.b16 %v2405
      %v2495 = vunpack.c.h.b16 %v2405
      %v2496 = vunpack.c.l.b16 %v2406
      %v2497 = vunpack.c.h.b16 %v2406
      %v2498 = vunpack.c.l.b16 %v2407
      %v2499 = vunpack.c.h.b16 %v2407
      %v2500 = vunpack.c.l.b16 %v2408
      %v2501 = vunpack.c.h.b16 %v2408
      %v2502 = vunpack.c.l.b16 %v2409
      %v2503 = vunpack.c.h.b16 %v2409
      %v2504 = vunpack.c.l.b16 %v2410
      %v2505 = vunpack.c.h.b16 %v2410
      %v2506 = vunpack.c.l.b16 %v2411
      %v2507 = vunpack.c.h.b16 %v2411
      %v2508 = vunpack.c.l.b16 %v2412
      %v2509 = vunpack.c.h.b16 %v2412
      %v2510 = vunpack.c.l.b16 %v2413
      %v2511 = vunpack.c.h.b16 %v2413
      %v2512 = vunpack.c.l.b16 %v2414
      %v2513 = vunpack.c.h.b16 %v2414
      %v2514 = vunpack.c.l.b16 %v2415
      %v2515 = vunpack.c.h.b16 %v2415
      %v2516 = vunpack.c.l.b16 %v2416
      %v2517 = vunpack.c.h.b16 %v2416
      %v2518 = vunpack.c.l.b16 %v2417
      %v2519 = vunpack.c.h.b16 %v2417
      %v2520 = vunpack.c.l.b16 %v2418
      %v2521 = vunpack.c.h.b16 %v2418
      %v2522 = vunpack.c.l.b16 %v2419
      %v2523 = vunpack.c.h.b16 %v2419
      %v2524 = vunpack.c.l.b16 %v2420
      %v2525 = vunpack.c.h.b16 %v2420
      %v2526 = vunpack.c.l.b16 %v2421
      %v2527 = vunpack.c.h.b16 %v2421
      %v2528 = vunpack.c.l.b16 %v2422
      %v2529 = vunpack.c.h.b16 %v2422
      %v2530 = vunpack.c.l.b16 %v2423
      %v2531 = vunpack.c.h.b16 %v2423
      %v2532 = vpack.c.b16 %v2470, %v2468
      %v2533 = vpack.c.b16 %v2471, %v2469
      %v2534 = vpack.c.b16 %v2474, %v2472
      %v2535 = vpack.c.b16 %v2475, %v2473
      %v2536 = vpack.c.b16 %v2478, %v2476
      %v2537 = vpack.c.b16 %v2479, %v2477
      %v2538 = vpack.c.b16 %v2482, %v2480
      %v2539 = vpack.c.b16 %v2483, %v2481
      %v2540 = vpack.c.b16 %v2486, %v2484
      %v2541 = vpack.c.b16 %v2487, %v2485
      %v2542 = vpack.c.b16 %v2490, %v2488
      %v2543 = vpack.c.b16 %v2491, %v2489
      %v2544 = vpack.c.b16 %v2494, %v2492
      %v2545 = vpack.c.b16 %v2495, %v2493
      %v2546 = vpack.c.b16 %v2498, %v2496
      %v2547 = vpack.c.b16 %v2499, %v2497
      %v2548 = vpack.c.b16 %v2502, %v2500
      %v2549 = vpack.c.b16 %v2503, %v2501
      %v2550 = vpack.c.b16 %v2506, %v2504
      %v2551 = vpack.c.b16 %v2507, %v2505
      %v2552 = vpack.c.b16 %v2510, %v2508
      %v2553 = vpack.c.b16 %v2511, %v2509
      %v2554 = vpack.c.b16 %v2514, %v2512
      %v2555 = vpack.c.b16 %v2515, %v2513
      %v2556 = vpack.c.b16 %v2518, %v2516
      %v2557 = vpack.c.b16 %v2519, %v2517
      %v2558 = vpack.c.b16 %v2522, %v2520
      %v2559 = vpack.c.b16 %v2523, %v2521
      %v2560 = vpack.c.b16 %v2526, %v2524
      %v2561 = vpack.c.b16 %v2527, %v2525
      %v2562 = vpack.c.b16 %v2530, %v2528
      %v2563 = vpack.c.b16 %v2531, %v2529
      %2596 = vmatprep.subr.bf16.mxu0 %v2547
      %2597 = vmatpush1.bf16.msra.mxu0 %v2546
      %2598 = vmatprep.subr.bf16.mxu0 %v2545
      %2599 = vmatpush1.bf16.msra.mxu0 %v2544
      %2600 = vmatprep.subr.bf16.mxu0 %v2543
      %2601 = vmatpush1.bf16.msra.mxu0 %v2542
      %2602 = vmatprep.subr.bf16.mxu0 %v2541
      %2603 = vmatpush1.bf16.msra.mxu0 %v2540
      %2604 = vmatprep.subr.bf16.mxu0 %v2539
      %2605 = vmatpush1.bf16.msra.mxu0 %v2538
      %2606 = vmatprep.subr.bf16.mxu0 %v2537
      %2607 = vmatpush1.bf16.msra.mxu0 %v2536
      %2608 = vmatprep.subr.bf16.mxu0 %v2535
      %2609 = vmatpush1.bf16.msra.mxu0 %v2534
      %2610 = vmatprep.subr.bf16.mxu0 %v2533
      %2611 = vmatpush1.bf16.msra.mxu0 %v2532
      %2612 = vmatprep.subr.bf16.mxu0 %v2563
      %2613 = vmatpush2.bf16.msra.mxu0 %v2562
      %2614 = vmatprep.subr.bf16.mxu0 %v2561
      %2615 = vmatpush2.bf16.msra.mxu0 %v2560
      %2616 = vmatprep.subr.bf16.mxu0 %v2559
      %2617 = vmatpush2.bf16.msra.mxu0 %v2558
      %2618 = vmatprep.subr.bf16.mxu0 %v2557
      %2619 = vmatpush2.bf16.msra.mxu0 %v2556
      %2620 = vmatprep.subr.bf16.mxu0 %v2555
      %2621 = vmatpush2.bf16.msra.mxu0 %v2554
      %2622 = vmatprep.subr.bf16.mxu0 %v2553
      %2623 = vmatpush2.bf16.msra.mxu0 %v2552
      %2624 = vmatprep.subr.bf16.mxu0 %v2551
      %2625 = vmatpush2.bf16.msra.mxu0 %v2550
      %2626 = vmatprep.subr.bf16.mxu0 %v2549
      %2627 = vmatpush2.bf16.msra.mxu0 %v2548
      %2628 = vmatprep.mubr.bf16.mxu0 %v2377
      %2629 = vmatmul.mubr.bf16.gmra.mxu0 %v2376
      %v2630 = vpop.f32.mrf.mxu0
      %v2631 = vadd.f32 %v2429, %v2630
      %v2632 = vpop.f32.mrf.mxu0
      %v2633 = vadd.f32 %v2433, %v2632
      %v2634 = vpop.f32.mrf.mxu0
      %v2635 = vadd.f32 %v2429, %v2634
      %v2636 = vpop.f32.mrf.mxu0
      %v2637 = vadd.f32 %v2433, %v2636
      %2638 = vmatprep.mubr.bf16.mxu0 %v2379
      %2639 = vmatmul.mubr.bf16.gmra.mxu0 %v2378
      %v2640 = vpop.f32.mrf.mxu0
      %v2641 = vadd.f32 %v2429, %v2640
      %v2642 = vpop.f32.mrf.mxu0
      %v2643 = vadd.f32 %v2433, %v2642
      %v2644 = vpop.f32.mrf.mxu0
      %v2645 = vadd.f32 %v2429, %v2644
      %v2646 = vpop.f32.mrf.mxu0
      %v2647 = vadd.f32 %v2433, %v2646
      %2648 = vmatprep.mubr.bf16.mxu0 %v2381
      %2649 = vmatmul.mubr.bf16.gmra.mxu0 %v2380
      %v2650 = vpop.f32.mrf.mxu0
      %v2651 = vadd.f32 %v2429, %v2650
      %v2652 = vpop.f32.mrf.mxu0
      %v2653 = vadd.f32 %v2433, %v2652
      %v2654 = vpop.f32.mrf.mxu0
      %v2655 = vadd.f32 %v2429, %v2654
      %v2656 = vpop.f32.mrf.mxu0
      %v2657 = vadd.f32 %v2433, %v2656
      %2658 = vmatprep.mubr.bf16.mxu0 %v2383
      %2659 = vmatmul.mubr.bf16.gmra.mxu0 %v2382
      %v2660 = vpop.f32.mrf.mxu0
      %v2661 = vadd.f32 %v2429, %v2660
      %v2662 = vpop.f32.mrf.mxu0
      %v2663 = vadd.f32 %v2433, %v2662
      %v2664 = vpop.f32.mrf.mxu0
      %v2665 = vadd.f32 %v2429, %v2664
      %v2666 = vpop.f32.mrf.mxu0
      %v2667 = vadd.f32 %v2433, %v2666
      %2668 = vmatprep.mubr.bf16.mxu0 %v2385
      %2669 = vmatmul.mubr.bf16.gmra.mxu0 %v2384
      %v2670 = vpop.f32.mrf.mxu0
      %v2671 = vadd.f32 %v2429, %v2670
      %v2672 = vpop.f32.mrf.mxu0
      %v2673 = vadd.f32 %v2433, %v2672
      %v2674 = vpop.f32.mrf.mxu0
      %v2675 = vadd.f32 %v2429, %v2674
      %v2676 = vpop.f32.mrf.mxu0
      %v2677 = vadd.f32 %v2433, %v2676
      %2678 = vmatprep.mubr.bf16.mxu0 %v2387
      %2679 = vmatmul.mubr.bf16.gmra.mxu0 %v2386
      %v2680 = vpop.f32.mrf.mxu0
      %v2681 = vadd.f32 %v2429, %v2680
      %v2682 = vpop.f32.mrf.mxu0
      %v2683 = vadd.f32 %v2433, %v2682
      %v2684 = vpop.f32.mrf.mxu0
      %v2685 = vadd.f32 %v2429, %v2684
      %v2686 = vpop.f32.mrf.mxu0
      %v2687 = vadd.f32 %v2433, %v2686
      %2688 = vmatprep.mubr.bf16.mxu0 %v2389
      %2689 = vmatmul.mubr.bf16.gmra.mxu0 %v2388
      %v2690 = vpop.f32.mrf.mxu0
      %v2691 = vadd.f32 %v2429, %v2690
      %v2692 = vpop.f32.mrf.mxu0
      %v2693 = vadd.f32 %v2433, %v2692
      %v2694 = vpop.f32.mrf.mxu0
      %v2695 = vadd.f32 %v2429, %v2694
      %v2696 = vpop.f32.mrf.mxu0
      %v2697 = vadd.f32 %v2433, %v2696
      %2698 = vmatprep.mubr.bf16.mxu0 %v2391
      %2699 = vmatmul.mubr.bf16.gmra.mxu0 %v2390
      %v2700 = vpop.f32.mrf.mxu0
      %v2701 = vadd.f32 %v2429, %v2700
      %v2702 = vpop.f32.mrf.mxu0
      %v2703 = vadd.f32 %v2433, %v2702
      %v2704 = vpop.f32.mrf.mxu0
      %v2705 = vadd.f32 %v2429, %v2704
      %v2706 = vpop.f32.mrf.mxu0
      %v2707 = vadd.f32 %v2433, %v2706
      %2708 = vdwg.mxu0
      %2709 = vst [vmem:[%s539] sm:$0xff] %v2631
      %2710 = vst [vmem:[%s539 + $0x8] sm:$0xff] %v2633
      %2711 = vst [vmem:[%s539 + $0x10] sm:$0xff] %v2635
      %2712 = vst [vmem:[%s539 + $0x18] sm:$0xff] %v2637
      %2713 = vst [vmem:[%s539 + $0x20] sm:$0xff] %v2641
      %2714 = vst [vmem:[%s539 + $0x28] sm:$0xff] %v2643
      %2715 = vst [vmem:[%s539 + $0x30] sm:$0xff] %v2645
      %2716 = vst [vmem:[%s539 + $0x38] sm:$0xff] %v2647
      %2717 = vst [vmem:[%s539 + $0x40] sm:$0xff] %v2651
      %2718 = vst [vmem:[%s539 + $0x48] sm:$0xff] %v2653
      %2719 = vst [vmem:[%s539 + $0x50] sm:$0xff] %v2655
      %2720 = vst [vmem:[%s539 + $0x58] sm:$0xff] %v2657
      %2721 = vst [vmem:[%s539 + $0x60] sm:$0xff] %v2661
      %2722 = vst [vmem:[%s539 + $0x68] sm:$0xff] %v2663
      %2723 = vst [vmem:[%s539 + $0x70] sm:$0xff] %v2665
      %2724 = vst [vmem:[%s539 + $0x78] sm:$0xff] %v2667
      %2725 = vst [vmem:[%s539 + $0x80] sm:$0xff] %v2671
      %2726 = vst [vmem:[%s539 + $0x88] sm:$0xff] %v2673
      %2727 = vst [vmem:[%s539 + $0x90] sm:$0xff] %v2675
      %2728 = vst [vmem:[%s539 + $0x98] sm:$0xff] %v2677
      %2729 = vst [vmem:[%s539 + $0xa0] sm:$0xff] %v2681
      %2730 = vst [vmem:[%s539 + $0xa8] sm:$0xff] %v2683
      %2731 = vst [vmem:[%s539 + $0xb0] sm:$0xff] %v2685
      %2732 = vst [vmem:[%s539 + $0xb8] sm:$0xff] %v2687
      %2733 = vst [vmem:[%s539 + $0xc0] sm:$0xff] %v2691
      %2734 = vst [vmem:[%s539 + $0xc8] sm:$0xff] %v2693
      %2735 = vst [vmem:[%s539 + $0xd0] sm:$0xff] %v2695
      %2736 = vst [vmem:[%s539 + $0xd8] sm:$0xff] %v2697
      %2737 = vst [vmem:[%s539 + $0xe0] sm:$0xff] %v2701
      %2738 = vst [vmem:[%s539 + $0xe8] sm:$0xff] %v2703
      %2739 = vst [vmem:[%s539 + $0xf0] sm:$0xff] %v2705
      %2740 = vst [vmem:[%s539 + $0xf8] sm:$0xff] %v2707
      %v2741 = vmul.f32 %v2633, 1.442695
      %v2742 = vpow.pop %v2741
      %v2743 = vmul.f32 %v2637, 1.442695
      %v2744 = vpow.pop %v2743
      %v2745 = vmul.f32 %v2643, 1.442695
      %v2746 = vpow.pop %v2745
      %v2747 = vmul.f32 %v2647, 1.442695
      %v2748 = vpow.pop %v2747
      %v2749 = vmul.f32 %v2653, 1.442695
      %v2750 = vpow.pop %v2749
      %v2751 = vmul.f32 %v2657, 1.442695
      %v2752 = vpow.pop %v2751
      %v2753 = vmul.f32 %v2663, 1.442695
      %v2754 = vpow.pop %v2753
      %v2755 = vmul.f32 %v2667, 1.442695
      %v2756 = vpow.pop %v2755
      %v2757 = vmul.f32 %v2673, 1.442695
      %v2758 = vpow.pop %v2757
      %v2759 = vmul.f32 %v2677, 1.442695
      %v2760 = vpow.pop %v2759
      %v2761 = vmul.f32 %v2683, 1.442695
      %v2762 = vpow.pop %v2761
      %v2763 = vmul.f32 %v2687, 1.442695
      %v2764 = vpow.pop %v2763
      %v2765 = vmul.f32 %v2693, 1.442695
      %v2766 = vpow.pop %v2765
      %v2767 = vmul.f32 %v2697, 1.442695
      %v2768 = vpow.pop %v2767
      %v2769 = vmul.f32 %v2703, 1.442695
      %v2770 = vpow.pop %v2769
      %v2771 = vmul.f32 %v2707, 1.442695
      %v2772 = vpow.pop %v2771
      %v2773 = vmul.f32 %v606, %v2742
      %v2774 = vmul.f32 %v607, %v2744
      %v2775 = vmul.f32 %v608, %v2746
      %v2776 = vmul.f32 %v609, %v2748
      %v2777 = vmul.f32 %v610, %v2750
      %v2778 = vmul.f32 %v611, %v2752
      %v2779 = vmul.f32 %v612, %v2754
      %v2780 = vmul.f32 %v613, %v2756
      %v2781 = vmul.f32 %v614, %v2758
      %v2782 = vmul.f32 %v615, %v2760
      %v2783 = vmul.f32 %v616, %v2762
      %v2784 = vmul.f32 %v617, %v2764
      %v2785 = vmul.f32 %v618, %v2766
      %v2786 = vmul.f32 %v619, %v2768
      %v2787 = vmul.f32 %v620, %v2770
      %v2788 = vmul.f32 %v621, %v2772
      %v2789 = vadd.f32 %v2631, %v2773
      %v2790 = vadd.f32 %v2635, %v2774
      %v2791 = vadd.f32 %v2641, %v2775
      %v2792 = vadd.f32 %v2645, %v2776
      %v2793 = vadd.f32 %v2651, %v2777
      %v2794 = vadd.f32 %v2655, %v2778
      %v2795 = vadd.f32 %v2661, %v2779
      %v2796 = vadd.f32 %v2665, %v2780
      %v2797 = vadd.f32 %v2671, %v2781
      %v2798 = vadd.f32 %v2675, %v2782
      %v2799 = vadd.f32 %v2681, %v2783
      %v2800 = vadd.f32 %v2685, %v2784
      %v2801 = vadd.f32 %v2691, %v2785
      %v2802 = vadd.f32 %v2695, %v2786
      %v2803 = vadd.f32 %v2701, %v2787
      %v2804 = vadd.f32 %v2705, %v2788
      %v2805 = vpack.c.bf16 %v2790, %v2789
      %v2806 = vpack.c.bf16 %v2792, %v2791
      %v2807 = vpack.c.bf16 %v2794, %v2793
      %v2808 = vpack.c.bf16 %v2796, %v2795
      %v2809 = vpack.c.bf16 %v2798, %v2797
      %v2810 = vpack.c.bf16 %v2800, %v2799
      %v2811 = vpack.c.bf16 %v2802, %v2801
      %v2812 = vpack.c.bf16 %v2804, %v2803
      %v2813 = vld [vmem:[%s8] sm:$0xff]
      %v2814 = vld [vmem:[%s8 + $0x8] sm:$0xff]
      %v2815 = vld [vmem:[%s8 + $0x10] sm:$0xff]
      %v2816 = vld [vmem:[%s8 + $0x18] sm:$0xff]
      %v2817 = vld [vmem:[%s8 + $0x20] sm:$0xff]
      %v2818 = vld [vmem:[%s8 + $0x28] sm:$0xff]
      %v2819 = vld [vmem:[%s8 + $0x30] sm:$0xff]
      %v2820 = vld [vmem:[%s8 + $0x38] sm:$0xff]
      %v2821 = vld [vmem:[%s8 + $0x40] sm:$0xff]
      %v2822 = vld [vmem:[%s8 + $0x48] sm:$0xff]
      %v2823 = vld [vmem:[%s8 + $0x50] sm:$0xff]
      %v2824 = vld [vmem:[%s8 + $0x58] sm:$0xff]
      %v2825 = vld [vmem:[%s8 + $0x60] sm:$0xff]
      %v2826 = vld [vmem:[%s8 + $0x68] sm:$0xff]
      %v2827 = vld [vmem:[%s8 + $0x70] sm:$0xff]
      %v2828 = vld [vmem:[%s8 + $0x78] sm:$0xff]
      %v2829 = vld [vmem:[%s9] sm:$0x3]
      %v2831 = vlaneseq
      %v2832 = vshrl.u32 %v2831, 7
      %v2833 = vsub.s32 0, %v2832
      %v2834 = vrot.slane %v2829, %v2833
      %v2835 = vlaneseq
      %v2836 = vshrl.u32 %v2835, 7
      %v2837 = vsub.s32 1, %v2836
      %v2838 = vrot.slane %v2829, %v2837
      %v2857 = vunpack.c.l.b16 %v2813
      %v2858 = vunpack.c.h.b16 %v2813
      %v2859 = vunpack.c.l.b16 %v2814
      %v2860 = vunpack.c.h.b16 %v2814
      %v2861 = vunpack.c.l.b16 %v2815
      %v2862 = vunpack.c.h.b16 %v2815
      %v2863 = vunpack.c.l.b16 %v2816
      %v2864 = vunpack.c.h.b16 %v2816
      %v2865 = vunpack.c.l.b16 %v2817
      %v2866 = vunpack.c.h.b16 %v2817
      %v2867 = vunpack.c.l.b16 %v2818
      %v2868 = vunpack.c.h.b16 %v2818
      %v2869 = vunpack.c.l.b16 %v2819
      %v2870 = vunpack.c.h.b16 %v2819
      %v2871 = vunpack.c.l.b16 %v2820
      %v2872 = vunpack.c.h.b16 %v2820
      %v2873 = vunpack.c.l.b16 %v2821
      %v2874 = vunpack.c.h.b16 %v2821
      %v2875 = vunpack.c.l.b16 %v2822
      %v2876 = vunpack.c.h.b16 %v2822
      %v2877 = vunpack.c.l.b16 %v2823
      %v2878 = vunpack.c.h.b16 %v2823
      %v2879 = vunpack.c.l.b16 %v2824
      %v2880 = vunpack.c.h.b16 %v2824
      %v2881 = vunpack.c.l.b16 %v2825
      %v2882 = vunpack.c.h.b16 %v2825
      %v2883 = vunpack.c.l.b16 %v2826
      %v2884 = vunpack.c.h.b16 %v2826
      %v2885 = vunpack.c.l.b16 %v2827
      %v2886 = vunpack.c.h.b16 %v2827
      %v2887 = vunpack.c.l.b16 %v2828
      %v2888 = vunpack.c.h.b16 %v2828
      %v2889 = vpack.c.b16 %v2859, %v2857
      %v2890 = vpack.c.b16 %v2860, %v2858
      %v2891 = vpack.c.b16 %v2863, %v2861
      %v2892 = vpack.c.b16 %v2864, %v2862
      %v2893 = vpack.c.b16 %v2867, %v2865
      %v2894 = vpack.c.b16 %v2868, %v2866
      %v2895 = vpack.c.b16 %v2871, %v2869
      %v2896 = vpack.c.b16 %v2872, %v2870
      %v2897 = vpack.c.b16 %v2875, %v2873
      %v2898 = vpack.c.b16 %v2876, %v2874
      %v2899 = vpack.c.b16 %v2879, %v2877
      %v2900 = vpack.c.b16 %v2880, %v2878
      %v2901 = vpack.c.b16 %v2883, %v2881
      %v2902 = vpack.c.b16 %v2884, %v2882
      %v2903 = vpack.c.b16 %v2887, %v2885
      %v2904 = vpack.c.b16 %v2888, %v2886
      %2921 = vmatprep.subr.bf16.mxu0 %v2904
      %2922 = vmatpush1.bf16.msra.mxu0 %v2903
      %2923 = vmatprep.subr.bf16.mxu0 %v2902
      %2924 = vmatpush1.bf16.msra.mxu0 %v2901
      %2925 = vmatprep.subr.bf16.mxu0 %v2900
      %2926 = vmatpush1.bf16.msra.mxu0 %v2899
      %2927 = vmatprep.subr.bf16.mxu0 %v2898
      %2928 = vmatpush1.bf16.msra.mxu0 %v2897
      %2929 = vmatprep.subr.bf16.mxu0 %v2896
      %2930 = vmatpush1.bf16.msra.mxu0 %v2895
      %2931 = vmatprep.subr.bf16.mxu0 %v2894
      %2932 = vmatpush1.bf16.msra.mxu0 %v2893
      %2933 = vmatprep.subr.bf16.mxu0 %v2892
      %2934 = vmatpush1.bf16.msra.mxu0 %v2891
      %2935 = vmatprep.subr.bf16.mxu0 %v2890
      %2936 = vmatpush1.bf16.msra.mxu0 %v2889
      %2937 = vmatprep.subr.bf16.mxu0 0
      %2938 = vmatpush2.bf16.msra.mxu0 0
      %2939 = vmatprep.subr.bf16.mxu0 0
      %2940 = vmatpush2.bf16.msra.mxu0 0
      %2941 = vmatprep.subr.bf16.mxu0 0
      %2942 = vmatpush2.bf16.msra.mxu0 0
      %2943 = vmatprep.subr.bf16.mxu0 0
      %2944 = vmatpush2.bf16.msra.mxu0 0
      %2945 = vmatprep.subr.bf16.mxu0 0
      %2946 = vmatpush2.bf16.msra.mxu0 0
      %2947 = vmatprep.subr.bf16.mxu0 0
      %2948 = vmatpush2.bf16.msra.mxu0 0
      %2949 = vmatprep.subr.bf16.mxu0 0
      %2950 = vmatpush2.bf16.msra.mxu0 0
      %2951 = vmatprep.subr.bf16.mxu0 0
      %2952 = vmatpush2.bf16.msra.mxu0 0
      %2953 = vmatprep.mubr.bf16.mxu0 0
      %2954 = vmatmul.mubr.bf16.gmra.mxu0 %v2805
      %v2955 = vpop.f32.mrf.mxu0
      %v2956 = vadd.f32 %v2834, %v2955
      %v2957 = vpop.f32.mrf.mxu0
      %v2958 = vadd.f32 %v2838, %v2957
      %v2959 = vpop.f32.mrf.mxu0
      %v2960 = vadd.f32 %v2834, %v2959
      %v2961 = vpop.f32.mrf.mxu0
      %v2962 = vadd.f32 %v2838, %v2961
      %2963 = vmatprep.mubr.bf16.mxu0 0
      %2964 = vmatmul.mubr.bf16.gmra.mxu0 %v2806
      %v2965 = vpop.f32.mrf.mxu0
      %v2966 = vadd.f32 %v2834, %v2965
      %v2967 = vpop.f32.mrf.mxu0
      %v2968 = vadd.f32 %v2838, %v2967
      %v2969 = vpop.f32.mrf.mxu0
      %v2970 = vadd.f32 %v2834, %v2969
      %v2971 = vpop.f32.mrf.mxu0
      %v2972 = vadd.f32 %v2838, %v2971
      %2973 = vmatprep.mubr.bf16.mxu0 0
      %2974 = vmatmul.mubr.bf16.gmra.mxu0 %v2807
      %v2975 = vpop.f32.mrf.mxu0
      %v2976 = vadd.f32 %v2834, %v2975
      %v2977 = vpop.f32.mrf.mxu0
      %v2978 = vadd.f32 %v2838, %v2977
      %v2979 = vpop.f32.mrf.mxu0
      %v2980 = vadd.f32 %v2834, %v2979
      %v2981 = vpop.f32.mrf.mxu0
      %v2982 = vadd.f32 %v2838, %v2981
      %2983 = vmatprep.mubr.bf16.mxu0 0
      %2984 = vmatmul.mubr.bf16.gmra.mxu0 %v2808
      %v2985 = vpop.f32.mrf.mxu0
      %v2986 = vadd.f32 %v2834, %v2985
      %v2987 = vpop.f32.mrf.mxu0
      %v2988 = vadd.f32 %v2838, %v2987
      %v2989 = vpop.f32.mrf.mxu0
      %v2990 = vadd.f32 %v2834, %v2989
      %v2991 = vpop.f32.mrf.mxu0
      %v2992 = vadd.f32 %v2838, %v2991
      %2993 = vmatprep.mubr.bf16.mxu0 0
      %2994 = vmatmul.mubr.bf16.gmra.mxu0 %v2809
      %v2995 = vpop.f32.mrf.mxu0
      %v2996 = vadd.f32 %v2834, %v2995
      %v2997 = vpop.f32.mrf.mxu0
      %v2998 = vadd.f32 %v2838, %v2997
      %v2999 = vpop.f32.mrf.mxu0
      %v3000 = vadd.f32 %v2834, %v2999
      %v3001 = vpop.f32.mrf.mxu0
      %v3002 = vadd.f32 %v2838, %v3001
      %3003 = vmatprep.mubr.bf16.mxu0 0
      %3004 = vmatmul.mubr.bf16.gmra.mxu0 %v2810
      %v3005 = vpop.f32.mrf.mxu0
      %v3006 = vadd.f32 %v2834, %v3005
      %v3007 = vpop.f32.mrf.mxu0
      %v3008 = vadd.f32 %v2838, %v3007
      %v3009 = vpop.f32.mrf.mxu0
      %v3010 = vadd.f32 %v2834, %v3009
      %v3011 = vpop.f32.mrf.mxu0
      %v3012 = vadd.f32 %v2838, %v3011
      %3013 = vmatprep.mubr.bf16.mxu0 0
      %3014 = vmatmul.mubr.bf16.gmra.mxu0 %v2811
      %v3015 = vpop.f32.mrf.mxu0
      %v3016 = vadd.f32 %v2834, %v3015
      %v3017 = vpop.f32.mrf.mxu0
      %v3018 = vadd.f32 %v2838, %v3017
      %v3019 = vpop.f32.mrf.mxu0
      %v3020 = vadd.f32 %v2834, %v3019
      %v3021 = vpop.f32.mrf.mxu0
      %v3022 = vadd.f32 %v2838, %v3021
      %3023 = vmatprep.mubr.bf16.mxu0 0
      %3024 = vmatmul.mubr.bf16.gmra.mxu0 %v2812
      %v3025 = vpop.f32.mrf.mxu0
      %v3026 = vadd.f32 %v2834, %v3025
      %v3027 = vpop.f32.mrf.mxu0
      %v3028 = vadd.f32 %v2838, %v3027
      %v3029 = vpop.f32.mrf.mxu0
      %v3030 = vadd.f32 %v2834, %v3029
      %v3031 = vpop.f32.mrf.mxu0
      %v3032 = vadd.f32 %v2838, %v3031
      %3033 = vdwg.mxu0
      %v3034 = vtanh.pop %v2956
      %v3035 = vtanh.pop %v2958
      %v3036 = vtanh.pop %v2960
      %v3037 = vtanh.pop %v2962
      %v3038 = vtanh.pop %v2966
      %v3039 = vtanh.pop %v2968
      %v3040 = vtanh.pop %v2970
      %v3041 = vtanh.pop %v2972
      %v3042 = vtanh.pop %v2976
      %v3043 = vtanh.pop %v2978
      %v3044 = vtanh.pop %v2980
      %v3045 = vtanh.pop %v2982
      %v3046 = vtanh.pop %v2986
      %v3047 = vtanh.pop %v2988
      %v3048 = vtanh.pop %v2990
      %v3049 = vtanh.pop %v2992
      %v3050 = vtanh.pop %v2996
      %v3051 = vtanh.pop %v2998
      %v3052 = vtanh.pop %v3000
      %v3053 = vtanh.pop %v3002
      %v3054 = vtanh.pop %v3006
      %v3055 = vtanh.pop %v3008
      %v3056 = vtanh.pop %v3010
      %v3057 = vtanh.pop %v3012
      %v3058 = vtanh.pop %v3016
      %v3059 = vtanh.pop %v3018
      %v3060 = vtanh.pop %v3020
      %v3061 = vtanh.pop %v3022
      %v3062 = vtanh.pop %v3026
      %v3063 = vtanh.pop %v3028
      %v3064 = vtanh.pop %v3030
      %v3065 = vtanh.pop %v3032
      %v3066 = vpack.c.bf16 %v3036, %v3034
      %v3067 = vpack.c.bf16 %v3037, %v3035
      %v3068 = vpack.c.bf16 %v3040, %v3038
      %v3069 = vpack.c.bf16 %v3041, %v3039
      %v3070 = vpack.c.bf16 %v3044, %v3042
      %v3071 = vpack.c.bf16 %v3045, %v3043
      %v3072 = vpack.c.bf16 %v3048, %v3046
      %v3073 = vpack.c.bf16 %v3049, %v3047
      %v3074 = vpack.c.bf16 %v3052, %v3050
      %v3075 = vpack.c.bf16 %v3053, %v3051
      %v3076 = vpack.c.bf16 %v3056, %v3054
      %v3077 = vpack.c.bf16 %v3057, %v3055
      %v3078 = vpack.c.bf16 %v3060, %v3058
      %v3079 = vpack.c.bf16 %v3061, %v3059
      %v3080 = vpack.c.bf16 %v3064, %v3062
      %v3081 = vpack.c.bf16 %v3065, %v3063
      %v3082 = vld [vmem:[%s10] sm:$0xff]
      %v3083 = vld [vmem:[%s10 + $0x8] sm:$0xff]
      %v3084 = vld [vmem:[%s10 + $0x10] sm:$0xff]
      %v3085 = vld [vmem:[%s10 + $0x18] sm:$0xff]
      %v3086 = vld [vmem:[%s10 + $0x20] sm:$0xff]
      %v3087 = vld [vmem:[%s10 + $0x28] sm:$0xff]
      %v3088 = vld [vmem:[%s10 + $0x30] sm:$0xff]
      %v3089 = vld [vmem:[%s10 + $0x38] sm:$0xff]
      %v3090 = vld [vmem:[%s10 + $0x40] sm:$0xff]
      %v3091 = vld [vmem:[%s10 + $0x48] sm:$0xff]
      %v3092 = vld [vmem:[%s10 + $0x50] sm:$0xff]
      %v3093 = vld [vmem:[%s10 + $0x58] sm:$0xff]
      %v3094 = vld [vmem:[%s10 + $0x60] sm:$0xff]
      %v3095 = vld [vmem:[%s10 + $0x68] sm:$0xff]
      %v3096 = vld [vmem:[%s10 + $0x70] sm:$0xff]
      %v3097 = vld [vmem:[%s10 + $0x78] sm:$0xff]
      %v3098 = vld [vmem:[%s10 + $0x80] sm:$0xff]
      %v3099 = vld [vmem:[%s10 + $0x88] sm:$0xff]
      %v3100 = vld [vmem:[%s10 + $0x90] sm:$0xff]
      %v3101 = vld [vmem:[%s10 + $0x98] sm:$0xff]
      %v3102 = vld [vmem:[%s10 + $0xa0] sm:$0xff]
      %v3103 = vld [vmem:[%s10 + $0xa8] sm:$0xff]
      %v3104 = vld [vmem:[%s10 + $0xb0] sm:$0xff]
      %v3105 = vld [vmem:[%s10 + $0xb8] sm:$0xff]
      %v3106 = vld [vmem:[%s10 + $0xc0] sm:$0xff]
      %v3107 = vld [vmem:[%s10 + $0xc8] sm:$0xff]
      %v3108 = vld [vmem:[%s10 + $0xd0] sm:$0xff]
      %v3109 = vld [vmem:[%s10 + $0xd8] sm:$0xff]
      %v3110 = vld [vmem:[%s10 + $0xe0] sm:$0xff]
      %v3111 = vld [vmem:[%s10 + $0xe8] sm:$0xff]
      %v3112 = vld [vmem:[%s10 + $0xf0] sm:$0xff]
      %v3113 = vld [vmem:[%s10 + $0xf8] sm:$0xff]
      %v3114 = vld [vmem:[%s11] sm:$0x3]
      %v3116 = vlaneseq
      %v3117 = vshrl.u32 %v3116, 7
      %v3118 = vsub.s32 0, %v3117
      %v3119 = vrot.slane %v3114, %v3118
      %v3120 = vlaneseq
      %v3121 = vshrl.u32 %v3120, 7
      %v3122 = vsub.s32 1, %v3121
      %v3123 = vrot.slane %v3114, %v3122
      %v3158 = vunpack.c.l.b16 %v3082
      %v3159 = vunpack.c.h.b16 %v3082
      %v3160 = vunpack.c.l.b16 %v3083
      %v3161 = vunpack.c.h.b16 %v3083
      %v3162 = vunpack.c.l.b16 %v3084
      %v3163 = vunpack.c.h.b16 %v3084
      %v3164 = vunpack.c.l.b16 %v3085
      %v3165 = vunpack.c.h.b16 %v3085
      %v3166 = vunpack.c.l.b16 %v3086
      %v3167 = vunpack.c.h.b16 %v3086
      %v3168 = vunpack.c.l.b16 %v3087
      %v3169 = vunpack.c.h.b16 %v3087
      %v3170 = vunpack.c.l.b16 %v3088
      %v3171 = vunpack.c.h.b16 %v3088
      %v3172 = vunpack.c.l.b16 %v3089
      %v3173 = vunpack.c.h.b16 %v3089
      %v3174 = vunpack.c.l.b16 %v3090
      %v3175 = vunpack.c.h.b16 %v3090
      %v3176 = vunpack.c.l.b16 %v3091
      %v3177 = vunpack.c.h.b16 %v3091
      %v3178 = vunpack.c.l.b16 %v3092
      %v3179 = vunpack.c.h.b16 %v3092
      %v3180 = vunpack.c.l.b16 %v3093
      %v3181 = vunpack.c.h.b16 %v3093
      %v3182 = vunpack.c.l.b16 %v3094
      %v3183 = vunpack.c.h.b16 %v3094
      %v3184 = vunpack.c.l.b16 %v3095
      %v3185 = vunpack.c.h.b16 %v3095
      %v3186 = vunpack.c.l.b16 %v3096
      %v3187 = vunpack.c.h.b16 %v3096
      %v3188 = vunpack.c.l.b16 %v3097
      %v3189 = vunpack.c.h.b16 %v3097
      %v3190 = vunpack.c.l.b16 %v3098
      %v3191 = vunpack.c.h.b16 %v3098
      %v3192 = vunpack.c.l.b16 %v3099
      %v3193 = vunpack.c.h.b16 %v3099
      %v3194 = vunpack.c.l.b16 %v3100
      %v3195 = vunpack.c.h.b16 %v3100
      %v3196 = vunpack.c.l.b16 %v3101
      %v3197 = vunpack.c.h.b16 %v3101
      %v3198 = vunpack.c.l.b16 %v3102
      %v3199 = vunpack.c.h.b16 %v3102
      %v3200 = vunpack.c.l.b16 %v3103
      %v3201 = vunpack.c.h.b16 %v3103
      %v3202 = vunpack.c.l.b16 %v3104
      %v3203 = vunpack.c.h.b16 %v3104
      %v3204 = vunpack.c.l.b16 %v3105
      %v3205 = vunpack.c.h.b16 %v3105
      %v3206 = vunpack.c.l.b16 %v3106
      %v3207 = vunpack.c.h.b16 %v3106
      %v3208 = vunpack.c.l.b16 %v3107
      %v3209 = vunpack.c.h.b16 %v3107
      %v3210 = vunpack.c.l.b16 %v3108
      %v3211 = vunpack.c.h.b16 %v3108
      %v3212 = vunpack.c.l.b16 %v3109
      %v3213 = vunpack.c.h.b16 %v3109
      %v3214 = vunpack.c.l.b16 %v3110
      %v3215 = vunpack.c.h.b16 %v3110
      %v3216 = vunpack.c.l.b16 %v3111
      %v3217 = vunpack.c.h.b16 %v3111
      %v3218 = vunpack.c.l.b16 %v3112
      %v3219 = vunpack.c.h.b16 %v3112
      %v3220 = vunpack.c.l.b16 %v3113
      %v3221 = vunpack.c.h.b16 %v3113
      %v3222 = vpack.c.b16 %v3160, %v3158
      %v3223 = vpack.c.b16 %v3161, %v3159
      %v3224 = vpack.c.b16 %v3164, %v3162
      %v3225 = vpack.c.b16 %v3165, %v3163
      %v3226 = vpack.c.b16 %v3168, %v3166
      %v3227 = vpack.c.b16 %v3169, %v3167
      %v3228 = vpack.c.b16 %v3172, %v3170
      %v3229 = vpack.c.b16 %v3173, %v3171
      %v3230 = vpack.c.b16 %v3176, %v3174
      %v3231 = vpack.c.b16 %v3177, %v3175
      %v3232 = vpack.c.b16 %v3180, %v3178
      %v3233 = vpack.c.b16 %v3181, %v3179
      %v3234 = vpack.c.b16 %v3184, %v3182
      %v3235 = vpack.c.b16 %v3185, %v3183
      %v3236 = vpack.c.b16 %v3188, %v3186
      %v3237 = vpack.c.b16 %v3189, %v3187
      %v3238 = vpack.c.b16 %v3192, %v3190
      %v3239 = vpack.c.b16 %v3193, %v3191
      %v3240 = vpack.c.b16 %v3196, %v3194
      %v3241 = vpack.c.b16 %v3197, %v3195
      %v3242 = vpack.c.b16 %v3200, %v3198
      %v3243 = vpack.c.b16 %v3201, %v3199
      %v3244 = vpack.c.b16 %v3204, %v3202
      %v3245 = vpack.c.b16 %v3205, %v3203
      %v3246 = vpack.c.b16 %v3208, %v3206
      %v3247 = vpack.c.b16 %v3209, %v3207
      %v3248 = vpack.c.b16 %v3212, %v3210
      %v3249 = vpack.c.b16 %v3213, %v3211
      %v3250 = vpack.c.b16 %v3216, %v3214
      %v3251 = vpack.c.b16 %v3217, %v3215
      %v3252 = vpack.c.b16 %v3220, %v3218
      %v3253 = vpack.c.b16 %v3221, %v3219
      %3286 = vmatprep.subr.bf16.mxu0 %v3237
      %3287 = vmatpush1.bf16.msra.mxu0 %v3236
      %3288 = vmatprep.subr.bf16.mxu0 %v3235
      %3289 = vmatpush1.bf16.msra.mxu0 %v3234
      %3290 = vmatprep.subr.bf16.mxu0 %v3233
      %3291 = vmatpush1.bf16.msra.mxu0 %v3232
      %3292 = vmatprep.subr.bf16.mxu0 %v3231
      %3293 = vmatpush1.bf16.msra.mxu0 %v3230
      %3294 = vmatprep.subr.bf16.mxu0 %v3229
      %3295 = vmatpush1.bf16.msra.mxu0 %v3228
      %3296 = vmatprep.subr.bf16.mxu0 %v3227
      %3297 = vmatpush1.bf16.msra.mxu0 %v3226
      %3298 = vmatprep.subr.bf16.mxu0 %v3225
      %3299 = vmatpush1.bf16.msra.mxu0 %v3224
      %3300 = vmatprep.subr.bf16.mxu0 %v3223
      %3301 = vmatpush1.bf16.msra.mxu0 %v3222
      %3302 = vmatprep.subr.bf16.mxu0 %v3253
      %3303 = vmatpush2.bf16.msra.mxu0 %v3252
      %3304 = vmatprep.subr.bf16.mxu0 %v3251
      %3305 = vmatpush2.bf16.msra.mxu0 %v3250
      %3306 = vmatprep.subr.bf16.mxu0 %v3249
      %3307 = vmatpush2.bf16.msra.mxu0 %v3248
      %3308 = vmatprep.subr.bf16.mxu0 %v3247
      %3309 = vmatpush2.bf16.msra.mxu0 %v3246
      %3310 = vmatprep.subr.bf16.mxu0 %v3245
      %3311 = vmatpush2.bf16.msra.mxu0 %v3244
      %3312 = vmatprep.subr.bf16.mxu0 %v3243
      %3313 = vmatpush2.bf16.msra.mxu0 %v3242
      %3314 = vmatprep.subr.bf16.mxu0 %v3241
      %3315 = vmatpush2.bf16.msra.mxu0 %v3240
      %3316 = vmatprep.subr.bf16.mxu0 %v3239
      %3317 = vmatpush2.bf16.msra.mxu0 %v3238
      %3318 = vmatprep.mubr.bf16.mxu0 %v3067
      %3319 = vmatmul.mubr.bf16.gmra.mxu0 %v3066
      %v3320 = vpop.f32.mrf.mxu0
      %v3321 = vadd.f32 %v3119, %v3320
      %v3322 = vpop.f32.mrf.mxu0
      %v3323 = vadd.f32 %v3123, %v3322
      %v3324 = vpop.f32.mrf.mxu0
      %v3325 = vadd.f32 %v3119, %v3324
      %v3326 = vpop.f32.mrf.mxu0
      %v3327 = vadd.f32 %v3123, %v3326
      %3328 = vmatprep.mubr.bf16.mxu0 %v3069
      %3329 = vmatmul.mubr.bf16.gmra.mxu0 %v3068
      %v3330 = vpop.f32.mrf.mxu0
      %v3331 = vadd.f32 %v3119, %v3330
      %v3332 = vpop.f32.mrf.mxu0
      %v3333 = vadd.f32 %v3123, %v3332
      %v3334 = vpop.f32.mrf.mxu0
      %v3335 = vadd.f32 %v3119, %v3334
      %v3336 = vpop.f32.mrf.mxu0
      %v3337 = vadd.f32 %v3123, %v3336
      %3338 = vmatprep.mubr.bf16.mxu0 %v3071
      %3339 = vmatmul.mubr.bf16.gmra.mxu0 %v3070
      %v3340 = vpop.f32.mrf.mxu0
      %v3341 = vadd.f32 %v3119, %v3340
      %v3342 = vpop.f32.mrf.mxu0
      %v3343 = vadd.f32 %v3123, %v3342
      %v3344 = vpop.f32.mrf.mxu0
      %v3345 = vadd.f32 %v3119, %v3344
      %v3346 = vpop.f32.mrf.mxu0
      %v3347 = vadd.f32 %v3123, %v3346
      %3348 = vmatprep.mubr.bf16.mxu0 %v3073
      %3349 = vmatmul.mubr.bf16.gmra.mxu0 %v3072
      %v3350 = vpop.f32.mrf.mxu0
      %v3351 = vadd.f32 %v3119, %v3350
      %v3352 = vpop.f32.mrf.mxu0
      %v3353 = vadd.f32 %v3123, %v3352
      %v3354 = vpop.f32.mrf.mxu0
      %v3355 = vadd.f32 %v3119, %v3354
      %v3356 = vpop.f32.mrf.mxu0
      %v3357 = vadd.f32 %v3123, %v3356
      %3358 = vmatprep.mubr.bf16.mxu0 %v3075
      %3359 = vmatmul.mubr.bf16.gmra.mxu0 %v3074
      %v3360 = vpop.f32.mrf.mxu0
      %v3361 = vadd.f32 %v3119, %v3360
      %v3362 = vpop.f32.mrf.mxu0
      %v3363 = vadd.f32 %v3123, %v3362
      %v3364 = vpop.f32.mrf.mxu0
      %v3365 = vadd.f32 %v3119, %v3364
      %v3366 = vpop.f32.mrf.mxu0
      %v3367 = vadd.f32 %v3123, %v3366
      %3368 = vmatprep.mubr.bf16.mxu0 %v3077
      %3369 = vmatmul.mubr.bf16.gmra.mxu0 %v3076
      %v3370 = vpop.f32.mrf.mxu0
      %v3371 = vadd.f32 %v3119, %v3370
      %v3372 = vpop.f32.mrf.mxu0
      %v3373 = vadd.f32 %v3123, %v3372
      %v3374 = vpop.f32.mrf.mxu0
      %v3375 = vadd.f32 %v3119, %v3374
      %v3376 = vpop.f32.mrf.mxu0
      %v3377 = vadd.f32 %v3123, %v3376
      %3378 = vmatprep.mubr.bf16.mxu0 %v3079
      %3379 = vmatmul.mubr.bf16.gmra.mxu0 %v3078
      %v3380 = vpop.f32.mrf.mxu0
      %v3381 = vadd.f32 %v3119, %v3380
      %v3382 = vpop.f32.mrf.mxu0
      %v3383 = vadd.f32 %v3123, %v3382
      %v3384 = vpop.f32.mrf.mxu0
      %v3385 = vadd.f32 %v3119, %v3384
      %v3386 = vpop.f32.mrf.mxu0
      %v3387 = vadd.f32 %v3123, %v3386
      %3388 = vmatprep.mubr.bf16.mxu0 %v3081
      %3389 = vmatmul.mubr.bf16.gmra.mxu0 %v3080
      %v3390 = vpop.f32.mrf.mxu0
      %v3391 = vadd.f32 %v3119, %v3390
      %v3392 = vpop.f32.mrf.mxu0
      %v3393 = vadd.f32 %v3123, %v3392
      %v3394 = vpop.f32.mrf.mxu0
      %v3395 = vadd.f32 %v3119, %v3394
      %v3396 = vpop.f32.mrf.mxu0
      %v3397 = vadd.f32 %v3123, %v3396
      %3398 = vdwg.mxu0
      %v3399 = vtanh.pop %v3321
      %v3400 = vtanh.pop %v3323
      %v3401 = vtanh.pop %v3325
      %v3402 = vtanh.pop %v3327
      %v3403 = vtanh.pop %v3331
      %v3404 = vtanh.pop %v3333
      %v3405 = vtanh.pop %v3335
      %v3406 = vtanh.pop %v3337
      %v3407 = vtanh.pop %v3341
      %v3408 = vtanh.pop %v3343
      %v3409 = vtanh.pop %v3345
      %v3410 = vtanh.pop %v3347
      %v3411 = vtanh.pop %v3351
      %v3412 = vtanh.pop %v3353
      %v3413 = vtanh.pop %v3355
      %v3414 = vtanh.pop %v3357
      %v3415 = vtanh.pop %v3361
      %v3416 = vtanh.pop %v3363
      %v3417 = vtanh.pop %v3365
      %v3418 = vtanh.pop %v3367
      %v3419 = vtanh.pop %v3371
      %v3420 = vtanh.pop %v3373
      %v3421 = vtanh.pop %v3375
      %v3422 = vtanh.pop %v3377
      %v3423 = vtanh.pop %v3381
      %v3424 = vtanh.pop %v3383
      %v3425 = vtanh.pop %v3385
      %v3426 = vtanh.pop %v3387
      %v3427 = vtanh.pop %v3391
      %v3428 = vtanh.pop %v3393
      %v3429 = vtanh.pop %v3395
      %v3430 = vtanh.pop %v3397
      %v3431 = vpack.c.bf16 %v3401, %v3399
      %v3432 = vpack.c.bf16 %v3402, %v3400
      %v3433 = vpack.c.bf16 %v3405, %v3403
      %v3434 = vpack.c.bf16 %v3406, %v3404
      %v3435 = vpack.c.bf16 %v3409, %v3407
      %v3436 = vpack.c.bf16 %v3410, %v3408
      %v3437 = vpack.c.bf16 %v3413, %v3411
      %v3438 = vpack.c.bf16 %v3414, %v3412
      %v3439 = vpack.c.bf16 %v3417, %v3415
      %v3440 = vpack.c.bf16 %v3418, %v3416
      %v3441 = vpack.c.bf16 %v3421, %v3419
      %v3442 = vpack.c.bf16 %v3422, %v3420
      %v3443 = vpack.c.bf16 %v3425, %v3423
      %v3444 = vpack.c.bf16 %v3426, %v3424
      %v3445 = vpack.c.bf16 %v3429, %v3427
      %v3446 = vpack.c.bf16 %v3430, %v3428
      %v3447 = vld [vmem:[%s12] sm:$0xff]
      %v3448 = vld [vmem:[%s12 + $0x8] sm:$0xff]
      %v3449 = vld [vmem:[%s12 + $0x10] sm:$0xff]
      %v3450 = vld [vmem:[%s12 + $0x18] sm:$0xf]
      %v3451 = vld [vmem:[%s12 + $0x1c] sm:$0xff]
      %v3452 = vld [vmem:[%s12 + $0x24] sm:$0xff]
      %v3453 = vld [vmem:[%s12 + $0x2c] sm:$0xff]
      %v3454 = vld [vmem:[%s12 + $0x34] sm:$0xf]
      %v3455 = vld [vmem:[%s12 + $0x38] sm:$0xff]
      %v3456 = vld [vmem:[%s12 + $0x40] sm:$0xff]
      %v3457 = vld [vmem:[%s12 + $0x48] sm:$0xff]
      %v3458 = vld [vmem:[%s12 + $0x50] sm:$0xf]
      %v3459 = vld [vmem:[%s12 + $0x54] sm:$0xff]
      %v3460 = vld [vmem:[%s12 + $0x5c] sm:$0xff]
      %v3461 = vld [vmem:[%s12 + $0x64] sm:$0xff]
      %v3462 = vld [vmem:[%s12 + $0x6c] sm:$0xf]
      %v3463 = vld [vmem:[%s12 + $0x70] sm:$0xff]
      %v3464 = vld [vmem:[%s12 + $0x78] sm:$0xff]
      %v3465 = vld [vmem:[%s12 + $0x80] sm:$0xff]
      %v3466 = vld [vmem:[%s12 + $0x88] sm:$0xf]
      %v3467 = vld [vmem:[%s12 + $0x8c] sm:$0xff]
      %v3468 = vld [vmem:[%s12 + $0x94] sm:$0xff]
      %v3469 = vld [vmem:[%s12 + $0x9c] sm:$0xff]
      %v3470 = vld [vmem:[%s12 + $0xa4] sm:$0xf]
      %v3471 = vld [vmem:[%s12 + $0xa8] sm:$0xff]
      %v3472 = vld [vmem:[%s12 + $0xb0] sm:$0xff]
      %v3473 = vld [vmem:[%s12 + $0xb8] sm:$0xff]
      %v3474 = vld [vmem:[%s12 + $0xc0] sm:$0xf]
      %v3475 = vld [vmem:[%s12 + $0xc4] sm:$0xff]
      %v3476 = vld [vmem:[%s12 + $0xcc] sm:$0xff]
      %v3477 = vld [vmem:[%s12 + $0xd4] sm:$0xff]
      %v3478 = vld [vmem:[%s12 + $0xdc] sm:$0xf]
      %v3479 = vld [vmem:[%s12 + $0xe0] sm:$0xff]
      %v3480 = vld [vmem:[%s12 + $0xe8] sm:$0xff]
      %v3481 = vld [vmem:[%s12 + $0xf0] sm:$0xff]
      %v3482 = vld [vmem:[%s12 + $0xf8] sm:$0xf]
      %v3483 = vld [vmem:[%s12 + $0xfc] sm:$0xff]
      %v3484 = vld [vmem:[%s12 + $0x104] sm:$0xff]
      %v3485 = vld [vmem:[%s12 + $0x10c] sm:$0xff]
      %v3486 = vld [vmem:[%s12 + $0x114] sm:$0xf]
      %v3487 = vld [vmem:[%s12 + $0x118] sm:$0xff]
      %v3488 = vld [vmem:[%s12 + $0x120] sm:$0xff]
      %v3489 = vld [vmem:[%s12 + $0x128] sm:$0xff]
      %v3490 = vld [vmem:[%s12 + $0x130] sm:$0xf]
      %v3491 = vld [vmem:[%s12 + $0x134] sm:$0xff]
      %v3492 = vld [vmem:[%s12 + $0x13c] sm:$0xff]
      %v3493 = vld [vmem:[%s12 + $0x144] sm:$0xff]
      %v3494 = vld [vmem:[%s12 + $0x14c] sm:$0xf]
      %v3495 = vld [vmem:[%s12 + $0x150] sm:$0xff]
      %v3496 = vld [vmem:[%s12 + $0x158] sm:$0xff]
      %v3497 = vld [vmem:[%s12 + $0x160] sm:$0xff]
      %v3498 = vld [vmem:[%s12 + $0x168] sm:$0xf]
      %v3499 = vld [vmem:[%s12 + $0x16c] sm:$0xff]
      %v3500 = vld [vmem:[%s12 + $0x174] sm:$0xff]
      %v3501 = vld [vmem:[%s12 + $0x17c] sm:$0xff]
      %v3502 = vld [vmem:[%s12 + $0x184] sm:$0xf]
      %v3503 = vld [vmem:[%s12 + $0x188] sm:$0xff]
      %v3504 = vld [vmem:[%s12 + $0x190] sm:$0xff]
      %v3505 = vld [vmem:[%s12 + $0x198] sm:$0xff]
      %v3506 = vld [vmem:[%s12 + $0x1a0] sm:$0xf]
      %v3507 = vld [vmem:[%s12 + $0x1a4] sm:$0xff]
      %v3508 = vld [vmem:[%s12 + $0x1ac] sm:$0xff]
      %v3509 = vld [vmem:[%s12 + $0x1b4] sm:$0xff]
      %v3510 = vld [vmem:[%s12 + $0x1bc] sm:$0xf]
      %v3511 = vld [vmem:[%s12 + $0x1c0] sm:$0xff]
      %v3512 = vld [vmem:[%s12 + $0x1c8] sm:$0xff]
      %v3513 = vld [vmem:[%s12 + $0x1d0] sm:$0xff]
      %v3514 = vld [vmem:[%s12 + $0x1d8] sm:$0xf]
      %v3515 = vld [vmem:[%s12 + $0x1dc] sm:$0xff]
      %v3516 = vld [vmem:[%s12 + $0x1e4] sm:$0xff]
      %v3517 = vld [vmem:[%s12 + $0x1ec] sm:$0xff]
      %v3518 = vld [vmem:[%s12 + $0x1f4] sm:$0xf]
      %v3519 = vld [vmem:[%s12 + $0x1f8] sm:$0xff]
      %v3520 = vld [vmem:[%s12 + $0x200] sm:$0xff]
      %v3521 = vld [vmem:[%s12 + $0x208] sm:$0xff]
      %v3522 = vld [vmem:[%s12 + $0x210] sm:$0xf]
      %v3523 = vld [vmem:[%s12 + $0x214] sm:$0xff]
      %v3524 = vld [vmem:[%s12 + $0x21c] sm:$0xff]
      %v3525 = vld [vmem:[%s12 + $0x224] sm:$0xff]
      %v3526 = vld [vmem:[%s12 + $0x22c] sm:$0xf]
      %v3527 = vld [vmem:[%s12 + $0x230] sm:$0xff]
      %v3528 = vld [vmem:[%s12 + $0x238] sm:$0xff]
      %v3529 = vld [vmem:[%s12 + $0x240] sm:$0xff]
      %v3530 = vld [vmem:[%s12 + $0x248] sm:$0xf]
      %v3531 = vld [vmem:[%s12 + $0x24c] sm:$0xff]
      %v3532 = vld [vmem:[%s12 + $0x254] sm:$0xff]
      %v3533 = vld [vmem:[%s12 + $0x25c] sm:$0xff]
      %v3534 = vld [vmem:[%s12 + $0x264] sm:$0xf]
      %v3535 = vld [vmem:[%s12 + $0x268] sm:$0xff]
      %v3536 = vld [vmem:[%s12 + $0x270] sm:$0xff]
      %v3537 = vld [vmem:[%s12 + $0x278] sm:$0xff]
      %v3538 = vld [vmem:[%s12 + $0x280] sm:$0xf]
      %v3539 = vld [vmem:[%s12 + $0x284] sm:$0xff]
      %v3540 = vld [vmem:[%s12 + $0x28c] sm:$0xff]
      %v3541 = vld [vmem:[%s12 + $0x294] sm:$0xff]
      %v3542 = vld [vmem:[%s12 + $0x29c] sm:$0xf]
      %v3543 = vld [vmem:[%s12 + $0x2a0] sm:$0xff]
      %v3544 = vld [vmem:[%s12 + $0x2a8] sm:$0xff]
      %v3545 = vld [vmem:[%s12 + $0x2b0] sm:$0xff]
      %v3546 = vld [vmem:[%s12 + $0x2b8] sm:$0xf]
      %v3547 = vld [vmem:[%s12 + $0x2bc] sm:$0xff]
      %v3548 = vld [vmem:[%s12 + $0x2c4] sm:$0xff]
      %v3549 = vld [vmem:[%s12 + $0x2cc] sm:$0xff]
      %v3550 = vld [vmem:[%s12 + $0x2d4] sm:$0xf]
      %v3551 = vld [vmem:[%s12 + $0x2d8] sm:$0xff]
      %v3552 = vld [vmem:[%s12 + $0x2e0] sm:$0xff]
      %v3553 = vld [vmem:[%s12 + $0x2e8] sm:$0xff]
      %v3554 = vld [vmem:[%s12 + $0x2f0] sm:$0xf]
      %v3555 = vld [vmem:[%s12 + $0x2f4] sm:$0xff]
      %v3556 = vld [vmem:[%s12 + $0x2fc] sm:$0xff]
      %v3557 = vld [vmem:[%s12 + $0x304] sm:$0xff]
      %v3558 = vld [vmem:[%s12 + $0x30c] sm:$0xf]
      %v3559 = vld [vmem:[%s12 + $0x310] sm:$0xff]
      %v3560 = vld [vmem:[%s12 + $0x318] sm:$0xff]
      %v3561 = vld [vmem:[%s12 + $0x320] sm:$0xff]
      %v3562 = vld [vmem:[%s12 + $0x328] sm:$0xf]
      %v3563 = vld [vmem:[%s12 + $0x32c] sm:$0xff]
      %v3564 = vld [vmem:[%s12 + $0x334] sm:$0xff]
      %v3565 = vld [vmem:[%s12 + $0x33c] sm:$0xff]
      %v3566 = vld [vmem:[%s12 + $0x344] sm:$0xf]
      %v3567 = vld [vmem:[%s12 + $0x348] sm:$0xff]
      %v3568 = vld [vmem:[%s12 + $0x350] sm:$0xff]
      %v3569 = vld [vmem:[%s12 + $0x358] sm:$0xff]
      %v3570 = vld [vmem:[%s12 + $0x360] sm:$0xf]
      %v3571 = vld [vmem:[%s12 + $0x364] sm:$0xff]
      %v3572 = vld [vmem:[%s12 + $0x36c] sm:$0xff]
      %v3573 = vld [vmem:[%s12 + $0x374] sm:$0xff]
      %v3574 = vld [vmem:[%s12 + $0x37c] sm:$0xf]
      %v3575 = vld [vmem:[%s13] sm:$0xff]
      %v3577 = vlaneseq
      %v3578 = vshrl.u32 %v3577, 7
      %v3579 = vsub.s32 0, %v3578
      %v3580 = vrot.slane %v3575, %v3579
      %v3581 = vlaneseq
      %v3582 = vshrl.u32 %v3581, 7
      %v3583 = vsub.s32 1, %v3582
      %v3584 = vrot.slane %v3575, %v3583
      %v3585 = vlaneseq
      %v3586 = vshrl.u32 %v3585, 7
      %v3587 = vsub.s32 2, %v3586
      %v3588 = vrot.slane %v3575, %v3587
      %v3589 = vlaneseq
      %v3590 = vshrl.u32 %v3589, 7
      %v3591 = vsub.s32 3, %v3590
      %v3592 = vrot.slane %v3575, %v3591
      %v3593 = vlaneseq
      %v3594 = vshrl.u32 %v3593, 7
      %v3595 = vsub.s32 4, %v3594
      %v3596 = vrot.slane %v3575, %v3595
      %v3597 = vlaneseq
      %v3598 = vshrl.u32 %v3597, 7
      %v3599 = vsub.s32 5, %v3598
      %v3600 = vrot.slane %v3575, %v3599
      %v3601 = vlaneseq
      %v3602 = vshrl.u32 %v3601, 7
      %v3603 = vsub.s32 6, %v3602
      %v3604 = vrot.slane %v3575, %v3603
      %v3740 = vunpack.c.l.b16 %v3447
      %v3741 = vunpack.c.h.b16 %v3447
      %v3742 = vunpack.c.l.b16 %v3448
      %v3743 = vunpack.c.h.b16 %v3448
      %v3744 = vunpack.c.l.b16 %v3449
      %v3745 = vunpack.c.h.b16 %v3449
      %v3746 = vunpack.c.l.b16 %v3450
      %v3747 = vunpack.c.l.b16 %v3451
      %v3748 = vunpack.c.h.b16 %v3451
      %v3749 = vunpack.c.l.b16 %v3452
      %v3750 = vunpack.c.h.b16 %v3452
      %v3751 = vunpack.c.l.b16 %v3453
      %v3752 = vunpack.c.h.b16 %v3453
      %v3753 = vunpack.c.l.b16 %v3454
      %v3754 = vunpack.c.l.b16 %v3455
      %v3755 = vunpack.c.h.b16 %v3455
      %v3756 = vunpack.c.l.b16 %v3456
      %v3757 = vunpack.c.h.b16 %v3456
      %v3758 = vunpack.c.l.b16 %v3457
      %v3759 = vunpack.c.h.b16 %v3457
      %v3760 = vunpack.c.l.b16 %v3458
      %v3761 = vunpack.c.l.b16 %v3459
      %v3762 = vunpack.c.h.b16 %v3459
      %v3763 = vunpack.c.l.b16 %v3460
      %v3764 = vunpack.c.h.b16 %v3460
      %v3765 = vunpack.c.l.b16 %v3461
      %v3766 = vunpack.c.h.b16 %v3461
      %v3767 = vunpack.c.l.b16 %v3462
      %v3768 = vunpack.c.l.b16 %v3463
      %v3769 = vunpack.c.h.b16 %v3463
      %v3770 = vunpack.c.l.b16 %v3464
      %v3771 = vunpack.c.h.b16 %v3464
      %v3772 = vunpack.c.l.b16 %v3465
      %v3773 = vunpack.c.h.b16 %v3465
      %v3774 = vunpack.c.l.b16 %v3466
      %v3775 = vunpack.c.l.b16 %v3467
      %v3776 = vunpack.c.h.b16 %v3467
      %v3777 = vunpack.c.l.b16 %v3468
      %v3778 = vunpack.c.h.b16 %v3468
      %v3779 = vunpack.c.l.b16 %v3469
      %v3780 = vunpack.c.h.b16 %v3469
      %v3781 = vunpack.c.l.b16 %v3470
      %v3782 = vunpack.c.l.b16 %v3471
      %v3783 = vunpack.c.h.b16 %v3471
      %v3784 = vunpack.c.l.b16 %v3472
      %v3785 = vunpack.c.h.b16 %v3472
      %v3786 = vunpack.c.l.b16 %v3473
      %v3787 = vunpack.c.h.b16 %v3473
      %v3788 = vunpack.c.l.b16 %v3474
      %v3789 = vunpack.c.l.b16 %v3475
      %v3790 = vunpack.c.h.b16 %v3475
      %v3791 = vunpack.c.l.b16 %v3476
      %v3792 = vunpack.c.h.b16 %v3476
      %v3793 = vunpack.c.l.b16 %v3477
      %v3794 = vunpack.c.h.b16 %v3477
      %v3795 = vunpack.c.l.b16 %v3478
      %v3796 = vunpack.c.l.b16 %v3479
      %v3797 = vunpack.c.h.b16 %v3479
      %v3798 = vunpack.c.l.b16 %v3480
      %v3799 = vunpack.c.h.b16 %v3480
      %v3800 = vunpack.c.l.b16 %v3481
      %v3801 = vunpack.c.h.b16 %v3481
      %v3802 = vunpack.c.l.b16 %v3482
      %v3803 = vunpack.c.l.b16 %v3483
      %v3804 = vunpack.c.h.b16 %v3483
      %v3805 = vunpack.c.l.b16 %v3484
      %v3806 = vunpack.c.h.b16 %v3484
      %v3807 = vunpack.c.l.b16 %v3485
      %v3808 = vunpack.c.h.b16 %v3485
      %v3809 = vunpack.c.l.b16 %v3486
      %v3810 = vunpack.c.l.b16 %v3487
      %v3811 = vunpack.c.h.b16 %v3487
      %v3812 = vunpack.c.l.b16 %v3488
      %v3813 = vunpack.c.h.b16 %v3488
      %v3814 = vunpack.c.l.b16 %v3489
      %v3815 = vunpack.c.h.b16 %v3489
      %v3816 = vunpack.c.l.b16 %v3490
      %v3817 = vunpack.c.l.b16 %v3491
      %v3818 = vunpack.c.h.b16 %v3491
      %v3819 = vunpack.c.l.b16 %v3492
      %v3820 = vunpack.c.h.b16 %v3492
      %v3821 = vunpack.c.l.b16 %v3493
      %v3822 = vunpack.c.h.b16 %v3493
      %v3823 = vunpack.c.l.b16 %v3494
      %v3824 = vunpack.c.l.b16 %v3495
      %v3825 = vunpack.c.h.b16 %v3495
      %v3826 = vunpack.c.l.b16 %v3496
      %v3827 = vunpack.c.h.b16 %v3496
      %v3828 = vunpack.c.l.b16 %v3497
      %v3829 = vunpack.c.h.b16 %v3497
      %v3830 = vunpack.c.l.b16 %v3498
      %v3831 = vunpack.c.l.b16 %v3499
      %v3832 = vunpack.c.h.b16 %v3499
      %v3833 = vunpack.c.l.b16 %v3500
      %v3834 = vunpack.c.h.b16 %v3500
      %v3835 = vunpack.c.l.b16 %v3501
      %v3836 = vunpack.c.h.b16 %v3501
      %v3837 = vunpack.c.l.b16 %v3502
      %v3838 = vunpack.c.l.b16 %v3503
      %v3839 = vunpack.c.h.b16 %v3503
      %v3840 = vunpack.c.l.b16 %v3504
      %v3841 = vunpack.c.h.b16 %v3504
      %v3842 = vunpack.c.l.b16 %v3505
      %v3843 = vunpack.c.h.b16 %v3505
      %v3844 = vunpack.c.l.b16 %v3506
      %v3845 = vunpack.c.l.b16 %v3507
      %v3846 = vunpack.c.h.b16 %v3507
      %v3847 = vunpack.c.l.b16 %v3508
      %v3848 = vunpack.c.h.b16 %v3508
      %v3849 = vunpack.c.l.b16 %v3509
      %v3850 = vunpack.c.h.b16 %v3509
      %v3851 = vunpack.c.l.b16 %v3510
      %v3852 = vunpack.c.l.b16 %v3511
      %v3853 = vunpack.c.h.b16 %v3511
      %v3854 = vunpack.c.l.b16 %v3512
      %v3855 = vunpack.c.h.b16 %v3512
      %v3856 = vunpack.c.l.b16 %v3513
      %v3857 = vunpack.c.h.b16 %v3513
      %v3858 = vunpack.c.l.b16 %v3514
      %v3859 = vunpack.c.l.b16 %v3515
      %v3860 = vunpack.c.h.b16 %v3515
      %v3861 = vunpack.c.l.b16 %v3516
      %v3862 = vunpack.c.h.b16 %v3516
      %v3863 = vunpack.c.l.b16 %v3517
      %v3864 = vunpack.c.h.b16 %v3517
      %v3865 = vunpack.c.l.b16 %v3518
      %v3866 = vunpack.c.l.b16 %v3519
      %v3867 = vunpack.c.h.b16 %v3519
      %v3868 = vunpack.c.l.b16 %v3520
      %v3869 = vunpack.c.h.b16 %v3520
      %v3870 = vunpack.c.l.b16 %v3521
      %v3871 = vunpack.c.h.b16 %v3521
      %v3872 = vunpack.c.l.b16 %v3522
      %v3873 = vunpack.c.l.b16 %v3523
      %v3874 = vunpack.c.h.b16 %v3523
      %v3875 = vunpack.c.l.b16 %v3524
      %v3876 = vunpack.c.h.b16 %v3524
      %v3877 = vunpack.c.l.b16 %v3525
      %v3878 = vunpack.c.h.b16 %v3525
      %v3879 = vunpack.c.l.b16 %v3526
      %v3880 = vunpack.c.l.b16 %v3527
      %v3881 = vunpack.c.h.b16 %v3527
      %v3882 = vunpack.c.l.b16 %v3528
      %v3883 = vunpack.c.h.b16 %v3528
      %v3884 = vunpack.c.l.b16 %v3529
      %v3885 = vunpack.c.h.b16 %v3529
      %v3886 = vunpack.c.l.b16 %v3530
      %v3887 = vunpack.c.l.b16 %v3531
      %v3888 = vunpack.c.h.b16 %v3531
      %v3889 = vunpack.c.l.b16 %v3532
      %v3890 = vunpack.c.h.b16 %v3532
      %v3891 = vunpack.c.l.b16 %v3533
      %v3892 = vunpack.c.h.b16 %v3533
      %v3893 = vunpack.c.l.b16 %v3534
      %v3894 = vunpack.c.l.b16 %v3535
      %v3895 = vunpack.c.h.b16 %v3535
      %v3896 = vunpack.c.l.b16 %v3536
      %v3897 = vunpack.c.h.b16 %v3536
      %v3898 = vunpack.c.l.b16 %v3537
      %v3899 = vunpack.c.h.b16 %v3537
      %v3900 = vunpack.c.l.b16 %v3538
      %v3901 = vunpack.c.l.b16 %v3539
      %v3902 = vunpack.c.h.b16 %v3539
      %v3903 = vunpack.c.l.b16 %v3540
      %v3904 = vunpack.c.h.b16 %v3540
      %v3905 = vunpack.c.l.b16 %v3541
      %v3906 = vunpack.c.h.b16 %v3541
      %v3907 = vunpack.c.l.b16 %v3542
      %v3908 = vunpack.c.l.b16 %v3543
      %v3909 = vunpack.c.h.b16 %v3543
      %v3910 = vunpack.c.l.b16 %v3544
      %v3911 = vunpack.c.h.b16 %v3544
      %v3912 = vunpack.c.l.b16 %v3545
      %v3913 = vunpack.c.h.b16 %v3545
      %v3914 = vunpack.c.l.b16 %v3546
      %v3915 = vunpack.c.l.b16 %v3547
      %v3916 = vunpack.c.h.b16 %v3547
      %v3917 = vunpack.c.l.b16 %v3548
      %v3918 = vunpack.c.h.b16 %v3548
      %v3919 = vunpack.c.l.b16 %v3549
      %v3920 = vunpack.c.h.b16 %v3549
      %v3921 = vunpack.c.l.b16 %v3550
      %v3922 = vunpack.c.l.b16 %v3551
      %v3923 = vunpack.c.h.b16 %v3551
      %v3924 = vunpack.c.l.b16 %v3552
      %v3925 = vunpack.c.h.b16 %v3552
      %v3926 = vunpack.c.l.b16 %v3553
      %v3927 = vunpack.c.h.b16 %v3553
      %v3928 = vunpack.c.l.b16 %v3554
      %v3929 = vunpack.c.l.b16 %v3555
      %v3930 = vunpack.c.h.b16 %v3555
      %v3931 = vunpack.c.l.b16 %v3556
      %v3932 = vunpack.c.h.b16 %v3556
      %v3933 = vunpack.c.l.b16 %v3557
      %v3934 = vunpack.c.h.b16 %v3557
      %v3935 = vunpack.c.l.b16 %v3558
      %v3936 = vunpack.c.l.b16 %v3559
      %v3937 = vunpack.c.h.b16 %v3559
      %v3938 = vunpack.c.l.b16 %v3560
      %v3939 = vunpack.c.h.b16 %v3560
      %v3940 = vunpack.c.l.b16 %v3561
      %v3941 = vunpack.c.h.b16 %v3561
      %v3942 = vunpack.c.l.b16 %v3562
      %v3943 = vunpack.c.l.b16 %v3563
      %v3944 = vunpack.c.h.b16 %v3563
      %v3945 = vunpack.c.l.b16 %v3564
      %v3946 = vunpack.c.h.b16 %v3564
      %v3947 = vunpack.c.l.b16 %v3565
      %v3948 = vunpack.c.h.b16 %v3565
      %v3949 = vunpack.c.l.b16 %v3566
      %v3950 = vunpack.c.l.b16 %v3567
      %v3951 = vunpack.c.h.b16 %v3567
      %v3952 = vunpack.c.l.b16 %v3568
      %v3953 = vunpack.c.h.b16 %v3568
      %v3954 = vunpack.c.l.b16 %v3569
      %v3955 = vunpack.c.h.b16 %v3569
      %v3956 = vunpack.c.l.b16 %v3570
      %v3957 = vunpack.c.l.b16 %v3571
      %v3958 = vunpack.c.h.b16 %v3571
      %v3959 = vunpack.c.l.b16 %v3572
      %v3960 = vunpack.c.h.b16 %v3572
      %v3961 = vunpack.c.l.b16 %v3573
      %v3962 = vunpack.c.h.b16 %v3573
      %v3963 = vunpack.c.l.b16 %v3574
      %v3964 = vpack.c.b16 %v3747, %v3740
      %v3965 = vpack.c.b16 %v3748, %v3741
      %v3966 = vpack.c.b16 %v3749, %v3742
      %v3967 = vpack.c.b16 %v3750, %v3743
      %v3968 = vpack.c.b16 %v3751, %v3744
      %v3969 = vpack.c.b16 %v3752, %v3745
      %v3970 = vpack.c.b16 %v3753, %v3746
      %v3971 = vpack.c.b16 %v3761, %v3754
      %v3972 = vpack.c.b16 %v3762, %v3755
      %v3973 = vpack.c.b16 %v3763, %v3756
      %v3974 = vpack.c.b16 %v3764, %v3757
      %v3975 = vpack.c.b16 %v3765, %v3758
      %v3976 = vpack.c.b16 %v3766, %v3759
      %v3977 = vpack.c.b16 %v3767, %v3760
      %v3978 = vpack.c.b16 %v3775, %v3768
      %v3979 = vpack.c.b16 %v3776, %v3769
      %v3980 = vpack.c.b16 %v3777, %v3770
      %v3981 = vpack.c.b16 %v3778, %v3771
      %v3982 = vpack.c.b16 %v3779, %v3772
      %v3983 = vpack.c.b16 %v3780, %v3773
      %v3984 = vpack.c.b16 %v3781, %v3774
      %v3985 = vpack.c.b16 %v3789, %v3782
      %v3986 = vpack.c.b16 %v3790, %v3783
      %v3987 = vpack.c.b16 %v3791, %v3784
      %v3988 = vpack.c.b16 %v3792, %v3785
      %v3989 = vpack.c.b16 %v3793, %v3786
      %v3990 = vpack.c.b16 %v3794, %v3787
      %v3991 = vpack.c.b16 %v3795, %v3788
      %v3992 = vpack.c.b16 %v3803, %v3796
      %v3993 = vpack.c.b16 %v3804, %v3797
      %v3994 = vpack.c.b16 %v3805, %v3798
      %v3995 = vpack.c.b16 %v3806, %v3799
      %v3996 = vpack.c.b16 %v3807, %v3800
      %v3997 = vpack.c.b16 %v3808, %v3801
      %v3998 = vpack.c.b16 %v3809, %v3802
      %v3999 = vpack.c.b16 %v3817, %v3810
      %v4000 = vpack.c.b16 %v3818, %v3811
      %v4001 = vpack.c.b16 %v3819, %v3812
      %v4002 = vpack.c.b16 %v3820, %v3813
      %v4003 = vpack.c.b16 %v3821, %v3814
      %v4004 = vpack.c.b16 %v3822, %v3815
      %v4005 = vpack.c.b16 %v3823, %v3816
      %v4006 = vpack.c.b16 %v3831, %v3824
      %v4007 = vpack.c.b16 %v3832, %v3825
      %v4008 = vpack.c.b16 %v3833, %v3826
      %v4009 = vpack.c.b16 %v3834, %v3827
      %v4010 = vpack.c.b16 %v3835, %v3828
      %v4011 = vpack.c.b16 %v3836, %v3829
      %v4012 = vpack.c.b16 %v3837, %v3830
      %v4013 = vpack.c.b16 %v3845, %v3838
      %v4014 = vpack.c.b16 %v3846, %v3839
      %v4015 = vpack.c.b16 %v3847, %v3840
      %v4016 = vpack.c.b16 %v3848, %v3841
      %v4017 = vpack.c.b16 %v3849, %v3842
      %v4018 = vpack.c.b16 %v3850, %v3843
      %v4019 = vpack.c.b16 %v3851, %v3844
      %v4020 = vpack.c.b16 %v3859, %v3852
      %v4021 = vpack.c.b16 %v3860, %v3853
      %v4022 = vpack.c.b16 %v3861, %v3854
      %v4023 = vpack.c.b16 %v3862, %v3855
      %v4024 = vpack.c.b16 %v3863, %v3856
      %v4025 = vpack.c.b16 %v3864, %v3857
      %v4026 = vpack.c.b16 %v3865, %v3858
      %v4027 = vpack.c.b16 %v3873, %v3866
      %v4028 = vpack.c.b16 %v3874, %v3867
      %v4029 = vpack.c.b16 %v3875, %v3868
      %v4030 = vpack.c.b16 %v3876, %v3869
      %v4031 = vpack.c.b16 %v3877, %v3870
      %v4032 = vpack.c.b16 %v3878, %v3871
      %v4033 = vpack.c.b16 %v3879, %v3872
      %v4034 = vpack.c.b16 %v3887, %v3880
      %v4035 = vpack.c.b16 %v3888, %v3881
      %v4036 = vpack.c.b16 %v3889, %v3882
      %v4037 = vpack.c.b16 %v3890, %v3883
      %v4038 = vpack.c.b16 %v3891, %v3884
      %v4039 = vpack.c.b16 %v3892, %v3885
      %v4040 = vpack.c.b16 %v3893, %v3886
      %v4041 = vpack.c.b16 %v3901, %v3894
      %v4042 = vpack.c.b16 %v3902, %v3895
      %v4043 = vpack.c.b16 %v3903, %v3896
      %v4044 = vpack.c.b16 %v3904, %v3897
      %v4045 = vpack.c.b16 %v3905, %v3898
      %v4046 = vpack.c.b16 %v3906, %v3899
      %v4047 = vpack.c.b16 %v3907, %v3900
      %v4048 = vpack.c.b16 %v3915, %v3908
      %v4049 = vpack.c.b16 %v3916, %v3909
      %v4050 = vpack.c.b16 %v3917, %v3910
      %v4051 = vpack.c.b16 %v3918, %v3911
      %v4052 = vpack.c.b16 %v3919, %v3912
      %v4053 = vpack.c.b16 %v3920, %v3913
      %v4054 = vpack.c.b16 %v3921, %v3914
      %v4055 = vpack.c.b16 %v3929, %v3922
      %v4056 = vpack.c.b16 %v3930, %v3923
      %v4057 = vpack.c.b16 %v3931, %v3924
      %v4058 = vpack.c.b16 %v3932, %v3925
      %v4059 = vpack.c.b16 %v3933, %v3926
      %v4060 = vpack.c.b16 %v3934, %v3927
      %v4061 = vpack.c.b16 %v3935, %v3928
      %v4062 = vpack.c.b16 %v3943, %v3936
      %v4063 = vpack.c.b16 %v3944, %v3937
      %v4064 = vpack.c.b16 %v3945, %v3938
      %v4065 = vpack.c.b16 %v3946, %v3939
      %v4066 = vpack.c.b16 %v3947, %v3940
      %v4067 = vpack.c.b16 %v3948, %v3941
      %v4068 = vpack.c.b16 %v3949, %v3942
      %v4069 = vpack.c.b16 %v3957, %v3950
      %v4070 = vpack.c.b16 %v3958, %v3951
      %v4071 = vpack.c.b16 %v3959, %v3952
      %v4072 = vpack.c.b16 %v3960, %v3953
      %v4073 = vpack.c.b16 %v3961, %v3954
      %v4074 = vpack.c.b16 %v3962, %v3955
      %v4075 = vpack.c.b16 %v3963, %v3956
      %4188 = vmatprep.subr.bf16.mxu0 %v4014
      %4189 = vmatpush1.bf16.msra.mxu0 %v4013
      %4190 = vmatprep.subr.bf16.mxu0 %v4007
      %4191 = vmatpush1.bf16.msra.mxu0 %v4006
      %4192 = vmatprep.subr.bf16.mxu0 %v4000
      %4193 = vmatpush1.bf16.msra.mxu0 %v3999
      %4194 = vmatprep.subr.bf16.mxu0 %v3993
      %4195 = vmatpush1.bf16.msra.mxu0 %v3992
      %4196 = vmatprep.subr.bf16.mxu0 %v3986
      %4197 = vmatpush1.bf16.msra.mxu0 %v3985
      %4198 = vmatprep.subr.bf16.mxu0 %v3979
      %4199 = vmatpush1.bf16.msra.mxu0 %v3978
      %4200 = vmatprep.subr.bf16.mxu0 %v3972
      %4201 = vmatpush1.bf16.msra.mxu0 %v3971
      %4202 = vmatprep.subr.bf16.mxu0 %v3965
      %4203 = vmatpush1.bf16.msra.mxu0 %v3964
      %4204 = vmatprep.subr.bf16.mxu0 %v4070
      %4205 = vmatpush2.bf16.msra.mxu0 %v4069
      %4206 = vmatprep.subr.bf16.mxu0 %v4063
      %4207 = vmatpush2.bf16.msra.mxu0 %v4062
      %4208 = vmatprep.subr.bf16.mxu0 %v4056
      %4209 = vmatpush2.bf16.msra.mxu0 %v4055
      %4210 = vmatprep.subr.bf16.mxu0 %v4049
      %4211 = vmatpush2.bf16.msra.mxu0 %v4048
      %4212 = vmatprep.subr.bf16.mxu0 %v4042
      %4213 = vmatpush2.bf16.msra.mxu0 %v4041
      %4214 = vmatprep.subr.bf16.mxu0 %v4035
      %4215 = vmatpush2.bf16.msra.mxu0 %v4034
      %4216 = vmatprep.subr.bf16.mxu0 %v4028
      %4217 = vmatpush2.bf16.msra.mxu0 %v4027
      %4218 = vmatprep.subr.bf16.mxu0 %v4021
      %4219 = vmatpush2.bf16.msra.mxu0 %v4020
      %4220 = vmatprep.mubr.bf16.mxu0 %v3432
      %4221 = vmatmul.mubr.bf16.gmra.mxu0 %v3431
      %v4222 = vpop.f32.mrf.mxu0
      %v4223 = vadd.f32 %v3580, %v4222
      %v4224 = vpop.f32.mrf.mxu0
      %v4225 = vadd.f32 %v3584, %v4224
      %v4226 = vpop.f32.mrf.mxu0
      %v4227 = vadd.f32 %v3580, %v4226
      %v4228 = vpop.f32.mrf.mxu0
      %v4229 = vadd.f32 %v3584, %v4228
      %4230 = vmatprep.mubr.bf16.mxu0 %v3434
      %4231 = vmatmul.mubr.bf16.gmra.mxu0 %v3433
      %v4232 = vpop.f32.mrf.mxu0
      %v4233 = vadd.f32 %v3580, %v4232
      %v4234 = vpop.f32.mrf.mxu0
      %v4235 = vadd.f32 %v3584, %v4234
      %v4236 = vpop.f32.mrf.mxu0
      %v4237 = vadd.f32 %v3580, %v4236
      %v4238 = vpop.f32.mrf.mxu0
      %v4239 = vadd.f32 %v3584, %v4238
      %4240 = vmatprep.mubr.bf16.mxu0 %v3436
      %4241 = vmatmul.mubr.bf16.gmra.mxu0 %v3435
      %v4242 = vpop.f32.mrf.mxu0
      %v4243 = vadd.f32 %v3580, %v4242
      %v4244 = vpop.f32.mrf.mxu0
      %v4245 = vadd.f32 %v3584, %v4244
      %v4246 = vpop.f32.mrf.mxu0
      %v4247 = vadd.f32 %v3580, %v4246
      %v4248 = vpop.f32.mrf.mxu0
      %v4249 = vadd.f32 %v3584, %v4248
      %4250 = vmatprep.mubr.bf16.mxu0 %v3438
      %4251 = vmatmul.mubr.bf16.gmra.mxu0 %v3437
      %v4252 = vpop.f32.mrf.mxu0
      %v4253 = vadd.f32 %v3580, %v4252
      %v4254 = vpop.f32.mrf.mxu0
      %v4255 = vadd.f32 %v3584, %v4254
      %v4256 = vpop.f32.mrf.mxu0
      %v4257 = vadd.f32 %v3580, %v4256
      %v4258 = vpop.f32.mrf.mxu0
      %v4259 = vadd.f32 %v3584, %v4258
      %4260 = vmatprep.mubr.bf16.mxu0 %v3440
      %4261 = vmatmul.mubr.bf16.gmra.mxu0 %v3439
      %v4262 = vpop.f32.mrf.mxu0
      %v4263 = vadd.f32 %v3580, %v4262
      %v4264 = vpop.f32.mrf.mxu0
      %v4265 = vadd.f32 %v3584, %v4264
      %v4266 = vpop.f32.mrf.mxu0
      %v4267 = vadd.f32 %v3580, %v4266
      %v4268 = vpop.f32.mrf.mxu0
      %v4269 = vadd.f32 %v3584, %v4268
      %4270 = vmatprep.mubr.bf16.mxu0 %v3442
      %4271 = vmatmul.mubr.bf16.gmra.mxu0 %v3441
      %v4272 = vpop.f32.mrf.mxu0
      %v4273 = vadd.f32 %v3580, %v4272
      %v4274 = vpop.f32.mrf.mxu0
      %v4275 = vadd.f32 %v3584, %v4274
      %v4276 = vpop.f32.mrf.mxu0
      %v4277 = vadd.f32 %v3580, %v4276
      %v4278 = vpop.f32.mrf.mxu0
      %v4279 = vadd.f32 %v3584, %v4278
      %4280 = vmatprep.mubr.bf16.mxu0 %v3444
      %4281 = vmatmul.mubr.bf16.gmra.mxu0 %v3443
      %v4282 = vpop.f32.mrf.mxu0
      %v4283 = vadd.f32 %v3580, %v4282
      %v4284 = vpop.f32.mrf.mxu0
      %v4285 = vadd.f32 %v3584, %v4284
      %v4286 = vpop.f32.mrf.mxu0
      %v4287 = vadd.f32 %v3580, %v4286
      %v4288 = vpop.f32.mrf.mxu0
      %v4289 = vadd.f32 %v3584, %v4288
      %4290 = vmatprep.mubr.bf16.mxu0 %v3446
      %4291 = vmatmul.mubr.bf16.gmra.mxu0 %v3445
      %v4292 = vpop.f32.mrf.mxu0
      %v4293 = vadd.f32 %v3580, %v4292
      %v4294 = vpop.f32.mrf.mxu0
      %v4295 = vadd.f32 %v3584, %v4294
      %v4296 = vpop.f32.mrf.mxu0
      %v4297 = vadd.f32 %v3580, %v4296
      %v4298 = vpop.f32.mrf.mxu0
      %v4299 = vadd.f32 %v3584, %v4298
      %4300 = vdwg.mxu0
      %4301 = vmatprep.subr.bf16.mxu0 %v4016
      %4302 = vmatpush1.bf16.msra.mxu0 %v4015
      %4303 = vmatprep.subr.bf16.mxu0 %v4009
      %4304 = vmatpush1.bf16.msra.mxu0 %v4008
      %4305 = vmatprep.subr.bf16.mxu0 %v4002
      %4306 = vmatpush1.bf16.msra.mxu0 %v4001
      %4307 = vmatprep.subr.bf16.mxu0 %v3995
      %4308 = vmatpush1.bf16.msra.mxu0 %v3994
      %4309 = vmatprep.subr.bf16.mxu0 %v3988
      %4310 = vmatpush1.bf16.msra.mxu0 %v3987
      %4311 = vmatprep.subr.bf16.mxu0 %v3981
      %4312 = vmatpush1.bf16.msra.mxu0 %v3980
      %4313 = vmatprep.subr.bf16.mxu0 %v3974
      %4314 = vmatpush1.bf16.msra.mxu0 %v3973
      %4315 = vmatprep.subr.bf16.mxu0 %v3967
      %4316 = vmatpush1.bf16.msra.mxu0 %v3966
      %4317 = vmatprep.subr.bf16.mxu0 %v4072
      %4318 = vmatpush2.bf16.msra.mxu0 %v4071
      %4319 = vmatprep.subr.bf16.mxu0 %v4065
      %4320 = vmatpush2.bf16.msra.mxu0 %v4064
      %4321 = vmatprep.subr.bf16.mxu0 %v4058
      %4322 = vmatpush2.bf16.msra.mxu0 %v4057
      %4323 = vmatprep.subr.bf16.mxu0 %v4051
      %4324 = vmatpush2.bf16.msra.mxu0 %v4050
      %4325 = vmatprep.subr.bf16.mxu0 %v4044
      %4326 = vmatpush2.bf16.msra.mxu0 %v4043
      %4327 = vmatprep.subr.bf16.mxu0 %v4037
      %4328 = vmatpush2.bf16.msra.mxu0 %v4036
      %4329 = vmatprep.subr.bf16.mxu0 %v4030
      %4330 = vmatpush2.bf16.msra.mxu0 %v4029
      %4331 = vmatprep.subr.bf16.mxu0 %v4023
      %4332 = vmatpush2.bf16.msra.mxu0 %v4022
      %4333 = vmatprep.mubr.bf16.mxu0 %v3432
      %4334 = vmatmul.mubr.bf16.gmra.mxu0 %v3431
      %v4335 = vpop.f32.mrf.mxu0
      %v4336 = vadd.f32 %v3588, %v4335
      %v4337 = vpop.f32.mrf.mxu0
      %v4338 = vadd.f32 %v3592, %v4337
      %v4339 = vpop.f32.mrf.mxu0
      %v4340 = vadd.f32 %v3588, %v4339
      %v4341 = vpop.f32.mrf.mxu0
      %v4342 = vadd.f32 %v3592, %v4341
      %4343 = vmatprep.mubr.bf16.mxu0 %v3434
      %4344 = vmatmul.mubr.bf16.gmra.mxu0 %v3433
      %v4345 = vpop.f32.mrf.mxu0
      %v4346 = vadd.f32 %v3588, %v4345
      %v4347 = vpop.f32.mrf.mxu0
      %v4348 = vadd.f32 %v3592, %v4347
      %v4349 = vpop.f32.mrf.mxu0
      %v4350 = vadd.f32 %v3588, %v4349
      %v4351 = vpop.f32.mrf.mxu0
      %v4352 = vadd.f32 %v3592, %v4351
      %4353 = vmatprep.mubr.bf16.mxu0 %v3436
      %4354 = vmatmul.mubr.bf16.gmra.mxu0 %v3435
      %v4355 = vpop.f32.mrf.mxu0
      %v4356 = vadd.f32 %v3588, %v4355
      %v4357 = vpop.f32.mrf.mxu0
      %v4358 = vadd.f32 %v3592, %v4357
      %v4359 = vpop.f32.mrf.mxu0
      %v4360 = vadd.f32 %v3588, %v4359
      %v4361 = vpop.f32.mrf.mxu0
      %v4362 = vadd.f32 %v3592, %v4361
      %4363 = vmatprep.mubr.bf16.mxu0 %v3438
      %4364 = vmatmul.mubr.bf16.gmra.mxu0 %v3437
      %v4365 = vpop.f32.mrf.mxu0
      %v4366 = vadd.f32 %v3588, %v4365
      %v4367 = vpop.f32.mrf.mxu0
      %v4368 = vadd.f32 %v3592, %v4367
      %v4369 = vpop.f32.mrf.mxu0
      %v4370 = vadd.f32 %v3588, %v4369
      %v4371 = vpop.f32.mrf.mxu0
      %v4372 = vadd.f32 %v3592, %v4371
      %4373 = vmatprep.mubr.bf16.mxu0 %v3440
      %4374 = vmatmul.mubr.bf16.gmra.mxu0 %v3439
      %v4375 = vpop.f32.mrf.mxu0
      %v4376 = vadd.f32 %v3588, %v4375
      %v4377 = vpop.f32.mrf.mxu0
      %v4378 = vadd.f32 %v3592, %v4377
      %v4379 = vpop.f32.mrf.mxu0
      %v4380 = vadd.f32 %v3588, %v4379
      %v4381 = vpop.f32.mrf.mxu0
      %v4382 = vadd.f32 %v3592, %v4381
      %4383 = vmatprep.mubr.bf16.mxu0 %v3442
      %4384 = vmatmul.mubr.bf16.gmra.mxu0 %v3441
      %v4385 = vpop.f32.mrf.mxu0
      %v4386 = vadd.f32 %v3588, %v4385
      %v4387 = vpop.f32.mrf.mxu0
      %v4388 = vadd.f32 %v3592, %v4387
      %v4389 = vpop.f32.mrf.mxu0
      %v4390 = vadd.f32 %v3588, %v4389
      %v4391 = vpop.f32.mrf.mxu0
      %v4392 = vadd.f32 %v3592, %v4391
      %4393 = vmatprep.mubr.bf16.mxu0 %v3444
      %4394 = vmatmul.mubr.bf16.gmra.mxu0 %v3443
      %v4395 = vpop.f32.mrf.mxu0
      %v4396 = vadd.f32 %v3588, %v4395
      %v4397 = vpop.f32.mrf.mxu0
      %v4398 = vadd.f32 %v3592, %v4397
      %v4399 = vpop.f32.mrf.mxu0
      %v4400 = vadd.f32 %v3588, %v4399
      %v4401 = vpop.f32.mrf.mxu0
      %v4402 = vadd.f32 %v3592, %v4401
      %4403 = vmatprep.mubr.bf16.mxu0 %v3446
      %4404 = vmatmul.mubr.bf16.gmra.mxu0 %v3445
      %v4405 = vpop.f32.mrf.mxu0
      %v4406 = vadd.f32 %v3588, %v4405
      %v4407 = vpop.f32.mrf.mxu0
      %v4408 = vadd.f32 %v3592, %v4407
      %v4409 = vpop.f32.mrf.mxu0
      %v4410 = vadd.f32 %v3588, %v4409
      %v4411 = vpop.f32.mrf.mxu0
      %v4412 = vadd.f32 %v3592, %v4411
      %4413 = vdwg.mxu0
      %4414 = vmatprep.subr.bf16.mxu0 %v4018
      %4415 = vmatpush1.bf16.msra.mxu0 %v4017
      %4416 = vmatprep.subr.bf16.mxu0 %v4011
      %4417 = vmatpush1.bf16.msra.mxu0 %v4010
      %4418 = vmatprep.subr.bf16.mxu0 %v4004
      %4419 = vmatpush1.bf16.msra.mxu0 %v4003
      %4420 = vmatprep.subr.bf16.mxu0 %v3997
      %4421 = vmatpush1.bf16.msra.mxu0 %v3996
      %4422 = vmatprep.subr.bf16.mxu0 %v3990
      %4423 = vmatpush1.bf16.msra.mxu0 %v3989
      %4424 = vmatprep.subr.bf16.mxu0 %v3983
      %4425 = vmatpush1.bf16.msra.mxu0 %v3982
      %4426 = vmatprep.subr.bf16.mxu0 %v3976
      %4427 = vmatpush1.bf16.msra.mxu0 %v3975
      %4428 = vmatprep.subr.bf16.mxu0 %v3969
      %4429 = vmatpush1.bf16.msra.mxu0 %v3968
      %4430 = vmatprep.subr.bf16.mxu0 %v4074
      %4431 = vmatpush2.bf16.msra.mxu0 %v4073
      %4432 = vmatprep.subr.bf16.mxu0 %v4067
      %4433 = vmatpush2.bf16.msra.mxu0 %v4066
      %4434 = vmatprep.subr.bf16.mxu0 %v4060
      %4435 = vmatpush2.bf16.msra.mxu0 %v4059
      %4436 = vmatprep.subr.bf16.mxu0 %v4053
      %4437 = vmatpush2.bf16.msra.mxu0 %v4052
      %4438 = vmatprep.subr.bf16.mxu0 %v4046
      %4439 = vmatpush2.bf16.msra.mxu0 %v4045
      %4440 = vmatprep.subr.bf16.mxu0 %v4039
      %4441 = vmatpush2.bf16.msra.mxu0 %v4038
      %4442 = vmatprep.subr.bf16.mxu0 %v4032
      %4443 = vmatpush2.bf16.msra.mxu0 %v4031
      %4444 = vmatprep.subr.bf16.mxu0 %v4025
      %4445 = vmatpush2.bf16.msra.mxu0 %v4024
      %4446 = vmatprep.mubr.bf16.mxu0 %v3432
      %4447 = vmatmul.mubr.bf16.gmra.mxu0 %v3431
      %v4448 = vpop.f32.mrf.mxu0
      %v4449 = vadd.f32 %v3596, %v4448
      %v4450 = vpop.f32.mrf.mxu0
      %v4451 = vadd.f32 %v3600, %v4450
      %v4452 = vpop.f32.mrf.mxu0
      %v4453 = vadd.f32 %v3596, %v4452
      %v4454 = vpop.f32.mrf.mxu0
      %v4455 = vadd.f32 %v3600, %v4454
      %4456 = vmatprep.mubr.bf16.mxu0 %v3434
      %4457 = vmatmul.mubr.bf16.gmra.mxu0 %v3433
      %v4458 = vpop.f32.mrf.mxu0
      %v4459 = vadd.f32 %v3596, %v4458
      %v4460 = vpop.f32.mrf.mxu0
      %v4461 = vadd.f32 %v3600, %v4460
      %v4462 = vpop.f32.mrf.mxu0
      %v4463 = vadd.f32 %v3596, %v4462
      %v4464 = vpop.f32.mrf.mxu0
      %v4465 = vadd.f32 %v3600, %v4464
      %4466 = vmatprep.mubr.bf16.mxu0 %v3436
      %4467 = vmatmul.mubr.bf16.gmra.mxu0 %v3435
      %v4468 = vpop.f32.mrf.mxu0
      %v4469 = vadd.f32 %v3596, %v4468
      %v4470 = vpop.f32.mrf.mxu0
      %v4471 = vadd.f32 %v3600, %v4470
      %v4472 = vpop.f32.mrf.mxu0
      %v4473 = vadd.f32 %v3596, %v4472
      %v4474 = vpop.f32.mrf.mxu0
      %v4475 = vadd.f32 %v3600, %v4474
      %4476 = vmatprep.mubr.bf16.mxu0 %v3438
      %4477 = vmatmul.mubr.bf16.gmra.mxu0 %v3437
      %v4478 = vpop.f32.mrf.mxu0
      %v4479 = vadd.f32 %v3596, %v4478
      %v4480 = vpop.f32.mrf.mxu0
      %v4481 = vadd.f32 %v3600, %v4480
      %v4482 = vpop.f32.mrf.mxu0
      %v4483 = vadd.f32 %v3596, %v4482
      %v4484 = vpop.f32.mrf.mxu0
      %v4485 = vadd.f32 %v3600, %v4484
      %4486 = vmatprep.mubr.bf16.mxu0 %v3440
      %4487 = vmatmul.mubr.bf16.gmra.mxu0 %v3439
      %v4488 = vpop.f32.mrf.mxu0
      %v4489 = vadd.f32 %v3596, %v4488
      %v4490 = vpop.f32.mrf.mxu0
      %v4491 = vadd.f32 %v3600, %v4490
      %v4492 = vpop.f32.mrf.mxu0
      %v4493 = vadd.f32 %v3596, %v4492
      %v4494 = vpop.f32.mrf.mxu0
      %v4495 = vadd.f32 %v3600, %v4494
      %4496 = vmatprep.mubr.bf16.mxu0 %v3442
      %4497 = vmatmul.mubr.bf16.gmra.mxu0 %v3441
      %v4498 = vpop.f32.mrf.mxu0
      %v4499 = vadd.f32 %v3596, %v4498
      %v4500 = vpop.f32.mrf.mxu0
      %v4501 = vadd.f32 %v3600, %v4500
      %v4502 = vpop.f32.mrf.mxu0
      %v4503 = vadd.f32 %v3596, %v4502
      %v4504 = vpop.f32.mrf.mxu0
      %v4505 = vadd.f32 %v3600, %v4504
      %4506 = vmatprep.mubr.bf16.mxu0 %v3444
      %4507 = vmatmul.mubr.bf16.gmra.mxu0 %v3443
      %v4508 = vpop.f32.mrf.mxu0
      %v4509 = vadd.f32 %v3596, %v4508
      %v4510 = vpop.f32.mrf.mxu0
      %v4511 = vadd.f32 %v3600, %v4510
      %v4512 = vpop.f32.mrf.mxu0
      %v4513 = vadd.f32 %v3596, %v4512
      %v4514 = vpop.f32.mrf.mxu0
      %v4515 = vadd.f32 %v3600, %v4514
      %4516 = vmatprep.mubr.bf16.mxu0 %v3446
      %4517 = vmatmul.mubr.bf16.gmra.mxu0 %v3445
      %v4518 = vpop.f32.mrf.mxu0
      %v4519 = vadd.f32 %v3596, %v4518
      %v4520 = vpop.f32.mrf.mxu0
      %v4521 = vadd.f32 %v3600, %v4520
      %v4522 = vpop.f32.mrf.mxu0
      %v4523 = vadd.f32 %v3596, %v4522
      %v4524 = vpop.f32.mrf.mxu0
      %v4525 = vadd.f32 %v3600, %v4524
      %4526 = vdwg.mxu0
      %4527 = vmatprep.subr.bf16.mxu0 0
      %4528 = vmatpush1.bf16.msra.mxu0 %v4019
      %4529 = vmatprep.subr.bf16.mxu0 0
      %4530 = vmatpush1.bf16.msra.mxu0 %v4012
      %4531 = vmatprep.subr.bf16.mxu0 0
      %4532 = vmatpush1.bf16.msra.mxu0 %v4005
      %4533 = vmatprep.subr.bf16.mxu0 0
      %4534 = vmatpush1.bf16.msra.mxu0 %v3998
      %4535 = vmatprep.subr.bf16.mxu0 0
      %4536 = vmatpush1.bf16.msra.mxu0 %v3991
      %4537 = vmatprep.subr.bf16.mxu0 0
      %4538 = vmatpush1.bf16.msra.mxu0 %v3984
      %4539 = vmatprep.subr.bf16.mxu0 0
      %4540 = vmatpush1.bf16.msra.mxu0 %v3977
      %4541 = vmatprep.subr.bf16.mxu0 0
      %4542 = vmatpush1.bf16.msra.mxu0 %v3970
      %4543 = vmatprep.subr.bf16.mxu0 0
      %4544 = vmatpush2.bf16.msra.mxu0 %v4075
      %4545 = vmatprep.subr.bf16.mxu0 0
      %4546 = vmatpush2.bf16.msra.mxu0 %v4068
      %4547 = vmatprep.subr.bf16.mxu0 0
      %4548 = vmatpush2.bf16.msra.mxu0 %v4061
      %4549 = vmatprep.subr.bf16.mxu0 0
      %4550 = vmatpush2.bf16.msra.mxu0 %v4054
      %4551 = vmatprep.subr.bf16.mxu0 0
      %4552 = vmatpush2.bf16.msra.mxu0 %v4047
      %4553 = vmatprep.subr.bf16.mxu0 0
      %4554 = vmatpush2.bf16.msra.mxu0 %v4040
      %4555 = vmatprep.subr.bf16.mxu0 0
      %4556 = vmatpush2.bf16.msra.mxu0 %v4033
      %4557 = vmatprep.subr.bf16.mxu0 0
      %4558 = vmatpush2.bf16.msra.mxu0 %v4026
      %4559 = vmatprep.mubr.bf16.mxu0 %v3432
      %4560 = vmatmul.mubr.bf16.gmra.mxu0 %v3431
      %v4561 = vpop.f32.mrf.mxu0
      %v4562 = vadd.f32 %v3604, %v4561
      %v4563 = vpop.f32.mrf.mxu0
      %v4564 = vpop.f32.mrf.mxu0
      %v4565 = vadd.f32 %v3604, %v4564
      %v4566 = vpop.f32.mrf.mxu0
      %4567 = vmatprep.mubr.bf16.mxu0 %v3434
      %4568 = vmatmul.mubr.bf16.gmra.mxu0 %v3433
      %v4569 = vpop.f32.mrf.mxu0
      %v4570 = vadd.f32 %v3604, %v4569
      %v4571 = vpop.f32.mrf.mxu0
      %v4572 = vpop.f32.mrf.mxu0
      %v4573 = vadd.f32 %v3604, %v4572
      %v4574 = vpop.f32.mrf.mxu0
      %4575 = vmatprep.mubr.bf16.mxu0 %v3436
      %4576 = vmatmul.mubr.bf16.gmra.mxu0 %v3435
      %v4577 = vpop.f32.mrf.mxu0
      %v4578 = vadd.f32 %v3604, %v4577
      %v4579 = vpop.f32.mrf.mxu0
      %v4580 = vpop.f32.mrf.mxu0
      %v4581 = vadd.f32 %v3604, %v4580
      %v4582 = vpop.f32.mrf.mxu0
      %4583 = vmatprep.mubr.bf16.mxu0 %v3438
      %4584 = vmatmul.mubr.bf16.gmra.mxu0 %v3437
      %v4585 = vpop.f32.mrf.mxu0
      %v4586 = vadd.f32 %v3604, %v4585
      %v4587 = vpop.f32.mrf.mxu0
      %v4588 = vpop.f32.mrf.mxu0
      %v4589 = vadd.f32 %v3604, %v4588
      %v4590 = vpop.f32.mrf.mxu0
      %4591 = vmatprep.mubr.bf16.mxu0 %v3440
      %4592 = vmatmul.mubr.bf16.gmra.mxu0 %v3439
      %v4593 = vpop.f32.mrf.mxu0
      %v4594 = vadd.f32 %v3604, %v4593
      %v4595 = vpop.f32.mrf.mxu0
      %v4596 = vpop.f32.mrf.mxu0
      %v4597 = vadd.f32 %v3604, %v4596
      %v4598 = vpop.f32.mrf.mxu0
      %4599 = vmatprep.mubr.bf16.mxu0 %v3442
      %4600 = vmatmul.mubr.bf16.gmra.mxu0 %v3441
      %v4601 = vpop.f32.mrf.mxu0
      %v4602 = vadd.f32 %v3604, %v4601
      %v4603 = vpop.f32.mrf.mxu0
      %v4604 = vpop.f32.mrf.mxu0
      %v4605 = vadd.f32 %v3604, %v4604
      %v4606 = vpop.f32.mrf.mxu0
      %4607 = vmatprep.mubr.bf16.mxu0 %v3444
      %4608 = vmatmul.mubr.bf16.gmra.mxu0 %v3443
      %v4609 = vpop.f32.mrf.mxu0
      %v4610 = vadd.f32 %v3604, %v4609
      %v4611 = vpop.f32.mrf.mxu0
      %v4612 = vpop.f32.mrf.mxu0
      %v4613 = vadd.f32 %v3604, %v4612
      %v4614 = vpop.f32.mrf.mxu0
      %4615 = vmatprep.mubr.bf16.mxu0 %v3446
      %4616 = vmatmul.mubr.bf16.gmra.mxu0 %v3445
      %v4617 = vpop.f32.mrf.mxu0
      %v4618 = vadd.f32 %v3604, %v4617
      %v4619 = vpop.f32.mrf.mxu0
      %v4620 = vpop.f32.mrf.mxu0
      %v4621 = vadd.f32 %v3604, %v4620
      %v4622 = vpop.f32.mrf.mxu0
      %4623 = vdwg.mxu0
      %v4624 = vxor.u32 %v4223, 2147483648
      %v4625 = vxor.u32 %v4225, 2147483648
      %v4626 = vxor.u32 %v4336, 2147483648
      %v4627 = vxor.u32 %v4338, 2147483648
      %v4628 = vxor.u32 %v4449, 2147483648
      %v4629 = vxor.u32 %v4451, 2147483648
      %v4630 = vxor.u32 %v4562, 2147483648
      %v4631 = vxor.u32 %v4227, 2147483648
      %v4632 = vxor.u32 %v4229, 2147483648
      %v4633 = vxor.u32 %v4340, 2147483648
      %v4634 = vxor.u32 %v4342, 2147483648
      %v4635 = vxor.u32 %v4453, 2147483648
      %v4636 = vxor.u32 %v4455, 2147483648
      %v4637 = vxor.u32 %v4565, 2147483648
      %v4638 = vxor.u32 %v4233, 2147483648
      %v4639 = vxor.u32 %v4235, 2147483648
      %v4640 = vxor.u32 %v4346, 2147483648
      %v4641 = vxor.u32 %v4348, 2147483648
      %v4642 = vxor.u32 %v4459, 2147483648
      %v4643 = vxor.u32 %v4461, 2147483648
      %v4644 = vxor.u32 %v4570, 2147483648
      %v4645 = vxor.u32 %v4237, 2147483648
      %v4646 = vxor.u32 %v4239, 2147483648
      %v4647 = vxor.u32 %v4350, 2147483648
      %v4648 = vxor.u32 %v4352, 2147483648
      %v4649 = vxor.u32 %v4463, 2147483648
      %v4650 = vxor.u32 %v4465, 2147483648
      %v4651 = vxor.u32 %v4573, 2147483648
      %v4652 = vxor.u32 %v4243, 2147483648
      %v4653 = vxor.u32 %v4245, 2147483648
      %v4654 = vxor.u32 %v4356, 2147483648
      %v4655 = vxor.u32 %v4358, 2147483648
      %v4656 = vxor.u32 %v4469, 2147483648
      %v4657 = vxor.u32 %v4471, 2147483648
      %v4658 = vxor.u32 %v4578, 2147483648
      %v4659 = vxor.u32 %v4247, 2147483648
      %v4660 = vxor.u32 %v4249, 2147483648
      %v4661 = vxor.u32 %v4360, 2147483648
      %v4662 = vxor.u32 %v4362, 2147483648
      %v4663 = vxor.u32 %v4473, 2147483648
      %v4664 = vxor.u32 %v4475, 2147483648
      %v4665 = vxor.u32 %v4581, 2147483648
      %v4666 = vxor.u32 %v4253, 2147483648
      %v4667 = vxor.u32 %v4255, 2147483648
      %v4668 = vxor.u32 %v4366, 2147483648
      %v4669 = vxor.u32 %v4368, 2147483648
      %v4670 = vxor.u32 %v4479, 2147483648
      %v4671 = vxor.u32 %v4481, 2147483648
      %v4672 = vxor.u32 %v4586, 2147483648
      %v4673 = vxor.u32 %v4257, 2147483648
      %v4674 = vxor.u32 %v4259, 2147483648
      %v4675 = vxor.u32 %v4370, 2147483648
      %v4676 = vxor.u32 %v4372, 2147483648
      %v4677 = vxor.u32 %v4483, 2147483648
      %v4678 = vxor.u32 %v4485, 2147483648
      %v4679 = vxor.u32 %v4589, 2147483648
      %v4680 = vxor.u32 %v4263, 2147483648
      %v4681 = vxor.u32 %v4265, 2147483648
      %v4682 = vxor.u32 %v4376, 2147483648
      %v4683 = vxor.u32 %v4378, 2147483648
      %v4684 = vxor.u32 %v4489, 2147483648
      %v4685 = vxor.u32 %v4491, 2147483648
      %v4686 = vxor.u32 %v4594, 2147483648
      %v4687 = vxor.u32 %v4267, 2147483648
      %v4688 = vxor.u32 %v4269, 2147483648
      %v4689 = vxor.u32 %v4380, 2147483648
      %v4690 = vxor.u32 %v4382, 2147483648
      %v4691 = vxor.u32 %v4493, 2147483648
      %v4692 = vxor.u32 %v4495, 2147483648
      %v4693 = vxor.u32 %v4597, 2147483648
      %v4694 = vxor.u32 %v4273, 2147483648
      %v4695 = vxor.u32 %v4275, 2147483648
      %v4696 = vxor.u32 %v4386, 2147483648
      %v4697 = vxor.u32 %v4388, 2147483648
      %v4698 = vxor.u32 %v4499, 2147483648
      %v4699 = vxor.u32 %v4501, 2147483648
      %v4700 = vxor.u32 %v4602, 2147483648
      %v4701 = vxor.u32 %v4277, 2147483648
      %v4702 = vxor.u32 %v4279, 2147483648
      %v4703 = vxor.u32 %v4390, 2147483648
      %v4704 = vxor.u32 %v4392, 2147483648
      %v4705 = vxor.u32 %v4503, 2147483648
      %v4706 = vxor.u32 %v4505, 2147483648
      %v4707 = vxor.u32 %v4605, 2147483648
      %v4708 = vxor.u32 %v4283, 2147483648
      %v4709 = vxor.u32 %v4285, 2147483648
      %v4710 = vxor.u32 %v4396, 2147483648
      %v4711 = vxor.u32 %v4398, 2147483648
      %v4712 = vxor.u32 %v4509, 2147483648
      %v4713 = vxor.u32 %v4511, 2147483648
      %v4714 = vxor.u32 %v4610, 2147483648
      %v4715 = vxor.u32 %v4287, 2147483648
      %v4716 = vxor.u32 %v4289, 2147483648
      %v4717 = vxor.u32 %v4400, 2147483648
      %v4718 = vxor.u32 %v4402, 2147483648
      %v4719 = vxor.u32 %v4513, 2147483648
      %v4720 = vxor.u32 %v4515, 2147483648
      %v4721 = vxor.u32 %v4613, 2147483648
      %v4722 = vxor.u32 %v4293, 2147483648
      %v4723 = vxor.u32 %v4295, 2147483648
      %v4724 = vxor.u32 %v4406, 2147483648
      %v4725 = vxor.u32 %v4408, 2147483648
      %v4726 = vxor.u32 %v4519, 2147483648
      %v4727 = vxor.u32 %v4521, 2147483648
      %v4728 = vxor.u32 %v4618, 2147483648
      %v4729 = vxor.u32 %v4297, 2147483648
      %v4730 = vxor.u32 %v4299, 2147483648
      %v4731 = vxor.u32 %v4410, 2147483648
      %v4732 = vxor.u32 %v4412, 2147483648
      %v4733 = vxor.u32 %v4523, 2147483648
      %v4734 = vxor.u32 %v4525, 2147483648
      %v4735 = vxor.u32 %v4621, 2147483648
      %v4736 = vmul.f32 %v4624, 1.442695
      %v4737 = vpow.pop %v4736
      %v4738 = vmul.f32 %v4625, 1.442695
      %v4739 = vpow.pop %v4738
      %v4740 = vmul.f32 %v4626, 1.442695
      %v4741 = vpow.pop %v4740
      %v4742 = vmul.f32 %v4627, 1.442695
      %v4743 = vpow.pop %v4742
      %v4744 = vmul.f32 %v4628, 1.442695
      %v4745 = vpow.pop %v4744
      %v4746 = vmul.f32 %v4629, 1.442695
      %v4747 = vpow.pop %v4746
      %v4748 = vmul.f32 %v4630, 1.442695
      %v4749 = vpow.pop %v4748
      %v4750 = vmul.f32 %v4631, 1.442695
      %v4751 = vpow.pop %v4750
      %v4752 = vmul.f32 %v4632, 1.442695
      %v4753 = vpow.pop %v4752
      %v4754 = vmul.f32 %v4633, 1.442695
      %v4755 = vpow.pop %v4754
      %v4756 = vmul.f32 %v4634, 1.442695
      %v4757 = vpow.pop %v4756
      %v4758 = vmul.f32 %v4635, 1.442695
      %v4759 = vpow.pop %v4758
      %v4760 = vmul.f32 %v4636, 1.442695
      %v4761 = vpow.pop %v4760
      %v4762 = vmul.f32 %v4637, 1.442695
      %v4763 = vpow.pop %v4762
      %v4764 = vmul.f32 %v4638, 1.442695
      %v4765 = vpow.pop %v4764
      %v4766 = vmul.f32 %v4639, 1.442695
      %v4767 = vpow.pop %v4766
      %v4768 = vmul.f32 %v4640, 1.442695
      %v4769 = vpow.pop %v4768
      %v4770 = vmul.f32 %v4641, 1.442695
      %v4771 = vpow.pop %v4770
      %v4772 = vmul.f32 %v4642, 1.442695
      %v4773 = vpow.pop %v4772
      %v4774 = vmul.f32 %v4643, 1.442695
      %v4775 = vpow.pop %v4774
      %v4776 = vmul.f32 %v4644, 1.442695
      %v4777 = vpow.pop %v4776
      %v4778 = vmul.f32 %v4645, 1.442695
      %v4779 = vpow.pop %v4778
      %v4780 = vmul.f32 %v4646, 1.442695
      %v4781 = vpow.pop %v4780
      %v4782 = vmul.f32 %v4647, 1.442695
      %v4783 = vpow.pop %v4782
      %v4784 = vmul.f32 %v4648, 1.442695
      %v4785 = vpow.pop %v4784
      %v4786 = vmul.f32 %v4649, 1.442695
      %v4787 = vpow.pop %v4786
      %v4788 = vmul.f32 %v4650, 1.442695
      %v4789 = vpow.pop %v4788
      %v4790 = vmul.f32 %v4651, 1.442695
      %v4791 = vpow.pop %v4790
      %v4792 = vmul.f32 %v4652, 1.442695
      %v4793 = vpow.pop %v4792
      %v4794 = vmul.f32 %v4653, 1.442695
      %v4795 = vpow.pop %v4794
      %v4796 = vmul.f32 %v4654, 1.442695
      %v4797 = vpow.pop %v4796
      %v4798 = vmul.f32 %v4655, 1.442695
      %v4799 = vpow.pop %v4798
      %v4800 = vmul.f32 %v4656, 1.442695
      %v4801 = vpow.pop %v4800
      %v4802 = vmul.f32 %v4657, 1.442695
      %v4803 = vpow.pop %v4802
      %v4804 = vmul.f32 %v4658, 1.442695
      %v4805 = vpow.pop %v4804
      %v4806 = vmul.f32 %v4659, 1.442695
      %v4807 = vpow.pop %v4806
      %v4808 = vmul.f32 %v4660, 1.442695
      %v4809 = vpow.pop %v4808
      %v4810 = vmul.f32 %v4661, 1.442695
      %v4811 = vpow.pop %v4810
      %v4812 = vmul.f32 %v4662, 1.442695
      %v4813 = vpow.pop %v4812
      %v4814 = vmul.f32 %v4663, 1.442695
      %v4815 = vpow.pop %v4814
      %v4816 = vmul.f32 %v4664, 1.442695
      %v4817 = vpow.pop %v4816
      %v4818 = vmul.f32 %v4665, 1.442695
      %v4819 = vpow.pop %v4818
      %v4820 = vmul.f32 %v4666, 1.442695
      %v4821 = vpow.pop %v4820
      %v4822 = vmul.f32 %v4667, 1.442695
      %v4823 = vpow.pop %v4822
      %v4824 = vmul.f32 %v4668, 1.442695
      %v4825 = vpow.pop %v4824
      %v4826 = vmul.f32 %v4669, 1.442695
      %v4827 = vpow.pop %v4826
      %v4828 = vmul.f32 %v4670, 1.442695
      %v4829 = vpow.pop %v4828
      %v4830 = vmul.f32 %v4671, 1.442695
      %v4831 = vpow.pop %v4830
      %v4832 = vmul.f32 %v4672, 1.442695
      %v4833 = vpow.pop %v4832
      %v4834 = vmul.f32 %v4673, 1.442695
      %v4835 = vpow.pop %v4834
      %v4836 = vmul.f32 %v4674, 1.442695
      %v4837 = vpow.pop %v4836
      %v4838 = vmul.f32 %v4675, 1.442695
      %v4839 = vpow.pop %v4838
      %v4840 = vmul.f32 %v4676, 1.442695
      %v4841 = vpow.pop %v4840
      %v4842 = vmul.f32 %v4677, 1.442695
      %v4843 = vpow.pop %v4842
      %v4844 = vmul.f32 %v4678, 1.442695
      %v4845 = vpow.pop %v4844
      %v4846 = vmul.f32 %v4679, 1.442695
      %v4847 = vpow.pop %v4846
      %v4848 = vmul.f32 %v4680, 1.442695
      %v4849 = vpow.pop %v4848
      %v4850 = vmul.f32 %v4681, 1.442695
      %v4851 = vpow.pop %v4850
      %v4852 = vmul.f32 %v4682, 1.442695
      %v4853 = vpow.pop %v4852
      %v4854 = vmul.f32 %v4683, 1.442695
      %v4855 = vpow.pop %v4854
      %v4856 = vmul.f32 %v4684, 1.442695
      %v4857 = vpow.pop %v4856
      %v4858 = vmul.f32 %v4685, 1.442695
      %v4859 = vpow.pop %v4858
      %v4860 = vmul.f32 %v4686, 1.442695
      %v4861 = vpow.pop %v4860
      %v4862 = vmul.f32 %v4687, 1.442695
      %v4863 = vpow.pop %v4862
      %v4864 = vmul.f32 %v4688, 1.442695
      %v4865 = vpow.pop %v4864
      %v4866 = vmul.f32 %v4689, 1.442695
      %v4867 = vpow.pop %v4866
      %v4868 = vmul.f32 %v4690, 1.442695
      %v4869 = vpow.pop %v4868
      %v4870 = vmul.f32 %v4691, 1.442695
      %v4871 = vpow.pop %v4870
      %v4872 = vmul.f32 %v4692, 1.442695
      %v4873 = vpow.pop %v4872
      %v4874 = vmul.f32 %v4693, 1.442695
      %v4875 = vpow.pop %v4874
      %v4876 = vmul.f32 %v4694, 1.442695
      %v4877 = vpow.pop %v4876
      %v4878 = vmul.f32 %v4695, 1.442695
      %v4879 = vpow.pop %v4878
      %v4880 = vmul.f32 %v4696, 1.442695
      %v4881 = vpow.pop %v4880
      %v4882 = vmul.f32 %v4697, 1.442695
      %v4883 = vpow.pop %v4882
      %v4884 = vmul.f32 %v4698, 1.442695
      %v4885 = vpow.pop %v4884
      %v4886 = vmul.f32 %v4699, 1.442695
      %v4887 = vpow.pop %v4886
      %v4888 = vmul.f32 %v4700, 1.442695
      %v4889 = vpow.pop %v4888
      %v4890 = vmul.f32 %v4701, 1.442695
      %v4891 = vpow.pop %v4890
      %v4892 = vmul.f32 %v4702, 1.442695
      %v4893 = vpow.pop %v4892
      %v4894 = vmul.f32 %v4703, 1.442695
      %v4895 = vpow.pop %v4894
      %v4896 = vmul.f32 %v4704, 1.442695
      %v4897 = vpow.pop %v4896
      %v4898 = vmul.f32 %v4705, 1.442695
      %v4899 = vpow.pop %v4898
      %v4900 = vmul.f32 %v4706, 1.442695
      %v4901 = vpow.pop %v4900
      %v4902 = vmul.f32 %v4707, 1.442695
      %v4903 = vpow.pop %v4902
      %v4904 = vmul.f32 %v4708, 1.442695
      %v4905 = vpow.pop %v4904
      %v4906 = vmul.f32 %v4709, 1.442695
      %v4907 = vpow.pop %v4906
      %v4908 = vmul.f32 %v4710, 1.442695
      %v4909 = vpow.pop %v4908
      %v4910 = vmul.f32 %v4711, 1.442695
      %v4911 = vpow.pop %v4910
      %v4912 = vmul.f32 %v4712, 1.442695
      %v4913 = vpow.pop %v4912
      %v4914 = vmul.f32 %v4713, 1.442695
      %v4915 = vpow.pop %v4914
      %v4916 = vmul.f32 %v4714, 1.442695
      %v4917 = vpow.pop %v4916
      %v4918 = vmul.f32 %v4715, 1.442695
      %v4919 = vpow.pop %v4918
      %v4920 = vmul.f32 %v4716, 1.442695
      %v4921 = vpow.pop %v4920
      %v4922 = vmul.f32 %v4717, 1.442695
      %v4923 = vpow.pop %v4922
      %v4924 = vmul.f32 %v4718, 1.442695
      %v4925 = vpow.pop %v4924
      %v4926 = vmul.f32 %v4719, 1.442695
      %v4927 = vpow.pop %v4926
      %v4928 = vmul.f32 %v4720, 1.442695
      %v4929 = vpow.pop %v4928
      %v4930 = vmul.f32 %v4721, 1.442695
      %v4931 = vpow.pop %v4930
      %v4932 = vmul.f32 %v4722, 1.442695
      %v4933 = vpow.pop %v4932
      %v4934 = vmul.f32 %v4723, 1.442695
      %v4935 = vpow.pop %v4934
      %v4936 = vmul.f32 %v4724, 1.442695
      %v4937 = vpow.pop %v4936
      %v4938 = vmul.f32 %v4725, 1.442695
      %v4939 = vpow.pop %v4938
      %v4940 = vmul.f32 %v4726, 1.442695
      %v4941 = vpow.pop %v4940
      %v4942 = vmul.f32 %v4727, 1.442695
      %v4943 = vpow.pop %v4942
      %v4944 = vmul.f32 %v4728, 1.442695
      %v4945 = vpow.pop %v4944
      %v4946 = vmul.f32 %v4729, 1.442695
      %v4947 = vpow.pop %v4946
      %v4948 = vmul.f32 %v4730, 1.442695
      %v4949 = vpow.pop %v4948
      %v4950 = vmul.f32 %v4731, 1.442695
      %v4951 = vpow.pop %v4950
      %v4952 = vmul.f32 %v4732, 1.442695
      %v4953 = vpow.pop %v4952
      %v4954 = vmul.f32 %v4733, 1.442695
      %v4955 = vpow.pop %v4954
      %v4956 = vmul.f32 %v4734, 1.442695
      %v4957 = vpow.pop %v4956
      %v4958 = vmul.f32 %v4735, 1.442695
      %v4959 = vpow.pop %v4958
      %v4960 = vadd.f32 %v4737, 1.0
      %v4961 = vadd.f32 %v4739, 1.0
      %v4962 = vadd.f32 %v4741, 1.0
      %v4963 = vadd.f32 %v4743, 1.0
      %v4964 = vadd.f32 %v4745, 1.0
      %v4965 = vadd.f32 %v4747, 1.0
      %v4966 = vadd.f32 %v4749, 1.0
      %v4967 = vadd.f32 %v4751, 1.0
      %v4968 = vadd.f32 %v4753, 1.0
      %v4969 = vadd.f32 %v4755, 1.0
      %v4970 = vadd.f32 %v4757, 1.0
      %v4971 = vadd.f32 %v4759, 1.0
      %v4972 = vadd.f32 %v4761, 1.0
      %v4973 = vadd.f32 %v4763, 1.0
      %v4974 = vadd.f32 %v4765, 1.0
      %v4975 = vadd.f32 %v4767, 1.0
      %v4976 = vadd.f32 %v4769, 1.0
      %v4977 = vadd.f32 %v4771, 1.0
      %v4978 = vadd.f32 %v4773, 1.0
      %v4979 = vadd.f32 %v4775, 1.0
      %v4980 = vadd.f32 %v4777, 1.0
      %v4981 = vadd.f32 %v4779, 1.0
      %v4982 = vadd.f32 %v4781, 1.0
      %v4983 = vadd.f32 %v4783, 1.0
      %v4984 = vadd.f32 %v4785, 1.0
      %v4985 = vadd.f32 %v4787, 1.0
      %v4986 = vadd.f32 %v4789, 1.0
      %v4987 = vadd.f32 %v4791, 1.0
      %v4988 = vadd.f32 %v4793, 1.0
      %v4989 = vadd.f32 %v4795, 1.0
      %v4990 = vadd.f32 %v4797, 1.0
      %v4991 = vadd.f32 %v4799, 1.0
      %v4992 = vadd.f32 %v4801, 1.0
      %v4993 = vadd.f32 %v4803, 1.0
      %v4994 = vadd.f32 %v4805, 1.0
      %v4995 = vadd.f32 %v4807, 1.0
      %v4996 = vadd.f32 %v4809, 1.0
      %v4997 = vadd.f32 %v4811, 1.0
      %v4998 = vadd.f32 %v4813, 1.0
      %v4999 = vadd.f32 %v4815, 1.0
      %v5000 = vadd.f32 %v4817, 1.0
      %v5001 = vadd.f32 %v4819, 1.0
      %v5002 = vadd.f32 %v4821, 1.0
      %v5003 = vadd.f32 %v4823, 1.0
      %v5004 = vadd.f32 %v4825, 1.0
      %v5005 = vadd.f32 %v4827, 1.0
      %v5006 = vadd.f32 %v4829, 1.0
      %v5007 = vadd.f32 %v4831, 1.0
      %v5008 = vadd.f32 %v4833, 1.0
      %v5009 = vadd.f32 %v4835, 1.0
      %v5010 = vadd.f32 %v4837, 1.0
      %v5011 = vadd.f32 %v4839, 1.0
      %v5012 = vadd.f32 %v4841, 1.0
      %v5013 = vadd.f32 %v4843, 1.0
      %v5014 = vadd.f32 %v4845, 1.0
      %v5015 = vadd.f32 %v4847, 1.0
      %v5016 = vadd.f32 %v4849, 1.0
      %v5017 = vadd.f32 %v4851, 1.0
      %v5018 = vadd.f32 %v4853, 1.0
      %v5019 = vadd.f32 %v4855, 1.0
      %v5020 = vadd.f32 %v4857, 1.0
      %v5021 = vadd.f32 %v4859, 1.0
      %v5022 = vadd.f32 %v4861, 1.0
      %v5023 = vadd.f32 %v4863, 1.0
      %v5024 = vadd.f32 %v4865, 1.0
      %v5025 = vadd.f32 %v4867, 1.0
      %v5026 = vadd.f32 %v4869, 1.0
      %v5027 = vadd.f32 %v4871, 1.0
      %v5028 = vadd.f32 %v4873, 1.0
      %v5029 = vadd.f32 %v4875, 1.0
      %v5030 = vadd.f32 %v4877, 1.0
      %v5031 = vadd.f32 %v4879, 1.0
      %v5032 = vadd.f32 %v4881, 1.0
      %v5033 = vadd.f32 %v4883, 1.0
      %v5034 = vadd.f32 %v4885, 1.0
      %v5035 = vadd.f32 %v4887, 1.0
      %v5036 = vadd.f32 %v4889, 1.0
      %v5037 = vadd.f32 %v4891, 1.0
      %v5038 = vadd.f32 %v4893, 1.0
      %v5039 = vadd.f32 %v4895, 1.0
      %v5040 = vadd.f32 %v4897, 1.0
      %v5041 = vadd.f32 %v4899, 1.0
      %v5042 = vadd.f32 %v4901, 1.0
      %v5043 = vadd.f32 %v4903, 1.0
      %v5044 = vadd.f32 %v4905, 1.0
      %v5045 = vadd.f32 %v4907, 1.0
      %v5046 = vadd.f32 %v4909, 1.0
      %v5047 = vadd.f32 %v4911, 1.0
      %v5048 = vadd.f32 %v4913, 1.0
      %v5049 = vadd.f32 %v4915, 1.0
      %v5050 = vadd.f32 %v4917, 1.0
      %v5051 = vadd.f32 %v4919, 1.0
      %v5052 = vadd.f32 %v4921, 1.0
      %v5053 = vadd.f32 %v4923, 1.0
      %v5054 = vadd.f32 %v4925, 1.0
      %v5055 = vadd.f32 %v4927, 1.0
      %v5056 = vadd.f32 %v4929, 1.0
      %v5057 = vadd.f32 %v4931, 1.0
      %v5058 = vadd.f32 %v4933, 1.0
      %v5059 = vadd.f32 %v4935, 1.0
      %v5060 = vadd.f32 %v4937, 1.0
      %v5061 = vadd.f32 %v4939, 1.0
      %v5062 = vadd.f32 %v4941, 1.0
      %v5063 = vadd.f32 %v4943, 1.0
      %v5064 = vadd.f32 %v4945, 1.0
      %v5065 = vadd.f32 %v4947, 1.0
      %v5066 = vadd.f32 %v4949, 1.0
      %v5067 = vadd.f32 %v4951, 1.0
      %v5068 = vadd.f32 %v4953, 1.0
      %v5069 = vadd.f32 %v4955, 1.0
      %v5070 = vadd.f32 %v4957, 1.0
      %v5071 = vadd.f32 %v4959, 1.0
      %v5072 = vrcp.pop %v4960
      %v5073 = vmul.f32 1.0, %v5072
      %v5074 = vrcp.pop %v4961
      %v5075 = vmul.f32 1.0, %v5074
      %v5076 = vrcp.pop %v4962
      %v5077 = vmul.f32 1.0, %v5076
      %v5078 = vrcp.pop %v4963
      %v5079 = vmul.f32 1.0, %v5078
      %v5080 = vrcp.pop %v4964
      %v5081 = vmul.f32 1.0, %v5080
      %v5082 = vrcp.pop %v4965
      %v5083 = vmul.f32 1.0, %v5082
      %v5084 = vrcp.pop %v4966
      %v5085 = vmul.f32 1.0, %v5084
      %v5086 = vrcp.pop %v4967
      %v5087 = vmul.f32 1.0, %v5086
      %v5088 = vrcp.pop %v4968
      %v5089 = vmul.f32 1.0, %v5088
      %v5090 = vrcp.pop %v4969
      %v5091 = vmul.f32 1.0, %v5090
      %v5092 = vrcp.pop %v4970
      %v5093 = vmul.f32 1.0, %v5092
      %v5094 = vrcp.pop %v4971
      %v5095 = vmul.f32 1.0, %v5094
      %v5096 = vrcp.pop %v4972
      %v5097 = vmul.f32 1.0, %v5096
      %v5098 = vrcp.pop %v4973
      %v5099 = vmul.f32 1.0, %v5098
      %v5100 = vrcp.pop %v4974
      %v5101 = vmul.f32 1.0, %v5100
      %v5102 = vrcp.pop %v4975
      %v5103 = vmul.f32 1.0, %v5102
      %v5104 = vrcp.pop %v4976
      %v5105 = vmul.f32 1.0, %v5104
      %v5106 = vrcp.pop %v4977
      %v5107 = vmul.f32 1.0, %v5106
      %v5108 = vrcp.pop %v4978
      %v5109 = vmul.f32 1.0, %v5108
      %v5110 = vrcp.pop %v4979
      %v5111 = vmul.f32 1.0, %v5110
      %v5112 = vrcp.pop %v4980
      %v5113 = vmul.f32 1.0, %v5112
      %v5114 = vrcp.pop %v4981
      %v5115 = vmul.f32 1.0, %v5114
      %v5116 = vrcp.pop %v4982
      %v5117 = vmul.f32 1.0, %v5116
      %v5118 = vrcp.pop %v4983
      %v5119 = vmul.f32 1.0, %v5118
      %v5120 = vrcp.pop %v4984
      %v5121 = vmul.f32 1.0, %v5120
      %v5122 = vrcp.pop %v4985
      %v5123 = vmul.f32 1.0, %v5122
      %v5124 = vrcp.pop %v4986
      %v5125 = vmul.f32 1.0, %v5124
      %v5126 = vrcp.pop %v4987
      %v5127 = vmul.f32 1.0, %v5126
      %v5128 = vrcp.pop %v4988
      %v5129 = vmul.f32 1.0, %v5128
      %v5130 = vrcp.pop %v4989
      %v5131 = vmul.f32 1.0, %v5130
      %v5132 = vrcp.pop %v4990
      %v5133 = vmul.f32 1.0, %v5132
      %v5134 = vrcp.pop %v4991
      %v5135 = vmul.f32 1.0, %v5134
      %v5136 = vrcp.pop %v4992
      %v5137 = vmul.f32 1.0, %v5136
      %v5138 = vrcp.pop %v4993
      %v5139 = vmul.f32 1.0, %v5138
      %v5140 = vrcp.pop %v4994
      %v5141 = vmul.f32 1.0, %v5140
      %v5142 = vrcp.pop %v4995
      %v5143 = vmul.f32 1.0, %v5142
      %v5144 = vrcp.pop %v4996
      %v5145 = vmul.f32 1.0, %v5144
      %v5146 = vrcp.pop %v4997
      %v5147 = vmul.f32 1.0, %v5146
      %v5148 = vrcp.pop %v4998
      %v5149 = vmul.f32 1.0, %v5148
      %v5150 = vrcp.pop %v4999
      %v5151 = vmul.f32 1.0, %v5150
      %v5152 = vrcp.pop %v5000
      %v5153 = vmul.f32 1.0, %v5152
      %v5154 = vrcp.pop %v5001
      %v5155 = vmul.f32 1.0, %v5154
      %v5156 = vrcp.pop %v5002
      %v5157 = vmul.f32 1.0, %v5156
      %v5158 = vrcp.pop %v5003
      %v5159 = vmul.f32 1.0, %v5158
      %v5160 = vrcp.pop %v5004
      %v5161 = vmul.f32 1.0, %v5160
      %v5162 = vrcp.pop %v5005
      %v5163 = vmul.f32 1.0, %v5162
      %v5164 = vrcp.pop %v5006
      %v5165 = vmul.f32 1.0, %v5164
      %v5166 = vrcp.pop %v5007
      %v5167 = vmul.f32 1.0, %v5166
      %v5168 = vrcp.pop %v5008
      %v5169 = vmul.f32 1.0, %v5168
      %v5170 = vrcp.pop %v5009
      %v5171 = vmul.f32 1.0, %v5170
      %v5172 = vrcp.pop %v5010
      %v5173 = vmul.f32 1.0, %v5172
      %v5174 = vrcp.pop %v5011
      %v5175 = vmul.f32 1.0, %v5174
      %v5176 = vrcp.pop %v5012
      %v5177 = vmul.f32 1.0, %v5176
      %v5178 = vrcp.pop %v5013
      %v5179 = vmul.f32 1.0, %v5178
      %v5180 = vrcp.pop %v5014
      %v5181 = vmul.f32 1.0, %v5180
      %v5182 = vrcp.pop %v5015
      %v5183 = vmul.f32 1.0, %v5182
      %v5184 = vrcp.pop %v5016
      %v5185 = vmul.f32 1.0, %v5184
      %v5186 = vrcp.pop %v5017
      %v5187 = vmul.f32 1.0, %v5186
      %v5188 = vrcp.pop %v5018
      %v5189 = vmul.f32 1.0, %v5188
      %v5190 = vrcp.pop %v5019
      %v5191 = vmul.f32 1.0, %v5190
      %v5192 = vrcp.pop %v5020
      %v5193 = vmul.f32 1.0, %v5192
      %v5194 = vrcp.pop %v5021
      %v5195 = vmul.f32 1.0, %v5194
      %v5196 = vrcp.pop %v5022
      %v5197 = vmul.f32 1.0, %v5196
      %v5198 = vrcp.pop %v5023
      %v5199 = vmul.f32 1.0, %v5198
      %v5200 = vrcp.pop %v5024
      %v5201 = vmul.f32 1.0, %v5200
      %v5202 = vrcp.pop %v5025
      %v5203 = vmul.f32 1.0, %v5202
      %v5204 = vrcp.pop %v5026
      %v5205 = vmul.f32 1.0, %v5204
      %v5206 = vrcp.pop %v5027
      %v5207 = vmul.f32 1.0, %v5206
      %v5208 = vrcp.pop %v5028
      %v5209 = vmul.f32 1.0, %v5208
      %v5210 = vrcp.pop %v5029
      %v5211 = vmul.f32 1.0, %v5210
      %v5212 = vrcp.pop %v5030
      %v5213 = vmul.f32 1.0, %v5212
      %v5214 = vrcp.pop %v5031
      %v5215 = vmul.f32 1.0, %v5214
      %v5216 = vrcp.pop %v5032
      %v5217 = vmul.f32 1.0, %v5216
      %v5218 = vrcp.pop %v5033
      %v5219 = vmul.f32 1.0, %v5218
      %v5220 = vrcp.pop %v5034
      %v5221 = vmul.f32 1.0, %v5220
      %v5222 = vrcp.pop %v5035
      %v5223 = vmul.f32 1.0, %v5222
      %v5224 = vrcp.pop %v5036
      %v5225 = vmul.f32 1.0, %v5224
      %v5226 = vrcp.pop %v5037
      %v5227 = vmul.f32 1.0, %v5226
      %v5228 = vrcp.pop %v5038
      %v5229 = vmul.f32 1.0, %v5228
      %v5230 = vrcp.pop %v5039
      %v5231 = vmul.f32 1.0, %v5230
      %v5232 = vrcp.pop %v5040
      %v5233 = vmul.f32 1.0, %v5232
      %v5234 = vrcp.pop %v5041
      %v5235 = vmul.f32 1.0, %v5234
      %v5236 = vrcp.pop %v5042
      %v5237 = vmul.f32 1.0, %v5236
      %v5238 = vrcp.pop %v5043
      %v5239 = vmul.f32 1.0, %v5238
      %v5240 = vrcp.pop %v5044
      %v5241 = vmul.f32 1.0, %v5240
      %v5242 = vrcp.pop %v5045
      %v5243 = vmul.f32 1.0, %v5242
      %v5244 = vrcp.pop %v5046
      %v5245 = vmul.f32 1.0, %v5244
      %v5246 = vrcp.pop %v5047
      %v5247 = vmul.f32 1.0, %v5246
      %v5248 = vrcp.pop %v5048
      %v5249 = vmul.f32 1.0, %v5248
      %v5250 = vrcp.pop %v5049
      %v5251 = vmul.f32 1.0, %v5250
      %v5252 = vrcp.pop %v5050
      %v5253 = vmul.f32 1.0, %v5252
      %v5254 = vrcp.pop %v5051
      %v5255 = vmul.f32 1.0, %v5254
      %v5256 = vrcp.pop %v5052
      %v5257 = vmul.f32 1.0, %v5256
      %v5258 = vrcp.pop %v5053
      %v5259 = vmul.f32 1.0, %v5258
      %v5260 = vrcp.pop %v5054
      %v5261 = vmul.f32 1.0, %v5260
      %v5262 = vrcp.pop %v5055
      %v5263 = vmul.f32 1.0, %v5262
      %v5264 = vrcp.pop %v5056
      %v5265 = vmul.f32 1.0, %v5264
      %v5266 = vrcp.pop %v5057
      %v5267 = vmul.f32 1.0, %v5266
      %v5268 = vrcp.pop %v5058
      %v5269 = vmul.f32 1.0, %v5268
      %v5270 = vrcp.pop %v5059
      %v5271 = vmul.f32 1.0, %v5270
      %v5272 = vrcp.pop %v5060
      %v5273 = vmul.f32 1.0, %v5272
      %v5274 = vrcp.pop %v5061
      %v5275 = vmul.f32 1.0, %v5274
      %v5276 = vrcp.pop %v5062
      %v5277 = vmul.f32 1.0, %v5276
      %v5278 = vrcp.pop %v5063
      %v5279 = vmul.f32 1.0, %v5278
      %v5280 = vrcp.pop %v5064
      %v5281 = vmul.f32 1.0, %v5280
      %v5282 = vrcp.pop %v5065
      %v5283 = vmul.f32 1.0, %v5282
      %v5284 = vrcp.pop %v5066
      %v5285 = vmul.f32 1.0, %v5284
      %v5286 = vrcp.pop %v5067
      %v5287 = vmul.f32 1.0, %v5286
      %v5288 = vrcp.pop %v5068
      %v5289 = vmul.f32 1.0, %v5288
      %v5290 = vrcp.pop %v5069
      %v5291 = vmul.f32 1.0, %v5290
      %v5292 = vrcp.pop %v5070
      %v5293 = vmul.f32 1.0, %v5292
      %v5294 = vrcp.pop %v5071
      %v5295 = vmul.f32 1.0, %v5294
      %v5296 = vpack.c.bf16 %v5087, %v5073
      %v5297 = vpack.c.bf16 %v5089, %v5075
      %v5298 = vpack.c.bf16 %v5091, %v5077
      %v5299 = vpack.c.bf16 %v5093, %v5079
      %v5300 = vpack.c.bf16 %v5095, %v5081
      %v5301 = vpack.c.bf16 %v5097, %v5083
      %v5302 = vpack.c.bf16 %v5099, %v5085
      %v5303 = vpack.c.bf16 %v5115, %v5101
      %v5304 = vpack.c.bf16 %v5117, %v5103
      %v5305 = vpack.c.bf16 %v5119, %v5105
      %v5306 = vpack.c.bf16 %v5121, %v5107
      %v5307 = vpack.c.bf16 %v5123, %v5109
      %v5308 = vpack.c.bf16 %v5125, %v5111
      %v5309 = vpack.c.bf16 %v5127, %v5113
      %v5310 = vpack.c.bf16 %v5143, %v5129
      %v5311 = vpack.c.bf16 %v5145, %v5131
      %v5312 = vpack.c.bf16 %v5147, %v5133
      %v5313 = vpack.c.bf16 %v5149, %v5135
      %v5314 = vpack.c.bf16 %v5151, %v5137
      %v5315 = vpack.c.bf16 %v5153, %v5139
      %v5316 = vpack.c.bf16 %v5155, %v5141
      %v5317 = vpack.c.bf16 %v5171, %v5157
      %v5318 = vpack.c.bf16 %v5173, %v5159
      %v5319 = vpack.c.bf16 %v5175, %v5161
      %v5320 = vpack.c.bf16 %v5177, %v5163
      %v5321 = vpack.c.bf16 %v5179, %v5165
      %v5322 = vpack.c.bf16 %v5181, %v5167
      %v5323 = vpack.c.bf16 %v5183, %v5169
      %v5324 = vpack.c.bf16 %v5199, %v5185
      %v5325 = vpack.c.bf16 %v5201, %v5187
      %v5326 = vpack.c.bf16 %v5203, %v5189
      %v5327 = vpack.c.bf16 %v5205, %v5191
      %v5328 = vpack.c.bf16 %v5207, %v5193
      %v5329 = vpack.c.bf16 %v5209, %v5195
      %v5330 = vpack.c.bf16 %v5211, %v5197
      %v5331 = vpack.c.bf16 %v5227, %v5213
      %v5332 = vpack.c.bf16 %v5229, %v5215
      %v5333 = vpack.c.bf16 %v5231, %v5217
      %v5334 = vpack.c.bf16 %v5233, %v5219
      %v5335 = vpack.c.bf16 %v5235, %v5221
      %v5336 = vpack.c.bf16 %v5237, %v5223
      %v5337 = vpack.c.bf16 %v5239, %v5225
      %v5338 = vpack.c.bf16 %v5255, %v5241
      %v5339 = vpack.c.bf16 %v5257, %v5243
      %v5340 = vpack.c.bf16 %v5259, %v5245
      %v5341 = vpack.c.bf16 %v5261, %v5247
      %v5342 = vpack.c.bf16 %v5263, %v5249
      %v5343 = vpack.c.bf16 %v5265, %v5251
      %v5344 = vpack.c.bf16 %v5267, %v5253
      %v5345 = vpack.c.bf16 %v5283, %v5269
      %v5346 = vpack.c.bf16 %v5285, %v5271
      %v5347 = vpack.c.bf16 %v5287, %v5273
      %v5348 = vpack.c.bf16 %v5289, %v5275
      %v5349 = vpack.c.bf16 %v5291, %v5277
      %v5350 = vpack.c.bf16 %v5293, %v5279
      %v5351 = vpack.c.bf16 %v5295, %v5281
      %v5408 = vunpack.c.l.b16 %v5296
      %v5409 = vunpack.c.l.b16 %v5297
      %v5410 = vunpack.c.l.b16 %v5298
      %v5411 = vunpack.c.l.b16 %v5299
      %v5412 = vunpack.c.l.b16 %v5300
      %v5413 = vunpack.c.l.b16 %v5301
      %v5414 = vunpack.c.l.b16 %v5302
      %v5415 = vunpack.c.h.b16 %v5296
      %v5416 = vunpack.c.h.b16 %v5297
      %v5417 = vunpack.c.h.b16 %v5298
      %v5418 = vunpack.c.h.b16 %v5299
      %v5419 = vunpack.c.h.b16 %v5300
      %v5420 = vunpack.c.h.b16 %v5301
      %v5421 = vunpack.c.h.b16 %v5302
      %v5422 = vunpack.c.l.b16 %v5303
      %v5423 = vunpack.c.l.b16 %v5304
      %v5424 = vunpack.c.l.b16 %v5305
      %v5425 = vunpack.c.l.b16 %v5306
      %v5426 = vunpack.c.l.b16 %v5307
      %v5427 = vunpack.c.l.b16 %v5308
      %v5428 = vunpack.c.l.b16 %v5309
      %v5429 = vunpack.c.h.b16 %v5303
      %v5430 = vunpack.c.h.b16 %v5304
      %v5431 = vunpack.c.h.b16 %v5305
      %v5432 = vunpack.c.h.b16 %v5306
      %v5433 = vunpack.c.h.b16 %v5307
      %v5434 = vunpack.c.h.b16 %v5308
      %v5435 = vunpack.c.h.b16 %v5309
      %v5436 = vunpack.c.l.b16 %v5310
      %v5437 = vunpack.c.l.b16 %v5311
      %v5438 = vunpack.c.l.b16 %v5312
      %v5439 = vunpack.c.l.b16 %v5313
      %v5440 = vunpack.c.l.b16 %v5314
      %v5441 = vunpack.c.l.b16 %v5315
      %v5442 = vunpack.c.l.b16 %v5316
      %v5443 = vunpack.c.h.b16 %v5310
      %v5444 = vunpack.c.h.b16 %v5311
      %v5445 = vunpack.c.h.b16 %v5312
      %v5446 = vunpack.c.h.b16 %v5313
      %v5447 = vunpack.c.h.b16 %v5314
      %v5448 = vunpack.c.h.b16 %v5315
      %v5449 = vunpack.c.h.b16 %v5316
      %v5450 = vunpack.c.l.b16 %v5317
      %v5451 = vunpack.c.l.b16 %v5318
      %v5452 = vunpack.c.l.b16 %v5319
      %v5453 = vunpack.c.l.b16 %v5320
      %v5454 = vunpack.c.l.b16 %v5321
      %v5455 = vunpack.c.l.b16 %v5322
      %v5456 = vunpack.c.l.b16 %v5323
      %v5457 = vunpack.c.h.b16 %v5317
      %v5458 = vunpack.c.h.b16 %v5318
      %v5459 = vunpack.c.h.b16 %v5319
      %v5460 = vunpack.c.h.b16 %v5320
      %v5461 = vunpack.c.h.b16 %v5321
      %v5462 = vunpack.c.h.b16 %v5322
      %v5463 = vunpack.c.h.b16 %v5323
      %v5464 = vunpack.c.l.b16 %v5324
      %v5465 = vunpack.c.l.b16 %v5325
      %v5466 = vunpack.c.l.b16 %v5326
      %v5467 = vunpack.c.l.b16 %v5327
      %v5468 = vunpack.c.l.b16 %v5328
      %v5469 = vunpack.c.l.b16 %v5329
      %v5470 = vunpack.c.l.b16 %v5330
      %v5471 = vunpack.c.h.b16 %v5324
      %v5472 = vunpack.c.h.b16 %v5325
      %v5473 = vunpack.c.h.b16 %v5326
      %v5474 = vunpack.c.h.b16 %v5327
      %v5475 = vunpack.c.h.b16 %v5328
      %v5476 = vunpack.c.h.b16 %v5329
      %v5477 = vunpack.c.h.b16 %v5330
      %v5478 = vunpack.c.l.b16 %v5331
      %v5479 = vunpack.c.l.b16 %v5332
      %v5480 = vunpack.c.l.b16 %v5333
      %v5481 = vunpack.c.l.b16 %v5334
      %v5482 = vunpack.c.l.b16 %v5335
      %v5483 = vunpack.c.l.b16 %v5336
      %v5484 = vunpack.c.l.b16 %v5337
      %v5485 = vunpack.c.h.b16 %v5331
      %v5486 = vunpack.c.h.b16 %v5332
      %v5487 = vunpack.c.h.b16 %v5333
      %v5488 = vunpack.c.h.b16 %v5334
      %v5489 = vunpack.c.h.b16 %v5335
      %v5490 = vunpack.c.h.b16 %v5336
      %v5491 = vunpack.c.h.b16 %v5337
      %v5492 = vunpack.c.l.b16 %v5338
      %v5493 = vunpack.c.l.b16 %v5339
      %v5494 = vunpack.c.l.b16 %v5340
      %v5495 = vunpack.c.l.b16 %v5341
      %v5496 = vunpack.c.l.b16 %v5342
      %v5497 = vunpack.c.l.b16 %v5343
      %v5498 = vunpack.c.l.b16 %v5344
      %v5499 = vunpack.c.h.b16 %v5338
      %v5500 = vunpack.c.h.b16 %v5339
      %v5501 = vunpack.c.h.b16 %v5340
      %v5502 = vunpack.c.h.b16 %v5341
      %v5503 = vunpack.c.h.b16 %v5342
      %v5504 = vunpack.c.h.b16 %v5343
      %v5505 = vunpack.c.h.b16 %v5344
      %v5506 = vunpack.c.l.b16 %v5345
      %v5507 = vunpack.c.l.b16 %v5346
      %v5508 = vunpack.c.l.b16 %v5347
      %v5509 = vunpack.c.l.b16 %v5348
      %v5510 = vunpack.c.l.b16 %v5349
      %v5511 = vunpack.c.l.b16 %v5350
      %v5512 = vunpack.c.l.b16 %v5351
      %v5513 = vunpack.c.h.b16 %v5345
      %v5514 = vunpack.c.h.b16 %v5346
      %v5515 = vunpack.c.h.b16 %v5347
      %v5516 = vunpack.c.h.b16 %v5348
      %v5517 = vunpack.c.h.b16 %v5349
      %v5518 = vunpack.c.h.b16 %v5350
      %v5519 = vunpack.c.h.b16 %v5351
      %v5520 = vpack.c.b16 %v5409, %v5408
      %v5521 = vpack.c.b16 %v5411, %v5410
      %v5522 = vpack.c.b16 %v5413, %v5412
      %v5523 = vpack.c.b16 %v5414, %v5414
      %v5524 = vpack.c.b16 %v5416, %v5415
      %v5525 = vpack.c.b16 %v5418, %v5417
      %v5526 = vpack.c.b16 %v5420, %v5419
      %v5527 = vpack.c.b16 %v5421, %v5421
      %v5528 = vpack.c.b16 %v5423, %v5422
      %v5529 = vpack.c.b16 %v5425, %v5424
      %v5530 = vpack.c.b16 %v5427, %v5426
      %v5531 = vpack.c.b16 %v5428, %v5428
      %v5532 = vpack.c.b16 %v5430, %v5429
      %v5533 = vpack.c.b16 %v5432, %v5431
      %v5534 = vpack.c.b16 %v5434, %v5433
      %v5535 = vpack.c.b16 %v5435, %v5435
      %v5536 = vpack.c.b16 %v5437, %v5436
      %v5537 = vpack.c.b16 %v5439, %v5438
      %v5538 = vpack.c.b16 %v5441, %v5440
      %v5539 = vpack.c.b16 %v5442, %v5442
      %v5540 = vpack.c.b16 %v5444, %v5443
      %v5541 = vpack.c.b16 %v5446, %v5445
      %v5542 = vpack.c.b16 %v5448, %v5447
      %v5543 = vpack.c.b16 %v5449, %v5449
      %v5544 = vpack.c.b16 %v5451, %v5450
      %v5545 = vpack.c.b16 %v5453, %v5452
      %v5546 = vpack.c.b16 %v5455, %v5454
      %v5547 = vpack.c.b16 %v5456, %v5456
      %v5548 = vpack.c.b16 %v5458, %v5457
      %v5549 = vpack.c.b16 %v5460, %v5459
      %v5550 = vpack.c.b16 %v5462, %v5461
      %v5551 = vpack.c.b16 %v5463, %v5463
      %v5552 = vpack.c.b16 %v5465, %v5464
      %v5553 = vpack.c.b16 %v5467, %v5466
      %v5554 = vpack.c.b16 %v5469, %v5468
      %v5555 = vpack.c.b16 %v5470, %v5470
      %v5556 = vpack.c.b16 %v5472, %v5471
      %v5557 = vpack.c.b16 %v5474, %v5473
      %v5558 = vpack.c.b16 %v5476, %v5475
      %v5559 = vpack.c.b16 %v5477, %v5477
      %v5560 = vpack.c.b16 %v5479, %v5478
      %v5561 = vpack.c.b16 %v5481, %v5480
      %v5562 = vpack.c.b16 %v5483, %v5482
      %v5563 = vpack.c.b16 %v5484, %v5484
      %v5564 = vpack.c.b16 %v5486, %v5485
      %v5565 = vpack.c.b16 %v5488, %v5487
      %v5566 = vpack.c.b16 %v5490, %v5489
      %v5567 = vpack.c.b16 %v5491, %v5491
      %v5568 = vpack.c.b16 %v5493, %v5492
      %v5569 = vpack.c.b16 %v5495, %v5494
      %v5570 = vpack.c.b16 %v5497, %v5496
      %v5571 = vpack.c.b16 %v5498, %v5498
      %v5572 = vpack.c.b16 %v5500, %v5499
      %v5573 = vpack.c.b16 %v5502, %v5501
      %v5574 = vpack.c.b16 %v5504, %v5503
      %v5575 = vpack.c.b16 %v5505, %v5505
      %v5576 = vpack.c.b16 %v5507, %v5506
      %v5577 = vpack.c.b16 %v5509, %v5508
      %v5578 = vpack.c.b16 %v5511, %v5510
      %v5579 = vpack.c.b16 %v5512, %v5512
      %v5580 = vpack.c.b16 %v5514, %v5513
      %v5581 = vpack.c.b16 %v5516, %v5515
      %v5582 = vpack.c.b16 %v5518, %v5517
      %v5583 = vpack.c.b16 %v5519, %v5519
      %5648 = vst [vmem:[%s532] sm:$0xff] %v5520
      %5649 = vst [vmem:[%s532 + $0x8] sm:$0xff] %v5521
      %5650 = vst [vmem:[%s532 + $0x10] sm:$0xff] %v5522
      %5651 = vst [vmem:[%s532 + $0x18] sm:$0xf] %v5523
      %5652 = vst [vmem:[%s532 + $0x1c] sm:$0xff] %v5524
      %5653 = vst [vmem:[%s532 + $0x24] sm:$0xff] %v5525
      %5654 = vst [vmem:[%s532 + $0x2c] sm:$0xff] %v5526
      %5655 = vst [vmem:[%s532 + $0x34] sm:$0xf] %v5527
      %5656 = vst [vmem:[%s532 + $0x38] sm:$0xff] %v5528
      %5657 = vst [vmem:[%s532 + $0x40] sm:$0xff] %v5529
      %5658 = vst [vmem:[%s532 + $0x48] sm:$0xff] %v5530
      %5659 = vst [vmem:[%s532 + $0x50] sm:$0xf] %v5531
      %5660 = vst [vmem:[%s532 + $0x54] sm:$0xff] %v5532
      %5661 = vst [vmem:[%s532 + $0x5c] sm:$0xff] %v5533
      %5662 = vst [vmem:[%s532 + $0x64] sm:$0xff] %v5534
      %5663 = vst [vmem:[%s532 + $0x6c] sm:$0xf] %v5535
      %5664 = vst [vmem:[%s532 + $0x70] sm:$0xff] %v5536
      %5665 = vst [vmem:[%s532 + $0x78] sm:$0xff] %v5537
      %5666 = vst [vmem:[%s532 + $0x80] sm:$0xff] %v5538
      %5667 = vst [vmem:[%s532 + $0x88] sm:$0xf] %v5539
      %5668 = vst [vmem:[%s532 + $0x8c] sm:$0xff] %v5540
      %5669 = vst [vmem:[%s532 + $0x94] sm:$0xff] %v5541
      %5670 = vst [vmem:[%s532 + $0x9c] sm:$0xff] %v5542
      %5671 = vst [vmem:[%s532 + $0xa4] sm:$0xf] %v5543
      %5672 = vst [vmem:[%s532 + $0xa8] sm:$0xff] %v5544
      %5673 = vst [vmem:[%s532 + $0xb0] sm:$0xff] %v5545
      %5674 = vst [vmem:[%s532 + $0xb8] sm:$0xff] %v5546
      %5675 = vst [vmem:[%s532 + $0xc0] sm:$0xf] %v5547
      %5676 = vst [vmem:[%s532 + $0xc4] sm:$0xff] %v5548
      %5677 = vst [vmem:[%s532 + $0xcc] sm:$0xff] %v5549
      %5678 = vst [vmem:[%s532 + $0xd4] sm:$0xff] %v5550
      %5679 = vst [vmem:[%s532 + $0xdc] sm:$0xf] %v5551
      %5680 = vst [vmem:[%s532 + $0xe0] sm:$0xff] %v5552
      %5681 = vst [vmem:[%s532 + $0xe8] sm:$0xff] %v5553
      %5682 = vst [vmem:[%s532 + $0xf0] sm:$0xff] %v5554
      %5683 = vst [vmem:[%s532 + $0xf8] sm:$0xf] %v5555
      %5684 = vst [vmem:[%s532 + $0xfc] sm:$0xff] %v5556
      %5685 = vst [vmem:[%s532 + $0x104] sm:$0xff] %v5557
      %5686 = vst [vmem:[%s532 + $0x10c] sm:$0xff] %v5558
      %5687 = vst [vmem:[%s532 + $0x114] sm:$0xf] %v5559
      %5688 = vst [vmem:[%s532 + $0x118] sm:$0xff] %v5560
      %5689 = vst [vmem:[%s532 + $0x120] sm:$0xff] %v5561
      %5690 = vst [vmem:[%s532 + $0x128] sm:$0xff] %v5562
      %5691 = vst [vmem:[%s532 + $0x130] sm:$0xf] %v5563
      %5692 = vst [vmem:[%s532 + $0x134] sm:$0xff] %v5564
      %5693 = vst [vmem:[%s532 + $0x13c] sm:$0xff] %v5565
      %5694 = vst [vmem:[%s532 + $0x144] sm:$0xff] %v5566
      %5695 = vst [vmem:[%s532 + $0x14c] sm:$0xf] %v5567
      %5696 = vst [vmem:[%s532 + $0x150] sm:$0xff] %v5568
      %5697 = vst [vmem:[%s532 + $0x158] sm:$0xff] %v5569
      %5698 = vst [vmem:[%s532 + $0x160] sm:$0xff] %v5570
      %5699 = vst [vmem:[%s532 + $0x168] sm:$0xf] %v5571
      %5700 = vst [vmem:[%s532 + $0x16c] sm:$0xff] %v5572
      %5701 = vst [vmem:[%s532 + $0x174] sm:$0xff] %v5573
      %5702 = vst [vmem:[%s532 + $0x17c] sm:$0xff] %v5574
      %5703 = vst [vmem:[%s532 + $0x184] sm:$0xf] %v5575
      %5704 = vst [vmem:[%s532 + $0x188] sm:$0xff] %v5576
      %5705 = vst [vmem:[%s532 + $0x190] sm:$0xff] %v5577
      %5706 = vst [vmem:[%s532 + $0x198] sm:$0xff] %v5578
      %5707 = vst [vmem:[%s532 + $0x1a0] sm:$0xf] %v5579
      %5708 = vst [vmem:[%s532 + $0x1a4] sm:$0xff] %v5580
      %5709 = vst [vmem:[%s532 + $0x1ac] sm:$0xff] %v5581
      %5710 = vst [vmem:[%s532 + $0x1b4] sm:$0xff] %v5582
      %5711 = vst [vmem:[%s532 + $0x1bc] sm:$0xf] %v5583
      %s5712 = smul.u32 16, %s27
      %p5713 = scmp.lt.s32.totalorder %s5712, 31
      %s5714 = scalar_select %p5713, %s5712, 31
      %s5715 = smul.addr %s5714, 7
      %s5716 = smul.addr %s5715, 4
      %s5717 = scalar_lea.vmem %s14, %s5716
      %s5718 = smul.u32 16, %s27
      %p5719 = scmp.lt.s32.totalorder %s5718, 31
      %s5720 = scalar_select %p5719, %s5718, 31
      %s5721 = smul.addr %s5720, 2
      %s5722 = smul.addr %s5721, 8
      %s5723 = scalar_lea.vmem %s15, %s5722
      // Predicated region
      $region77: #{vr_model_forward.1} parent=75 // pred_check
        %p5724 = pneg %p349
      $region78: #{vr_model_forward.1} parent=75 // pred_check_branch
        %5726 = sbr.rel (%p5724) target = $region80
      $region79: #{vr_model_forward.1} parent=75 // pred_region
        %s5727 = smul.u32 16, %s27
      $region80: #{vr_model_forward.1} parent=75 // pred_fallthru
        _
      // Predicated region
      $region81: #{vr_model_forward.1} parent=75 // pred_check
        %p5728 = pneg %p375
      $region82: #{vr_model_forward.1} parent=75 // pred_check_branch
        %5730 = sbr.rel (%p5728) target = $region84
      $region83: #{vr_model_forward.1} parent=75 // pred_region
        %s5731 = smul.u32 16, %s27
      $region84: #{vr_model_forward.1} parent=75 // pred_fallthru
        _
    $region76: #{vr_model_forward.1} parent=5 // pred_fallthru
      _
    %p5732 = scmp.le.s32.totalorder 2, %s22
    // Predicated region
    $region85: #{vr_model_forward.1} parent=5 // pred_check
      %p5733 = pneg %p5732
    $region86: #{vr_model_forward.1} parent=5 // pred_check_branch
      %5735 = sbr.rel (%p5733) target = $region88
    $region87: #{vr_model_forward.1} parent=5 // pred_region
      %s5736 = ssub.s32 %s22, 2
      // Predicated region
      $region89: #{vr_model_forward.1} parent=87 // pred_check
        %p5737 = pneg %p355
      $region90: #{vr_model_forward.1} parent=87 // pred_check_branch
        %5739 = sbr.rel (%p5737) target = $region92
      $region91: #{vr_model_forward.1} parent=87 // pred_region
        %s5740 = smul.u32 16, %s28
        %p5741 = scmp.lt.s32.totalorder %s5740, 31
        %s5742 = scalar_select %p5741, %s5740, 31
        %s5743 = smul.addr %s5742, 7
        %s5744 = smul.addr %s5743, 4
        %s5745 = scalar_lea.vmem %s14, %s5744
      $region92: #{vr_model_forward.1} parent=87 // pred_fallthru
        _
      // Predicated region
      $region93: #{vr_model_forward.1} parent=87 // pred_check
        %p5746 = pneg %p381
      $region94: #{vr_model_forward.1} parent=87 // pred_check_branch
        %5748 = sbr.rel (%p5746) target = $region96
      $region95: #{vr_model_forward.1} parent=87 // pred_region
        %s5749 = smul.u32 16, %s28
        %p5750 = scmp.lt.s32.totalorder %s5749, 31
        %s5751 = scalar_select %p5750, %s5749, 31
        %s5752 = smul.addr %s5751, 2
        %s5753 = smul.addr %s5752, 8
        %s5754 = scalar_lea.vmem %s15, %s5753
      $region96: #{vr_model_forward.1} parent=87 // pred_fallthru
        _
    $region88: #{vr_model_forward.1} parent=5 // pred_fallthru
      _
  $region6: #{vr_model_forward.1} parent=0 // loop_footer
    %s26 = sadd.s32 1, %s22
  $region7: #{vr_model_forward.1} parent=0 // loop_footer_branch
    %21 = sbr.rel target = $region3
  $region8: #{vr_model_forward.1} parent=0 // loop_exit
    _

</llo_original>
